<compile_context>
chip_gen: v6e
topology: v6e:2x2x1
jax: 0.10.0
libtpu: 0.0.40
codegen_flags: <defaults>
</compile_context>

<pallas_src>
import functools

import jax
import jax.numpy as jnp
from jax.experimental import pallas as pl
from jax.experimental.pallas import tpu as pltpu


# ----------------------------- fused NetVLAD + FC kernel ------------------------------
def netvlad_fc_kernel(x_ref, cbn_ref, shift_ref, c2t_ref, wp_ref, b_ref, out_ref):
    # x_ref block: (Bblk, T, D); one block of batch elements per grid step.
    Bblk, T, D = x_ref.shape
    K = cbn_ref.shape[1]

    xb = x_ref[...]                                                  # (Bblk, T, D)
    xf = xb.reshape(Bblk * T, D)                                     # flatten batch rows

    # soft assignment: x @ (clusters * bn_scale) + bn_shift, then softmax over K
    logits = jnp.dot(xf, cbn_ref[...],
                     preferred_element_type=jnp.float32)             # (Bblk*T, K)
    logits = logits + shift_ref[...]                                 # (1, K) broadcast
    logits = logits - jnp.max(logits, axis=-1, keepdims=True)
    e = jnp.exp(logits)
    assign_f = e * pl.reciprocal(jnp.sum(e, axis=-1, keepdims=True),
                                 approx=True)                        # (Bblk*T, K)

    assignb = assign_f.reshape(Bblk, T, K)                           # (Bblk, T, K)
    assignT = jnp.transpose(assignb, (0, 2, 1))                      # (Bblk, K, T)

    # M[b,k,d] = sum_t assign[b,t,k] * x[b,t,d]   (canonical batched matmul)
    m = jnp.einsum("bkt,btd->bkd", assignT, xb,
                   preferred_element_type=jnp.float32)               # (Bblk, K, D)

    # a[b,k,d] = (sum_t assign[b,t,k]) * clusters2[d,k]
    a_sum = jnp.sum(assignT, axis=2, keepdims=True)                  # (Bblk, K, 1)
    vraw = m - a_sum * c2t_ref[...][None]                            # (Bblk, K, D)

    # intra-normalization over the feature dim D (F.normalize over dim D, eps=1e-12)
    ss = jnp.sum(vraw * vraw, axis=2, keepdims=True)                 # (Bblk, K, 1)
    v = vraw * jax.lax.rsqrt(jnp.maximum(ss, 1e-24))

    # global L2 normalization over the (to-be-flattened) (K*D,) vector
    gs = jnp.sum(jnp.sum(v * v, axis=2, keepdims=True),
                 axis=1, keepdims=True)                              # (Bblk, 1, 1)
    v = v * jax.lax.rsqrt(jnp.maximum(gs, 1e-24))

    # dropout(p=0.4) is identity at inference

    # fused FC: flatten (K, D) with D (=128m) fastest; wp rows were permuted in the
    # wrapper so this matches torch's (D, K)-K-fastest flatten against fc_w.
    vflat = v.reshape(Bblk, K * D)                                   # (Bblk, K*D)
    out_ref[...] = (
        jnp.dot(vflat, wp_ref[...], preferred_element_type=jnp.float32)
        + b_ref[...]
    )                                                                # (Bblk, 512)


# ----------------------------- wrapper -------------------------------------------------
@jax.jit
def graph_stream_forward(x, clusters, clusters2, bn_scale, bn_shift, fc_w, fc_b):
    B, T, D = x.shape
    K = clusters.shape[1]
    O = fc_w.shape[1]

    # keep >=2 grid steps when possible (v7x has 2 TensorCores)
    block_b = 8 if (B % 8 == 0 and B > 8) else B
    grid_b = B // block_b

    # fold eval-mode BatchNorm scale into the cluster projection; pass only the shift
    cbn = clusters * bn_scale                                        # (D, K)
    shift = bn_shift.reshape(1, K)
    c2t = clusters2.T                                                # (K, D)
    # permute fc_w rows from torch's d*K+k flatten order to the kernel's k*D+d order
    # (in real use precompute this once, outside the forward pass)
    wp = jnp.transpose(fc_w.reshape(D, K, O), (1, 0, 2)).reshape(K * D, O)
    bias = fc_b.reshape(1, O)

    out = pl.pallas_call(
        netvlad_fc_kernel,
        out_shape=jax.ShapeDtypeStruct((B, O), jnp.float32),
        grid_spec=pltpu.PrefetchScalarGridSpec(
            num_scalar_prefetch=0,
            grid=(grid_b,),
            in_specs=[
                pl.BlockSpec((block_b, T, D), lambda b: (b, 0, 0)),  # x
                pl.BlockSpec((D, K), lambda b: (0, 0)),              # clusters*bn_scale
                pl.BlockSpec((1, K), lambda b: (0, 0)),              # bn_shift
                pl.BlockSpec((K, D), lambda b: (0, 0)),              # clusters2^T
                pl.BlockSpec((K * D, O), lambda b: (0, 0)),          # permuted fc_w
                pl.BlockSpec((1, O), lambda b: (0, 0)),              # fc_b
            ],
            out_specs=pl.BlockSpec((block_b, O), lambda b: (b, 0)),
        ),
        compiler_params=pltpu.CompilerParams(
            dimension_semantics=("parallel",)),
    )(x, cbn, shift, c2t, wp, bias)
    return out


# ----------------------------- pure-JAX reference --------------------------------------
def reference_forward(x, clusters, clusters2, bn_scale, bn_shift, fc_w, fc_b):
    B, T, D = x.shape
    K = clusters.shape[1]
    logits = jnp.einsum("btd,dk->btk", x, clusters) * bn_scale + bn_shift
    assign = jax.nn.softmax(logits, axis=-1)                        # (B, T, K)
    a_sum = jnp.sum(assign, axis=1, keepdims=True)                  # (B, 1, K)
    a = a_sum * clusters2[None]                                     # (B, D, K)
    vlad = jnp.einsum("btk,btd->bdk", assign, x) - a                # (B, D, K)
    vlad = vlad / jnp.maximum(
        jnp.sqrt(jnp.sum(vlad * vlad, axis=1, keepdims=True)), 1e-12)
    vlad = vlad.reshape(B, D * K)                                   # K fastest
    vlad = vlad / jnp.maximum(
        jnp.sqrt(jnp.sum(vlad * vlad, axis=1, keepdims=True)), 1e-12)
    return vlad @ fc_w + fc_b


if __name__ == "__main__":
    # small shapes consistent with the module's forward
    B, T, D, K = 16, 16, 128, 16        # batch, frames, GRAPH_OUTPUT_SIZE, vocab_size
    OUT = 512                            # StreamPooling.OUTPUT_SIZE

    key = jax.random.PRNGKey(0)
    k_x, k_c, k_c2, k_w, k_b = jax.random.split(key, 5)

    # PlayerGraph output features (stand-in; see TODO above)
    x = jax.random.normal(k_x, (B, T, D), dtype=jnp.float32)

    # NetVLAD parameters (torch init: randn / sqrt(feature_size))
    clusters = jax.random.normal(k_c, (D, K), dtype=jnp.float32) / jnp.sqrt(1.0 * D)
    clusters2 = jax.random.normal(k_c2, (D, K), dtype=jnp.float32) / jnp.sqrt(1.0 * D)

    # BatchNorm1d(K) eval-mode folded affine: gamma=1, beta=0, mean=0, var=1, eps=1e-5
    bn_scale = jnp.full((1, K), 1.0 / jnp.sqrt(1.0 + 1e-5), dtype=jnp.float32)
    bn_shift = jnp.zeros((1, K), dtype=jnp.float32)

    # fc: Linear(D*K, 512)
    bound = 1.0 / jnp.sqrt(1.0 * D * K)
    fc_w = jax.random.uniform(k_w, (D * K, OUT), jnp.float32, -bound, bound)
    fc_b = jax.random.uniform(k_b, (OUT,), jnp.float32, -bound, bound)

    out = graph_stream_forward(x, clusters, clusters2, bn_scale, bn_shift, fc_w, fc_b)
    out = jax.block_until_ready(out)

    ref = reference_forward(x, clusters, clusters2, bn_scale, bn_shift, fc_w, fc_b)
    assert out.shape == (B, OUT), out.shape
    err = float(jnp.max(jnp.abs(out - ref)))
    assert jnp.allclose(out, ref, atol=2e-3, rtol=2e-3), err

    print("KERNEL_OK")
</pallas_src>

<mosaic_0001>
module attributes {stable_mosaic.version = 11 : i64} {
  func.func @netvlad_fc_kernel(%arg0: i32, %arg1: memref<8x16x128xf32, #tpu.memory_space<vmem>>, %arg2: memref<128x16xf32, #tpu.memory_space<vmem>>, %arg3: memref<1x16xf32, #tpu.memory_space<vmem>>, %arg4: memref<16x128xf32, #tpu.memory_space<vmem>>, %arg5: memref<2048x512xf32, #tpu.memory_space<vmem>>, %arg6: memref<1x512xf32, #tpu.memory_space<vmem>>, %arg7: memref<8x512xf32, #tpu.memory_space<vmem>>) attributes {dimension_semantics = [#tpu.dimension_semantics<parallel>], iteration_bounds = array<i64: 2>, scalar_prefetch = 0 : i64, scratch_operands = 0 : i64, tpu.core_type = #tpu.core_type<tc>, window_params = [{transform_indices = @transform_0, window_bounds = array<i64: 8, 16, 128>}, {pipeline_mode = #tpu.pipeline_mode<synchronous>, transform_indices = @transform_1, window_bounds = array<i64: 128, 16>}, {pipeline_mode = #tpu.pipeline_mode<synchronous>, transform_indices = @transform_2, window_bounds = array<i64: 1, 16>}, {pipeline_mode = #tpu.pipeline_mode<synchronous>, transform_indices = @transform_3, window_bounds = array<i64: 16, 128>}, {pipeline_mode = #tpu.pipeline_mode<synchronous>, transform_indices = @transform_4, window_bounds = array<i64: 2048, 512>}, {pipeline_mode = #tpu.pipeline_mode<synchronous>, transform_indices = @transform_5, window_bounds = array<i64: 1, 512>}, {transform_indices = @transform_6, window_bounds = array<i64: 8, 512>}]} {
    %c0 = arith.constant 0 : index
    %c0_0 = arith.constant 0 : index
    %c0_1 = arith.constant 0 : index
    %0 = vector.load %arg1[%c0, %c0_0, %c0_1] : memref<8x16x128xf32, #tpu.memory_space<vmem>>, vector<8x16x128xf32>
    %1 = vector.shape_cast %0 : vector<8x16x128xf32> to vector<128x128xf32>
    %c0_2 = arith.constant 0 : index
    %c0_3 = arith.constant 0 : index
    %2 = vector.load %arg2[%c0_2, %c0_3] : memref<128x16xf32, #tpu.memory_space<vmem>>, vector<128x16xf32>
    %cst = arith.constant dense<0.000000e+00> : vector<128x16xf32>
    %3 = tpu.matmul %1, %2, %cst {dimension_numbers = #tpu.dot_dimension_numbers<[1], [0], [0], [1], [0, 0, 1, 1], [], []>} : vector<128x128xf32>, vector<128x16xf32>, vector<128x16xf32> -> vector<128x16xf32>
    %c0_4 = arith.constant 0 : index
    %c0_5 = arith.constant 0 : index
    %4 = vector.load %arg3[%c0_4, %c0_5] : memref<1x16xf32, #tpu.memory_space<vmem>>, vector<1x16xf32>
    %5 = vector.broadcast %4 : vector<1x16xf32> to vector<128x16xf32>
    %6 = arith.addf %3, %5 : vector<128x16xf32>
    %cst_6 = arith.constant dense<0xFF800000> : vector<128xf32>
    %7 = vector.multi_reduction <maximumf>, %6, %cst_6 [1] : vector<128x16xf32> to vector<128xf32>
    %8 = vector.shape_cast %7 : vector<128xf32> to vector<128x1xf32>
    %9 = vector.broadcast %8 : vector<128x1xf32> to vector<128x16xf32>
    %10 = arith.subf %6, %9 : vector<128x16xf32>
    %11 = math.exp %10 : vector<128x16xf32>
    %cst_7 = arith.constant dense<0.000000e+00> : vector<128xf32>
    %12 = vector.multi_reduction <add>, %11, %cst_7 [1] : vector<128x16xf32> to vector<128xf32>
    %13 = vector.shape_cast %12 : vector<128xf32> to vector<128x1xf32>
    %14 = tpu.reciprocal %13 {approx = true} : vector<128x1xf32> -> vector<128x1xf32>
    %15 = vector.broadcast %14 : vector<128x1xf32> to vector<128x16xf32>
    %16 = arith.mulf %11, %15 : vector<128x16xf32>
    %17 = vector.shape_cast %16 : vector<128x16xf32> to vector<8x16x16xf32>
    %18 = tpu.transpose %17, [0, 2, 1] : vector<8x16x16xf32> -> vector<8x16x16xf32>
    "tpu.trace_start"() <{level = 10 : i32, message = "bkt,btd->bkd"}> : () -> ()
    %cst_8 = arith.constant dense<0.000000e+00> : vector<8x16x128xf32>
    %19 = tpu.matmul %18, %0, %cst_8 {dimension_numbers = #tpu.dot_dimension_numbers<[2], [1], [1], [2], [0, 0, 0, 1, 1, 2], [0], [0]>} : vector<8x16x16xf32>, vector<8x16x128xf32>, vector<8x16x128xf32> -> vector<8x16x128xf32>
    "tpu.trace_stop"() : () -> ()
    %cst_9 = arith.constant dense<0.000000e+00> : vector<8x16xf32>
    %20 = vector.multi_reduction <add>, %18, %cst_9 [2] : vector<8x16x16xf32> to vector<8x16xf32>
    %21 = vector.shape_cast %20 : vector<8x16xf32> to vector<8x16x1xf32>
    %c0_10 = arith.constant 0 : index
    %c0_11 = arith.constant 0 : index
    %22 = vector.load %arg4[%c0_10, %c0_11] : memref<16x128xf32, #tpu.memory_space<vmem>>, vector<16x128xf32>
    %23 = vector.shape_cast %22 : vector<16x128xf32> to vector<1x16x128xf32>
    %24 = vector.broadcast %21 : vector<8x16x1xf32> to vector<8x16x128xf32>
    %25 = vector.broadcast %23 : vector<1x16x128xf32> to vector<8x16x128xf32>
    %26 = arith.mulf %24, %25 : vector<8x16x128xf32>
    %27 = arith.subf %19, %26 : vector<8x16x128xf32>
    %28 = arith.mulf %27, %27 : vector<8x16x128xf32>
    %cst_12 = arith.constant dense<0.000000e+00> : vector<8x16xf32>
    %29 = vector.multi_reduction <add>, %28, %cst_12 [2] : vector<8x16x128xf32> to vector<8x16xf32>
    %30 = vector.shape_cast %29 : vector<8x16xf32> to vector<8x16x1xf32>
    %cst_13 = arith.constant 1.000000e-24 : f32
    %31 = vector.broadcast %cst_13 : f32 to vector<8x16x1xf32>
    %32 = arith.maximumf %30, %31 : vector<8x16x1xf32>
    %33 = math.rsqrt %32 : vector<8x16x1xf32>
    %34 = vector.broadcast %33 : vector<8x16x1xf32> to vector<8x16x128xf32>
    %35 = arith.mulf %27, %34 : vector<8x16x128xf32>
    %36 = arith.mulf %35, %35 : vector<8x16x128xf32>
    %cst_14 = arith.constant dense<0.000000e+00> : vector<8x16xf32>
    %37 = vector.multi_reduction <add>, %36, %cst_14 [2] : vector<8x16x128xf32> to vector<8x16xf32>
    %38 = vector.shape_cast %37 : vector<8x16xf32> to vector<8x16x1xf32>
    %cst_15 = arith.constant dense<0.000000e+00> : vector<8x1xf32>
    %39 = vector.multi_reduction <add>, %38, %cst_15 [1] : vector<8x16x1xf32> to vector<8x1xf32>
    %40 = vector.shape_cast %39 : vector<8x1xf32> to vector<8x1x1xf32>
    %cst_16 = arith.constant 1.000000e-24 : f32
    %41 = vector.broadcast %cst_16 : f32 to vector<8x1x1xf32>
    %42 = arith.maximumf %40, %41 : vector<8x1x1xf32>
    %43 = math.rsqrt %42 : vector<8x1x1xf32>
    %44 = vector.broadcast %43 : vector<8x1x1xf32> to vector<8x16x128xf32>
    %45 = arith.mulf %35, %44 : vector<8x16x128xf32>
    %46 = vector.shape_cast %45 : vector<8x16x128xf32> to vector<8x2048xf32>
    %c0_17 = arith.constant 0 : index
    %c0_18 = arith.constant 0 : index
    %47 = vector.load %arg5[%c0_17, %c0_18] : memref<2048x512xf32, #tpu.memory_space<vmem>>, vector<2048x512xf32>
    %cst_19 = arith.constant dense<0.000000e+00> : vector<8x512xf32>
    %48 = tpu.matmul %46, %47, %cst_19 {dimension_numbers = #tpu.dot_dimension_numbers<[1], [0], [0], [1], [0, 0, 1, 1], [], []>} : vector<8x2048xf32>, vector<2048x512xf32>, vector<8x512xf32> -> vector<8x512xf32>
    %c0_20 = arith.constant 0 : index
    %c0_21 = arith.constant 0 : index
    %49 = vector.load %arg6[%c0_20, %c0_21] : memref<1x512xf32, #tpu.memory_space<vmem>>, vector<1x512xf32>
    %50 = vector.broadcast %49 : vector<1x512xf32> to vector<8x512xf32>
    %51 = arith.addf %48, %50 : vector<8x512xf32>
    %c0_22 = arith.constant 0 : index
    %c0_23 = arith.constant 0 : index
    %52 = vector.load %arg7[%c0_22, %c0_23] : memref<8x512xf32, #tpu.memory_space<vmem>>, vector<8x512xf32>
    tpu.vector_store %arg7[%c0_22, %c0_23], %51 {strides = array<i32>} : memref<8x512xf32, #tpu.memory_space<vmem>>, vector<8x512xf32>,
    return
  }
  func.func @transform_0(%arg0: i32) -> (i32, i32, i32) {
    %c0_i32 = arith.constant 0 : i32
    %c0_i32_0 = arith.constant 0 : i32
    %c0_i32_1 = arith.constant 0 : i32
    return %arg0, %c0_i32, %c0_i32_0 : i32, i32, i32
  }
  func.func @transform_1(%arg0: i32) -> (i32, i32) {
    %c0_i32 = arith.constant 0 : i32
    %c0_i32_0 = arith.constant 0 : i32
    %c0_i32_1 = arith.constant 0 : i32
    return %c0_i32, %c0_i32_0 : i32, i32
  }
  func.func @transform_2(%arg0: i32) -> (i32, i32) {
    %c0_i32 = arith.constant 0 : i32
    %c0_i32_0 = arith.constant 0 : i32
    %c0_i32_1 = arith.constant 0 : i32
    return %c0_i32, %c0_i32_0 : i32, i32
  }
  func.func @transform_3(%arg0: i32) -> (i32, i32) {
    %c0_i32 = arith.constant 0 : i32
    %c0_i32_0 = arith.constant 0 : i32
    %c0_i32_1 = arith.constant 0 : i32
    return %c0_i32, %c0_i32_0 : i32, i32
  }
  func.func @transform_4(%arg0: i32) -> (i32, i32) {
    %c0_i32 = arith.constant 0 : i32
    %c0_i32_0 = arith.constant 0 : i32
    %c0_i32_1 = arith.constant 0 : i32
    return %c0_i32, %c0_i32_0 : i32, i32
  }
  func.func @transform_5(%arg0: i32) -> (i32, i32) {
    %c0_i32 = arith.constant 0 : i32
    %c0_i32_0 = arith.constant 0 : i32
    %c0_i32_1 = arith.constant 0 : i32
    return %c0_i32, %c0_i32_0 : i32, i32
  }
  func.func @transform_6(%arg0: i32) -> (i32, i32) {
    %c0_i32 = arith.constant 0 : i32
    %c0_i32_0 = arith.constant 0 : i32
    return %arg0, %c0_i32 : i32, i32
  }
}

</mosaic_0001>

<llo_original>
// kernel: graph_stream_forward.1
$region0: #{graph_stream_forward.1}
  #allocation0 [shape = 'u32[]', space=smem, size = 0x4, offset = 0x4, fixed_abs, tag = 'smem constant byte address 0x4 - core index']
  #allocation1 [shape = 'u32[144,128]{1,0:T(1,128)}', space=vmem, size = 0x12000, scoped, tag = 'internal scratch']
  %s0 = inlined_call_operand.vmem [shape: f32[16,16,128], index: 0, kind: input, shape index: {}]
  %s1 = inlined_call_operand.vmem [shape: f32[128,16], index: 1, kind: input, shape index: {}]
  %s2 = inlined_call_operand.vmem [shape: f32[1,16], index: 2, kind: input, shape index: {}]
  %s3 = inlined_call_operand.vmem [shape: f32[16,128], index: 3, kind: input, shape index: {}]
  %s4 = inlined_call_operand.vmem [shape: f32[2048,512], index: 4, kind: input, shape index: {}]
  %s5 = inlined_call_operand.vmem [shape: f32[1,512], index: 5, kind: input, shape index: {}]
  %s6 = inlined_call_operand.hbm [shape: f32[16,512], index: 6, kind: output, shape index: {}]
  %s7 = sld [smem:[#allocation0]]
  $region57: #{graph_stream_forward.1} parent=0
    _
  %s9 = ssub.s32 1, %s7
  %s10 = scalar_select 0, %s9, %s7
  $region1: #{graph_stream_forward.1} parent=0
    #allocation2 [shape = 'u8[32768]{0}', space=vmem, size = 0x8000, scoped, tag = 'output window, operand 0']
    #allocation3 [shape = 's32[2]{0}', space=sflag, size = 0x8, scoped, tag = 'scoped memory for graph_stream_forward.1']
    %11 = vsyncpa [#allocation3], 0
    %s12 = scalar_lea.sflag [#allocation3], 1
    %13 = vsyncpa %s12, 0
    loop: start=0, step=1, limit=4
    $region2: #{graph_stream_forward.1} parent=1 // loop_pre_header
      _
    $region3: #{graph_stream_forward.1} parent=1 // loop_header
      %s15 = sphi 0, %s19
      %p16 = scmp.ge.s32.totalorder %s15, 4
      %s25 = sphi 0, %s27
      %s28 = sphi 0, %s25
      %s29 = sphi 0, %s28
      %s45 = sphi 0, %s29
      %s49 = sphi 0, %s49
      %s51 = sphi 0, %s49
      %s52 = sphi 0, %s51
      %s66 = sphi 0, %s52
      %s70 = sphi 0, %s70
      %s72 = sphi 0, %s70
      %s73 = sphi 0, %s72
      %s87 = sphi 0, %s73
      %s91 = sphi 0, %s91
      %s93 = sphi 0, %s91
      %s94 = sphi 0, %s93
      %s108 = sphi 0, %s94
      %s112 = sphi 0, %s112
      %s114 = sphi 0, %s112
      %s115 = sphi 0, %s114
      %s129 = sphi 0, %s115
      %s133 = sphi 0, %s133
      %s135 = sphi 0, %s133
      %s136 = sphi 0, %s135
      %s150 = sphi 0, %s136
      %s156 = sphi 0, %s158
      %s159 = sphi 0, %s156
      %s160 = sphi 0, %s159
      %s176 = sphi 0, %s160
    $region4: #{graph_stream_forward.1} parent=1 // loop_header_branch
      %18 = sbr.rel (%p16) target = $region8
    $region5: #{graph_stream_forward.1} parent=1 // loop_body
      %s20 = ssub.s32 %s15, 1
      %s21 = ssub.s32 %s15, 2
      %s22 = sadd.s32 %s15, 1
      %s23 = ssub.s32 %s15, %s22
      %p24 = scmp.eq.s32.totalorder %s23, 0
      %s26 = sadd.s32 %s25, 1
      %s27 = scalar_select %p24, %s25, %s26
      %p30 = pneg %p24
      %p31 = scmp.eq.s32.totalorder %s15, 1
      %p32 = por %p30, %p31
      %p33 = scmp.ne.s32.totalorder %s25, %s28
      %p34 = scmp.eq.s32.totalorder %s15, 0
      %p35 = por %p33, %p34
      %p36 = scmp.ne.s32.totalorder %s25, %s28
      %p37 = scmp.eq.s32.totalorder %s20, 1
      %p38 = por %p36, %p37
      %p39 = scmp.ne.s32.totalorder %s28, %s29
      %p40 = scmp.eq.s32.totalorder %s20, 0
      %p41 = por %p39, %p40
      %p42 = scmp.ne.s32.totalorder %s28, %s29
      %p43 = scmp.eq.s32.totalorder %s21, 1
      %p44 = por %p42, %p43
      %p46 = scmp.ne.s32.totalorder %s29, %s45
      %p47 = scmp.eq.s32.totalorder %s21, 0
      %p48 = por %p46, %p47
      %s50 = sadd.s32 %s49, 1
      %p53 = scmp.eq.s32.totalorder %s15, 1
      %p54 = scmp.ne.s32.totalorder %s49, %s51
      %p55 = scmp.eq.s32.totalorder %s15, 0
      %p56 = por %p54, %p55
      %p57 = scmp.ne.s32.totalorder %s49, %s51
      %p58 = scmp.eq.s32.totalorder %s20, 1
      %p59 = por %p57, %p58
      %p60 = scmp.ne.s32.totalorder %s51, %s52
      %p61 = scmp.eq.s32.totalorder %s20, 0
      %p62 = por %p60, %p61
      %p63 = scmp.ne.s32.totalorder %s51, %s52
      %p64 = scmp.eq.s32.totalorder %s21, 1
      %p65 = por %p63, %p64
      %p67 = scmp.ne.s32.totalorder %s52, %s66
      %p68 = scmp.eq.s32.totalorder %s21, 0
      %p69 = por %p67, %p68
      %s71 = sadd.s32 %s70, 1
      %p74 = scmp.eq.s32.totalorder %s15, 1
      %p75 = scmp.ne.s32.totalorder %s70, %s72
      %p76 = scmp.eq.s32.totalorder %s15, 0
      %p77 = por %p75, %p76
      %p78 = scmp.ne.s32.totalorder %s70, %s72
      %p79 = scmp.eq.s32.totalorder %s20, 1
      %p80 = por %p78, %p79
      %p81 = scmp.ne.s32.totalorder %s72, %s73
      %p82 = scmp.eq.s32.totalorder %s20, 0
      %p83 = por %p81, %p82
      %p84 = scmp.ne.s32.totalorder %s72, %s73
      %p85 = scmp.eq.s32.totalorder %s21, 1
      %p86 = por %p84, %p85
      %p88 = scmp.ne.s32.totalorder %s73, %s87
      %p89 = scmp.eq.s32.totalorder %s21, 0
      %p90 = por %p88, %p89
      %s92 = sadd.s32 %s91, 1
      %p95 = scmp.eq.s32.totalorder %s15, 1
      %p96 = scmp.ne.s32.totalorder %s91, %s93
      %p97 = scmp.eq.s32.totalorder %s15, 0
      %p98 = por %p96, %p97
      %p99 = scmp.ne.s32.totalorder %s91, %s93
      %p100 = scmp.eq.s32.totalorder %s20, 1
      %p101 = por %p99, %p100
      %p102 = scmp.ne.s32.totalorder %s93, %s94
      %p103 = scmp.eq.s32.totalorder %s20, 0
      %p104 = por %p102, %p103
      %p105 = scmp.ne.s32.totalorder %s93, %s94
      %p106 = scmp.eq.s32.totalorder %s21, 1
      %p107 = por %p105, %p106
      %p109 = scmp.ne.s32.totalorder %s94, %s108
      %p110 = scmp.eq.s32.totalorder %s21, 0
      %p111 = por %p109, %p110
      %s113 = sadd.s32 %s112, 1
      %p116 = scmp.eq.s32.totalorder %s15, 1
      %p117 = scmp.ne.s32.totalorder %s112, %s114
      %p118 = scmp.eq.s32.totalorder %s15, 0
      %p119 = por %p117, %p118
      %p120 = scmp.ne.s32.totalorder %s112, %s114
      %p121 = scmp.eq.s32.totalorder %s20, 1
      %p122 = por %p120, %p121
      %p123 = scmp.ne.s32.totalorder %s114, %s115
      %p124 = scmp.eq.s32.totalorder %s20, 0
      %p125 = por %p123, %p124
      %p126 = scmp.ne.s32.totalorder %s114, %s115
      %p127 = scmp.eq.s32.totalorder %s21, 1
      %p128 = por %p126, %p127
      %p130 = scmp.ne.s32.totalorder %s115, %s129
      %p131 = scmp.eq.s32.totalorder %s21, 0
      %p132 = por %p130, %p131
      %s134 = sadd.s32 %s133, 1
      %p137 = scmp.eq.s32.totalorder %s15, 1
      %p138 = scmp.ne.s32.totalorder %s133, %s135
      %p139 = scmp.eq.s32.totalorder %s15, 0
      %p140 = por %p138, %p139
      %p141 = scmp.ne.s32.totalorder %s133, %s135
      %p142 = scmp.eq.s32.totalorder %s20, 1
      %p143 = por %p141, %p142
      %p144 = scmp.ne.s32.totalorder %s135, %s136
      %p145 = scmp.eq.s32.totalorder %s20, 0
      %p146 = por %p144, %p145
      %p147 = scmp.ne.s32.totalorder %s135, %s136
      %p148 = scmp.eq.s32.totalorder %s21, 1
      %p149 = por %p147, %p148
      %p151 = scmp.ne.s32.totalorder %s136, %s150
      %p152 = scmp.eq.s32.totalorder %s21, 0
      %p153 = por %p151, %p152
      %s154 = ssub.s32 %s15, %s22
      %p155 = scmp.eq.s32.totalorder %s154, 0
      %s157 = sadd.s32 %s156, 1
      %s158 = scalar_select %p155, %s156, %s157
      %p161 = pneg %p155
      %p162 = scmp.eq.s32.totalorder %s15, 1
      %p163 = por %p161, %p162
      %p164 = scmp.ne.s32.totalorder %s156, %s159
      %p165 = scmp.eq.s32.totalorder %s15, 0
      %p166 = por %p164, %p165
      %p167 = scmp.ne.s32.totalorder %s156, %s159
      %p168 = scmp.eq.s32.totalorder %s20, 1
      %p169 = por %p167, %p168
      %p170 = scmp.ne.s32.totalorder %s159, %s160
      %p171 = scmp.eq.s32.totalorder %s20, 0
      %p172 = por %p170, %p171
      %p173 = scmp.ne.s32.totalorder %s159, %s160
      %p174 = scmp.eq.s32.totalorder %s21, 1
      %p175 = por %p173, %p174
      %p177 = scmp.ne.s32.totalorder %s160, %s176
      %p178 = scmp.eq.s32.totalorder %s21, 0
      %p179 = por %p177, %p178
      %p180 = scmp.le.s32.totalorder 1, %s15
      %p181 = scmp.lt.s32.totalorder %s15, 3
      %p182 = pnand %p180, %p181
      %p183 = pneg %p182
      // Predicated region
      $region9: #{graph_stream_forward.1} parent=5 // pred_check
        _
      $region10: #{graph_stream_forward.1} parent=5 // pred_check_branch
        %185 = sbr.rel (%p182) target = $region12
      $region11: #{graph_stream_forward.1} parent=5 // pred_region
        %s186 = ssub.s32 %s15, 1
        // Predicated region
        $region13: #{graph_stream_forward.1} parent=11 // pred_check
          %p187 = pneg %p62
        $region14: #{graph_stream_forward.1} parent=11 // pred_check_branch
          %189 = sbr.rel (%p187) target = $region16
        $region15: #{graph_stream_forward.1} parent=11 // pred_region
          _
        $region16: #{graph_stream_forward.1} parent=11 // pred_fallthru
          _
        // Predicated region
        $region17: #{graph_stream_forward.1} parent=11 // pred_check
          %p190 = pneg %p83
        $region18: #{graph_stream_forward.1} parent=11 // pred_check_branch
          %192 = sbr.rel (%p190) target = $region20
        $region19: #{graph_stream_forward.1} parent=11 // pred_region
          _
        $region20: #{graph_stream_forward.1} parent=11 // pred_fallthru
          _
        // Predicated region
        $region21: #{graph_stream_forward.1} parent=11 // pred_check
          %p193 = pneg %p104
        $region22: #{graph_stream_forward.1} parent=11 // pred_check_branch
          %195 = sbr.rel (%p193) target = $region24
        $region23: #{graph_stream_forward.1} parent=11 // pred_region
          _
        $region24: #{graph_stream_forward.1} parent=11 // pred_fallthru
          _
        // Predicated region
        $region25: #{graph_stream_forward.1} parent=11 // pred_check
          %p196 = pneg %p125
        $region26: #{graph_stream_forward.1} parent=11 // pred_check_branch
          %198 = sbr.rel (%p196) target = $region28
        $region27: #{graph_stream_forward.1} parent=11 // pred_region
          _
        $region28: #{graph_stream_forward.1} parent=11 // pred_fallthru
          _
        // Predicated region
        $region29: #{graph_stream_forward.1} parent=11 // pred_check
          %p199 = pneg %p146
        $region30: #{graph_stream_forward.1} parent=11 // pred_check_branch
          %201 = sbr.rel (%p199) target = $region32
        $region31: #{graph_stream_forward.1} parent=11 // pred_region
          _
        $region32: #{graph_stream_forward.1} parent=11 // pred_fallthru
          _
      $region12: #{graph_stream_forward.1} parent=5 // pred_fallthru
        _
      %p202 = scmp.lt.s32.totalorder %s15, 2
      // Predicated region
      $region33: #{graph_stream_forward.1} parent=5 // pred_check
        %p203 = pneg %p202
      $region34: #{graph_stream_forward.1} parent=5 // pred_check_branch
        %205 = sbr.rel (%p203) target = $region36
      $region35: #{graph_stream_forward.1} parent=5 // pred_region
        // Predicated region
        $region37: #{graph_stream_forward.1} parent=35 // pred_check
          %p206 = pneg %p35
        $region38: #{graph_stream_forward.1} parent=35 // pred_check_branch
          %208 = sbr.rel (%p206) target = $region40
        $region39: #{graph_stream_forward.1} parent=35 // pred_region
          %s209 = smul.u32 8, %s15
          %p210 = scmp.lt.s32.totalorder %s209, 15
          %s211 = scalar_select %p210, %s209, 15
          %s212 = smul.addr %s211, 2
          %s213 = smul.addr %s212, 8
          %s214 = scalar_lea.vmem %s0, %s213
          %s215 = smul.u32 8, %s15
        $region40: #{graph_stream_forward.1} parent=35 // pred_fallthru
          _
      $region36: #{graph_stream_forward.1} parent=5 // pred_fallthru
        _
      %p216 = scmp.le.s32.totalorder 1, %s15
      %p217 = scmp.lt.s32.totalorder %s15, 3
      %p218 = pnand %p216, %p217
      %p219 = pneg %p218
      // Predicated region
      $region41: #{graph_stream_forward.1} parent=5 // pred_check
        _
      $region42: #{graph_stream_forward.1} parent=5 // pred_check_branch
        %221 = sbr.rel (%p218) target = $region44
      $region43: #{graph_stream_forward.1} parent=5 // pred_region
        %s222 = ssub.s32 %s15, 1
        %s223 = smul.u32 8, %s20
        %p224 = scmp.lt.s32.totalorder %s223, 15
        %s225 = scalar_select %p224, %s223, 15
        %s226 = smul.addr %s225, 2
        %s227 = smul.addr %s226, 8
        %s228 = scalar_lea.vmem %s0, %s227
        %p229 = pneg %p41
        %p230 = pneg %p38
        %p231 = pneg %p62
        %p232 = pneg %p59
        %p233 = pneg %p83
        %p234 = pneg %p80
        %p235 = pneg %p104
        %p236 = pneg %p101
        %p237 = pneg %p125
        %p238 = pneg %p122
        %p239 = pneg %p146
        %p240 = pneg %p143
        %p241 = pneg %p172
        %p242 = pneg %p169
        %s243 = sand.u32 %s159, 1
        %s244 = scalar_lea.sflag [#allocation3], %s243
        %s245 = sand.u32 %s159, 1
        %s246 = smul.addr %s245, 32
        %s247 = scalar_lea.vmem [#allocation2], %s246
        %s248 = smul.u32 8, %s20
        %p249 = scmp.lt.s32.totalorder %s248, 15
        %s250 = scalar_select %p249, %s248, 15
        %s251 = smul.addr %s250, 2
        %s252 = smul.addr %s251, 8
        %s253 = scalar_lea.vmem %s0, %s252
        %s254 = smul.u32 8, %s20
        %v255 = vld [vmem:[%s253] sm:$0xff]
        %v256 = vld [vmem:[%s253 + $0x8] sm:$0xff]
        %v257 = vld [vmem:[%s253 + $0x10] sm:$0xff]
        %v258 = vld [vmem:[%s253 + $0x18] sm:$0xff]
        %v259 = vld [vmem:[%s253 + $0x20] sm:$0xff]
        %v260 = vld [vmem:[%s253 + $0x28] sm:$0xff]
        %v261 = vld [vmem:[%s253 + $0x30] sm:$0xff]
        %v262 = vld [vmem:[%s253 + $0x38] sm:$0xff]
        %v263 = vld [vmem:[%s253 + $0x40] sm:$0xff]
        %v264 = vld [vmem:[%s253 + $0x48] sm:$0xff]
        %v265 = vld [vmem:[%s253 + $0x50] sm:$0xff]
        %v266 = vld [vmem:[%s253 + $0x58] sm:$0xff]
        %v267 = vld [vmem:[%s253 + $0x60] sm:$0xff]
        %v268 = vld [vmem:[%s253 + $0x68] sm:$0xff]
        %v269 = vld [vmem:[%s253 + $0x70] sm:$0xff]
        %v270 = vld [vmem:[%s253 + $0x78] sm:$0xff]
        %v271 = vld [vmem:[%s1] sm:$0xff]
        %v272 = vld [vmem:[%s1 + $0x8] sm:$0xff]
        %v273 = vld [vmem:[%s1 + $0x10] sm:$0xff]
        %v274 = vld [vmem:[%s1 + $0x18] sm:$0xff]
        %v275 = vld [vmem:[%s1 + $0x20] sm:$0xff]
        %v276 = vld [vmem:[%s1 + $0x28] sm:$0xff]
        %v277 = vld [vmem:[%s1 + $0x30] sm:$0xff]
        %v278 = vld [vmem:[%s1 + $0x38] sm:$0xff]
        %v279 = vld [vmem:[%s1 + $0x40] sm:$0xff]
        %v280 = vld [vmem:[%s1 + $0x48] sm:$0xff]
        %v281 = vld [vmem:[%s1 + $0x50] sm:$0xff]
        %v282 = vld [vmem:[%s1 + $0x58] sm:$0xff]
        %v283 = vld [vmem:[%s1 + $0x60] sm:$0xff]
        %v284 = vld [vmem:[%s1 + $0x68] sm:$0xff]
        %v285 = vld [vmem:[%s1 + $0x70] sm:$0xff]
        %v286 = vld [vmem:[%s1 + $0x78] sm:$0xff]
        %v287 = vld [vmem:[%s2] sm:$0x1]
        %v289 = vlaneseq
        %v290 = vshrl.u32 %v289, 7
        %v291 = vsub.s32 0, %v290
        %v292 = vrot.slane %v287, %v291
        %294 = vmatprep.subr.mxu0 0.0
        %295 = vmatpush1.msra.mxu0 %v286
        %296 = vmatprep.subr.mxu0 0.0
        %297 = vmatpush1.msra.mxu0 %v285
        %298 = vmatprep.subr.mxu0 0.0
        %299 = vmatpush1.msra.mxu0 %v284
        %300 = vmatprep.subr.mxu0 0.0
        %301 = vmatpush1.msra.mxu0 %v283
        %302 = vmatprep.subr.mxu0 0.0
        %303 = vmatpush1.msra.mxu0 %v282
        %304 = vmatprep.subr.mxu0 0.0
        %305 = vmatpush1.msra.mxu0 %v281
        %306 = vmatprep.subr.mxu0 0.0
        %307 = vmatpush1.msra.mxu0 %v280
        %308 = vmatprep.subr.mxu0 0.0
        %309 = vmatpush1.msra.mxu0 %v279
        %310 = vmatprep.subr.mxu0 0.0
        %311 = vmatpush1.msra.mxu0 %v278
        %312 = vmatprep.subr.mxu0 0.0
        %313 = vmatpush1.msra.mxu0 %v277
        %314 = vmatprep.subr.mxu0 0.0
        %315 = vmatpush1.msra.mxu0 %v276
        %316 = vmatprep.subr.mxu0 0.0
        %317 = vmatpush1.msra.mxu0 %v275
        %318 = vmatprep.subr.mxu0 0.0
        %319 = vmatpush1.msra.mxu0 %v274
        %320 = vmatprep.subr.mxu0 0.0
        %321 = vmatpush1.msra.mxu0 %v273
        %322 = vmatprep.subr.mxu0 0.0
        %323 = vmatpush1.msra.mxu0 %v272
        %324 = vmatprep.subr.mxu0 0.0
        %325 = vmatpush1.msra.mxu0 %v271
        %326 = vmatprep.subr.mxu0 0.0
        %327 = vmatpush2.msra.mxu0 0.0
        %328 = vmatprep.subr.mxu0 0.0
        %329 = vmatpush2.msra.mxu0 0.0
        %330 = vmatprep.subr.mxu0 0.0
        %331 = vmatpush2.msra.mxu0 0.0
        %332 = vmatprep.subr.mxu0 0.0
        %333 = vmatpush2.msra.mxu0 0.0
        %334 = vmatprep.subr.mxu0 0.0
        %335 = vmatpush2.msra.mxu0 0.0
        %336 = vmatprep.subr.mxu0 0.0
        %337 = vmatpush2.msra.mxu0 0.0
        %338 = vmatprep.subr.mxu0 0.0
        %339 = vmatpush2.msra.mxu0 0.0
        %340 = vmatprep.subr.mxu0 0.0
        %341 = vmatpush2.msra.mxu0 0.0
        %342 = vmatprep.subr.mxu0 0.0
        %343 = vmatpush2.msra.mxu0 0.0
        %344 = vmatprep.subr.mxu0 0.0
        %345 = vmatpush2.msra.mxu0 0.0
        %346 = vmatprep.subr.mxu0 0.0
        %347 = vmatpush2.msra.mxu0 0.0
        %348 = vmatprep.subr.mxu0 0.0
        %349 = vmatpush2.msra.mxu0 0.0
        %350 = vmatprep.subr.mxu0 0.0
        %351 = vmatpush2.msra.mxu0 0.0
        %352 = vmatprep.subr.mxu0 0.0
        %353 = vmatpush2.msra.mxu0 0.0
        %354 = vmatprep.subr.mxu0 0.0
        %355 = vmatpush2.msra.mxu0 0.0
        %356 = vmatprep.subr.mxu0 0.0
        %357 = vmatpush2.msra.mxu0 0.0
        %358 = vmatprep.mubr.f32.mxu0 0.0
        %359 = vmatmul.mubr.f32.gmra.mxu0 %v255
        %v360 = vpop.f32.mrf.mxu0
        %v361 = vadd.f32 %v292, %v360
        %v362 = vpop.f32.mrf.mxu0
        %363 = vmatprep.mubr.f32.mxu0 0.0
        %364 = vmatmul.mubr.f32.gmra.mxu0 %v256
        %v365 = vpop.f32.mrf.mxu0
        %v366 = vadd.f32 %v292, %v365
        %v367 = vpop.f32.mrf.mxu0
        %368 = vmatprep.mubr.f32.mxu0 0.0
        %369 = vmatmul.mubr.f32.gmra.mxu0 %v257
        %v370 = vpop.f32.mrf.mxu0
        %v371 = vadd.f32 %v292, %v370
        %v372 = vpop.f32.mrf.mxu0
        %373 = vmatprep.mubr.f32.mxu0 0.0
        %374 = vmatmul.mubr.f32.gmra.mxu0 %v258
        %v375 = vpop.f32.mrf.mxu0
        %v376 = vadd.f32 %v292, %v375
        %v377 = vpop.f32.mrf.mxu0
        %378 = vmatprep.mubr.f32.mxu0 0.0
        %379 = vmatmul.mubr.f32.gmra.mxu0 %v259
        %v380 = vpop.f32.mrf.mxu0
        %v381 = vadd.f32 %v292, %v380
        %v382 = vpop.f32.mrf.mxu0
        %383 = vmatprep.mubr.f32.mxu0 0.0
        %384 = vmatmul.mubr.f32.gmra.mxu0 %v260
        %v385 = vpop.f32.mrf.mxu0
        %v386 = vadd.f32 %v292, %v385
        %v387 = vpop.f32.mrf.mxu0
        %388 = vmatprep.mubr.f32.mxu0 0.0
        %389 = vmatmul.mubr.f32.gmra.mxu0 %v261
        %v390 = vpop.f32.mrf.mxu0
        %v391 = vadd.f32 %v292, %v390
        %v392 = vpop.f32.mrf.mxu0
        %393 = vmatprep.mubr.f32.mxu0 0.0
        %394 = vmatmul.mubr.f32.gmra.mxu0 %v262
        %v395 = vpop.f32.mrf.mxu0
        %v396 = vadd.f32 %v292, %v395
        %v397 = vpop.f32.mrf.mxu0
        %398 = vmatprep.mubr.f32.mxu0 0.0
        %399 = vmatmul.mubr.f32.gmra.mxu0 %v263
        %v400 = vpop.f32.mrf.mxu0
        %v401 = vadd.f32 %v292, %v400
        %v402 = vpop.f32.mrf.mxu0
        %403 = vmatprep.mubr.f32.mxu0 0.0
        %404 = vmatmul.mubr.f32.gmra.mxu0 %v264
        %v405 = vpop.f32.mrf.mxu0
        %v406 = vadd.f32 %v292, %v405
        %v407 = vpop.f32.mrf.mxu0
        %408 = vmatprep.mubr.f32.mxu0 0.0
        %409 = vmatmul.mubr.f32.gmra.mxu0 %v265
        %v410 = vpop.f32.mrf.mxu0
        %v411 = vadd.f32 %v292, %v410
        %v412 = vpop.f32.mrf.mxu0
        %413 = vmatprep.mubr.f32.mxu0 0.0
        %414 = vmatmul.mubr.f32.gmra.mxu0 %v266
        %v415 = vpop.f32.mrf.mxu0
        %v416 = vadd.f32 %v292, %v415
        %v417 = vpop.f32.mrf.mxu0
        %418 = vmatprep.mubr.f32.mxu0 0.0
        %419 = vmatmul.mubr.f32.gmra.mxu0 %v267
        %v420 = vpop.f32.mrf.mxu0
        %v421 = vadd.f32 %v292, %v420
        %v422 = vpop.f32.mrf.mxu0
        %423 = vmatprep.mubr.f32.mxu0 0.0
        %424 = vmatmul.mubr.f32.gmra.mxu0 %v268
        %v425 = vpop.f32.mrf.mxu0
        %v426 = vadd.f32 %v292, %v425
        %v427 = vpop.f32.mrf.mxu0
        %428 = vmatprep.mubr.f32.mxu0 0.0
        %429 = vmatmul.mubr.f32.gmra.mxu0 %v269
        %v430 = vpop.f32.mrf.mxu0
        %v431 = vadd.f32 %v292, %v430
        %v432 = vpop.f32.mrf.mxu0
        %433 = vmatprep.mubr.f32.mxu0 0.0
        %434 = vmatmul.mubr.f32.gmra.mxu0 %v270
        %v435 = vpop.f32.mrf.mxu0
        %v436 = vadd.f32 %v292, %v435
        %v437 = vpop.f32.mrf.mxu0
        %438 = vdwg.mxu0
        %vm439 = vcmask 130048
        %v440 = vsel %vm439, %v361, -inf
        %441 = vmax.xlane.f32.xlu0 %v440
        %v442 = vpop.xlane.xlu0 %441
        %v443 = vsel %vm439, %v366, -inf
        %444 = vmax.xlane.f32.xlu0 %v443
        %v445 = vpop.xlane.xlu0 %444
        %v446 = vsel %vm439, %v371, -inf
        %447 = vmax.xlane.f32.xlu0 %v446
        %v448 = vpop.xlane.xlu0 %447
        %v449 = vsel %vm439, %v376, -inf
        %450 = vmax.xlane.f32.xlu0 %v449
        %v451 = vpop.xlane.xlu0 %450
        %v452 = vsel %vm439, %v381, -inf
        %453 = vmax.xlane.f32.xlu0 %v452
        %v454 = vpop.xlane.xlu0 %453
        %v455 = vsel %vm439, %v386, -inf
        %456 = vmax.xlane.f32.xlu0 %v455
        %v457 = vpop.xlane.xlu0 %456
        %v458 = vsel %vm439, %v391, -inf
        %459 = vmax.xlane.f32.xlu0 %v458
        %v460 = vpop.xlane.xlu0 %459
        %v461 = vsel %vm439, %v396, -inf
        %462 = vmax.xlane.f32.xlu0 %v461
        %v463 = vpop.xlane.xlu0 %462
        %v464 = vsel %vm439, %v401, -inf
        %465 = vmax.xlane.f32.xlu0 %v464
        %v466 = vpop.xlane.xlu0 %465
        %v467 = vsel %vm439, %v406, -inf
        %468 = vmax.xlane.f32.xlu0 %v467
        %v469 = vpop.xlane.xlu0 %468
        %v470 = vsel %vm439, %v411, -inf
        %471 = vmax.xlane.f32.xlu0 %v470
        %v472 = vpop.xlane.xlu0 %471
        %v473 = vsel %vm439, %v416, -inf
        %474 = vmax.xlane.f32.xlu0 %v473
        %v475 = vpop.xlane.xlu0 %474
        %v476 = vsel %vm439, %v421, -inf
        %477 = vmax.xlane.f32.xlu0 %v476
        %v478 = vpop.xlane.xlu0 %477
        %v479 = vsel %vm439, %v426, -inf
        %480 = vmax.xlane.f32.xlu0 %v479
        %v481 = vpop.xlane.xlu0 %480
        %v482 = vsel %vm439, %v431, -inf
        %483 = vmax.xlane.f32.xlu0 %v482
        %v484 = vpop.xlane.xlu0 %483
        %v485 = vsel %vm439, %v436, -inf
        %486 = vmax.xlane.f32.xlu0 %v485
        %v487 = vpop.xlane.xlu0 %486
        %v488 = vsub.f32 %v361, %v442
        %v489 = vsub.f32 %v366, %v445
        %v490 = vsub.f32 %v371, %v448
        %v491 = vsub.f32 %v376, %v451
        %v492 = vsub.f32 %v381, %v454
        %v493 = vsub.f32 %v386, %v457
        %v494 = vsub.f32 %v391, %v460
        %v495 = vsub.f32 %v396, %v463
        %v496 = vsub.f32 %v401, %v466
        %v497 = vsub.f32 %v406, %v469
        %v498 = vsub.f32 %v411, %v472
        %v499 = vsub.f32 %v416, %v475
        %v500 = vsub.f32 %v421, %v478
        %v501 = vsub.f32 %v426, %v481
        %v502 = vsub.f32 %v431, %v484
        %v503 = vsub.f32 %v436, %v487
        %v504 = vmul.f32 %v488, 1.442695
        %v505 = vpow.pop %v504
        %v506 = vmul.f32 %v489, 1.442695
        %v507 = vpow.pop %v506
        %v508 = vmul.f32 %v490, 1.442695
        %v509 = vpow.pop %v508
        %v510 = vmul.f32 %v491, 1.442695
        %v511 = vpow.pop %v510
        %v512 = vmul.f32 %v492, 1.442695
        %v513 = vpow.pop %v512
        %v514 = vmul.f32 %v493, 1.442695
        %v515 = vpow.pop %v514
        %v516 = vmul.f32 %v494, 1.442695
        %v517 = vpow.pop %v516
        %v518 = vmul.f32 %v495, 1.442695
        %v519 = vpow.pop %v518
        %v520 = vmul.f32 %v496, 1.442695
        %v521 = vpow.pop %v520
        %v522 = vmul.f32 %v497, 1.442695
        %v523 = vpow.pop %v522
        %v524 = vmul.f32 %v498, 1.442695
        %v525 = vpow.pop %v524
        %v526 = vmul.f32 %v499, 1.442695
        %v527 = vpow.pop %v526
        %v528 = vmul.f32 %v500, 1.442695
        %v529 = vpow.pop %v528
        %v530 = vmul.f32 %v501, 1.442695
        %v531 = vpow.pop %v530
        %v532 = vmul.f32 %v502, 1.442695
        %v533 = vpow.pop %v532
        %v534 = vmul.f32 %v503, 1.442695
        %v535 = vpow.pop %v534
        %v536 = vsel %vm439, %v505, 0.0
        %537 = vadd.xlane.f32.xlu0 %v536
        %v538 = vpop.xlane.xlu0 %537
        %v539 = vsel %vm439, %v507, 0.0
        %540 = vadd.xlane.f32.xlu0 %v539
        %v541 = vpop.xlane.xlu0 %540
        %v542 = vsel %vm439, %v509, 0.0
        %543 = vadd.xlane.f32.xlu0 %v542
        %v544 = vpop.xlane.xlu0 %543
        %v545 = vsel %vm439, %v511, 0.0
        %546 = vadd.xlane.f32.xlu0 %v545
        %v547 = vpop.xlane.xlu0 %546
        %v548 = vsel %vm439, %v513, 0.0
        %549 = vadd.xlane.f32.xlu0 %v548
        %v550 = vpop.xlane.xlu0 %549
        %v551 = vsel %vm439, %v515, 0.0
        %552 = vadd.xlane.f32.xlu0 %v551
        %v553 = vpop.xlane.xlu0 %552
        %v554 = vsel %vm439, %v517, 0.0
        %555 = vadd.xlane.f32.xlu0 %v554
        %v556 = vpop.xlane.xlu0 %555
        %v557 = vsel %vm439, %v519, 0.0
        %558 = vadd.xlane.f32.xlu0 %v557
        %v559 = vpop.xlane.xlu0 %558
        %v560 = vsel %vm439, %v521, 0.0
        %561 = vadd.xlane.f32.xlu0 %v560
        %v562 = vpop.xlane.xlu0 %561
        %v563 = vsel %vm439, %v523, 0.0
        %564 = vadd.xlane.f32.xlu0 %v563
        %v565 = vpop.xlane.xlu0 %564
        %v566 = vsel %vm439, %v525, 0.0
        %567 = vadd.xlane.f32.xlu0 %v566
        %v568 = vpop.xlane.xlu0 %567
        %v569 = vsel %vm439, %v527, 0.0
        %570 = vadd.xlane.f32.xlu0 %v569
        %v571 = vpop.xlane.xlu0 %570
        %v572 = vsel %vm439, %v529, 0.0
        %573 = vadd.xlane.f32.xlu0 %v572
        %v574 = vpop.xlane.xlu0 %573
        %v575 = vsel %vm439, %v531, 0.0
        %576 = vadd.xlane.f32.xlu0 %v575
        %v577 = vpop.xlane.xlu0 %576
        %v578 = vsel %vm439, %v533, 0.0
        %579 = vadd.xlane.f32.xlu0 %v578
        %v580 = vpop.xlane.xlu0 %579
        %v581 = vsel %vm439, %v535, 0.0
        %582 = vadd.xlane.f32.xlu0 %v581
        %v583 = vpop.xlane.xlu0 %582
        %v584 = vrcp.pop %v538
        %v585 = vrcp.pop %v541
        %v586 = vrcp.pop %v544
        %v587 = vrcp.pop %v547
        %v588 = vrcp.pop %v550
        %v589 = vrcp.pop %v553
        %v590 = vrcp.pop %v556
        %v591 = vrcp.pop %v559
        %v592 = vrcp.pop %v562
        %v593 = vrcp.pop %v565
        %v594 = vrcp.pop %v568
        %v595 = vrcp.pop %v571
        %v596 = vrcp.pop %v574
        %v597 = vrcp.pop %v577
        %v598 = vrcp.pop %v580
        %v599 = vrcp.pop %v583
        %v600 = vmul.f32 %v505, %v584
        %v601 = vmul.f32 %v507, %v585
        %v602 = vmul.f32 %v509, %v586
        %v603 = vmul.f32 %v511, %v587
        %v604 = vmul.f32 %v513, %v588
        %v605 = vmul.f32 %v515, %v589
        %v606 = vmul.f32 %v517, %v590
        %v607 = vmul.f32 %v519, %v591
        %v608 = vmul.f32 %v521, %v592
        %v609 = vmul.f32 %v523, %v593
        %v610 = vmul.f32 %v525, %v594
        %v611 = vmul.f32 %v527, %v595
        %v612 = vmul.f32 %v529, %v596
        %v613 = vmul.f32 %v531, %v597
        %v614 = vmul.f32 %v533, %v598
        %v615 = vmul.f32 %v535, %v599
        %616 = vxpose.xlu0.b32.start [1/16] %v600, 128
        %617 = vxpose.xlu0.b32.cont [2/16] %v601, 128
        %618 = vxpose.xlu0.b32.cont [3/16] 0.0, 128
        %619 = vxpose.xlu0.b32.cont [4/16] 0.0, 128
        %620 = vxpose.xlu0.b32.cont [5/16] 0.0, 128
        %621 = vxpose.xlu0.b32.cont [6/16] 0.0, 128
        %622 = vxpose.xlu0.b32.cont [7/16] 0.0, 128
        %623 = vxpose.xlu0.b32.cont [8/16] 0.0, 128
        %624 = vxpose.xlu0.b32.cont [9/16] 0.0, 128
        %625 = vxpose.xlu0.b32.cont [10/16] 0.0, 128
        %626 = vxpose.xlu0.b32.cont [11/16] 0.0, 128
        %627 = vxpose.xlu0.b32.cont [12/16] 0.0, 128
        %628 = vxpose.xlu0.b32.cont [13/16] 0.0, 128
        %629 = vxpose.xlu0.b32.cont [14/16] 0.0, 128
        %630 = vxpose.xlu0.b32.cont [15/16] 0.0, 128
        %631 = vxpose.xlu0.b32.end [16/16] 0.0, 128
        %v632 = vpop.trf.xlu0
        %v633 = vpop.trf.xlu0
        %v634 = vpop.trf.xlu0
        %v635 = vpop.trf.xlu0
        %v636 = vpop.trf.xlu0
        %v637 = vpop.trf.xlu0
        %v638 = vpop.trf.xlu0
        %v639 = vpop.trf.xlu0
        %v640 = vpop.trf.xlu0
        %v641 = vpop.trf.xlu0
        %v642 = vpop.trf.xlu0
        %v643 = vpop.trf.xlu0
        %v644 = vpop.trf.xlu0
        %v645 = vpop.trf.xlu0
        %v646 = vpop.trf.xlu0
        %v647 = vpop.trf.xlu0
        %648 = vxpose.xlu0.b32.start [1/16] %v602, 128
        %649 = vxpose.xlu0.b32.cont [2/16] %v603, 128
        %650 = vxpose.xlu0.b32.cont [3/16] 0.0, 128
        %651 = vxpose.xlu0.b32.cont [4/16] 0.0, 128
        %652 = vxpose.xlu0.b32.cont [5/16] 0.0, 128
        %653 = vxpose.xlu0.b32.cont [6/16] 0.0, 128
        %654 = vxpose.xlu0.b32.cont [7/16] 0.0, 128
        %655 = vxpose.xlu0.b32.cont [8/16] 0.0, 128
        %656 = vxpose.xlu0.b32.cont [9/16] 0.0, 128
        %657 = vxpose.xlu0.b32.cont [10/16] 0.0, 128
        %658 = vxpose.xlu0.b32.cont [11/16] 0.0, 128
        %659 = vxpose.xlu0.b32.cont [12/16] 0.0, 128
        %660 = vxpose.xlu0.b32.cont [13/16] 0.0, 128
        %661 = vxpose.xlu0.b32.cont [14/16] 0.0, 128
        %662 = vxpose.xlu0.b32.cont [15/16] 0.0, 128
        %663 = vxpose.xlu0.b32.end [16/16] 0.0, 128
        %v664 = vpop.trf.xlu0
        %v665 = vpop.trf.xlu0
        %v666 = vpop.trf.xlu0
        %v667 = vpop.trf.xlu0
        %v668 = vpop.trf.xlu0
        %v669 = vpop.trf.xlu0
        %v670 = vpop.trf.xlu0
        %v671 = vpop.trf.xlu0
        %v672 = vpop.trf.xlu0
        %v673 = vpop.trf.xlu0
        %v674 = vpop.trf.xlu0
        %v675 = vpop.trf.xlu0
        %v676 = vpop.trf.xlu0
        %v677 = vpop.trf.xlu0
        %v678 = vpop.trf.xlu0
        %v679 = vpop.trf.xlu0
        %680 = vxpose.xlu0.b32.start [1/16] %v604, 128
        %681 = vxpose.xlu0.b32.cont [2/16] %v605, 128
        %682 = vxpose.xlu0.b32.cont [3/16] 0.0, 128
        %683 = vxpose.xlu0.b32.cont [4/16] 0.0, 128
        %684 = vxpose.xlu0.b32.cont [5/16] 0.0, 128
        %685 = vxpose.xlu0.b32.cont [6/16] 0.0, 128
        %686 = vxpose.xlu0.b32.cont [7/16] 0.0, 128
        %687 = vxpose.xlu0.b32.cont [8/16] 0.0, 128
        %688 = vxpose.xlu0.b32.cont [9/16] 0.0, 128
        %689 = vxpose.xlu0.b32.cont [10/16] 0.0, 128
        %690 = vxpose.xlu0.b32.cont [11/16] 0.0, 128
        %691 = vxpose.xlu0.b32.cont [12/16] 0.0, 128
        %692 = vxpose.xlu0.b32.cont [13/16] 0.0, 128
        %693 = vxpose.xlu0.b32.cont [14/16] 0.0, 128
        %694 = vxpose.xlu0.b32.cont [15/16] 0.0, 128
        %695 = vxpose.xlu0.b32.end [16/16] 0.0, 128
        %v696 = vpop.trf.xlu0
        %v697 = vpop.trf.xlu0
        %v698 = vpop.trf.xlu0
        %v699 = vpop.trf.xlu0
        %v700 = vpop.trf.xlu0
        %v701 = vpop.trf.xlu0
        %v702 = vpop.trf.xlu0
        %v703 = vpop.trf.xlu0
        %v704 = vpop.trf.xlu0
        %v705 = vpop.trf.xlu0
        %v706 = vpop.trf.xlu0
        %v707 = vpop.trf.xlu0
        %v708 = vpop.trf.xlu0
        %v709 = vpop.trf.xlu0
        %v710 = vpop.trf.xlu0
        %v711 = vpop.trf.xlu0
        %712 = vxpose.xlu0.b32.start [1/16] %v606, 128
        %713 = vxpose.xlu0.b32.cont [2/16] %v607, 128
        %714 = vxpose.xlu0.b32.cont [3/16] 0.0, 128
        %715 = vxpose.xlu0.b32.cont [4/16] 0.0, 128
        %716 = vxpose.xlu0.b32.cont [5/16] 0.0, 128
        %717 = vxpose.xlu0.b32.cont [6/16] 0.0, 128
        %718 = vxpose.xlu0.b32.cont [7/16] 0.0, 128
        %719 = vxpose.xlu0.b32.cont [8/16] 0.0, 128
        %720 = vxpose.xlu0.b32.cont [9/16] 0.0, 128
        %721 = vxpose.xlu0.b32.cont [10/16] 0.0, 128
        %722 = vxpose.xlu0.b32.cont [11/16] 0.0, 128
        %723 = vxpose.xlu0.b32.cont [12/16] 0.0, 128
        %724 = vxpose.xlu0.b32.cont [13/16] 0.0, 128
        %725 = vxpose.xlu0.b32.cont [14/16] 0.0, 128
        %726 = vxpose.xlu0.b32.cont [15/16] 0.0, 128
        %727 = vxpose.xlu0.b32.end [16/16] 0.0, 128
        %v728 = vpop.trf.xlu0
        %v729 = vpop.trf.xlu0
        %v730 = vpop.trf.xlu0
        %v731 = vpop.trf.xlu0
        %v732 = vpop.trf.xlu0
        %v733 = vpop.trf.xlu0
        %v734 = vpop.trf.xlu0
        %v735 = vpop.trf.xlu0
        %v736 = vpop.trf.xlu0
        %v737 = vpop.trf.xlu0
        %v738 = vpop.trf.xlu0
        %v739 = vpop.trf.xlu0
        %v740 = vpop.trf.xlu0
        %v741 = vpop.trf.xlu0
        %v742 = vpop.trf.xlu0
        %v743 = vpop.trf.xlu0
        %744 = vxpose.xlu0.b32.start [1/16] %v608, 128
        %745 = vxpose.xlu0.b32.cont [2/16] %v609, 128
        %746 = vxpose.xlu0.b32.cont [3/16] 0.0, 128
        %747 = vxpose.xlu0.b32.cont [4/16] 0.0, 128
        %748 = vxpose.xlu0.b32.cont [5/16] 0.0, 128
        %749 = vxpose.xlu0.b32.cont [6/16] 0.0, 128
        %750 = vxpose.xlu0.b32.cont [7/16] 0.0, 128
        %751 = vxpose.xlu0.b32.cont [8/16] 0.0, 128
        %752 = vxpose.xlu0.b32.cont [9/16] 0.0, 128
        %753 = vxpose.xlu0.b32.cont [10/16] 0.0, 128
        %754 = vxpose.xlu0.b32.cont [11/16] 0.0, 128
        %755 = vxpose.xlu0.b32.cont [12/16] 0.0, 128
        %756 = vxpose.xlu0.b32.cont [13/16] 0.0, 128
        %757 = vxpose.xlu0.b32.cont [14/16] 0.0, 128
        %758 = vxpose.xlu0.b32.cont [15/16] 0.0, 128
        %759 = vxpose.xlu0.b32.end [16/16] 0.0, 128
        %v760 = vpop.trf.xlu0
        %v761 = vpop.trf.xlu0
        %v762 = vpop.trf.xlu0
        %v763 = vpop.trf.xlu0
        %v764 = vpop.trf.xlu0
        %v765 = vpop.trf.xlu0
        %v766 = vpop.trf.xlu0
        %v767 = vpop.trf.xlu0
        %v768 = vpop.trf.xlu0
        %v769 = vpop.trf.xlu0
        %v770 = vpop.trf.xlu0
        %v771 = vpop.trf.xlu0
        %v772 = vpop.trf.xlu0
        %v773 = vpop.trf.xlu0
        %v774 = vpop.trf.xlu0
        %v775 = vpop.trf.xlu0
        %776 = vxpose.xlu0.b32.start [1/16] %v610, 128
        %777 = vxpose.xlu0.b32.cont [2/16] %v611, 128
        %778 = vxpose.xlu0.b32.cont [3/16] 0.0, 128
        %779 = vxpose.xlu0.b32.cont [4/16] 0.0, 128
        %780 = vxpose.xlu0.b32.cont [5/16] 0.0, 128
        %781 = vxpose.xlu0.b32.cont [6/16] 0.0, 128
        %782 = vxpose.xlu0.b32.cont [7/16] 0.0, 128
        %783 = vxpose.xlu0.b32.cont [8/16] 0.0, 128
        %784 = vxpose.xlu0.b32.cont [9/16] 0.0, 128
        %785 = vxpose.xlu0.b32.cont [10/16] 0.0, 128
        %786 = vxpose.xlu0.b32.cont [11/16] 0.0, 128
        %787 = vxpose.xlu0.b32.cont [12/16] 0.0, 128
        %788 = vxpose.xlu0.b32.cont [13/16] 0.0, 128
        %789 = vxpose.xlu0.b32.cont [14/16] 0.0, 128
        %790 = vxpose.xlu0.b32.cont [15/16] 0.0, 128
        %791 = vxpose.xlu0.b32.end [16/16] 0.0, 128
        %v792 = vpop.trf.xlu0
        %v793 = vpop.trf.xlu0
        %v794 = vpop.trf.xlu0
        %v795 = vpop.trf.xlu0
        %v796 = vpop.trf.xlu0
        %v797 = vpop.trf.xlu0
        %v798 = vpop.trf.xlu0
        %v799 = vpop.trf.xlu0
        %v800 = vpop.trf.xlu0
        %v801 = vpop.trf.xlu0
        %v802 = vpop.trf.xlu0
        %v803 = vpop.trf.xlu0
        %v804 = vpop.trf.xlu0
        %v805 = vpop.trf.xlu0
        %v806 = vpop.trf.xlu0
        %v807 = vpop.trf.xlu0
        %808 = vxpose.xlu0.b32.start [1/16] %v612, 128
        %809 = vxpose.xlu0.b32.cont [2/16] %v613, 128
        %810 = vxpose.xlu0.b32.cont [3/16] 0.0, 128
        %811 = vxpose.xlu0.b32.cont [4/16] 0.0, 128
        %812 = vxpose.xlu0.b32.cont [5/16] 0.0, 128
        %813 = vxpose.xlu0.b32.cont [6/16] 0.0, 128
        %814 = vxpose.xlu0.b32.cont [7/16] 0.0, 128
        %815 = vxpose.xlu0.b32.cont [8/16] 0.0, 128
        %816 = vxpose.xlu0.b32.cont [9/16] 0.0, 128
        %817 = vxpose.xlu0.b32.cont [10/16] 0.0, 128
        %818 = vxpose.xlu0.b32.cont [11/16] 0.0, 128
        %819 = vxpose.xlu0.b32.cont [12/16] 0.0, 128
        %820 = vxpose.xlu0.b32.cont [13/16] 0.0, 128
        %821 = vxpose.xlu0.b32.cont [14/16] 0.0, 128
        %822 = vxpose.xlu0.b32.cont [15/16] 0.0, 128
        %823 = vxpose.xlu0.b32.end [16/16] 0.0, 128
        %v824 = vpop.trf.xlu0
        %v825 = vpop.trf.xlu0
        %v826 = vpop.trf.xlu0
        %v827 = vpop.trf.xlu0
        %v828 = vpop.trf.xlu0
        %v829 = vpop.trf.xlu0
        %v830 = vpop.trf.xlu0
        %v831 = vpop.trf.xlu0
        %v832 = vpop.trf.xlu0
        %v833 = vpop.trf.xlu0
        %v834 = vpop.trf.xlu0
        %v835 = vpop.trf.xlu0
        %v836 = vpop.trf.xlu0
        %v837 = vpop.trf.xlu0
        %v838 = vpop.trf.xlu0
        %v839 = vpop.trf.xlu0
        %840 = vxpose.xlu0.b32.start [1/16] %v614, 128
        %841 = vxpose.xlu0.b32.cont [2/16] %v615, 128
        %842 = vxpose.xlu0.b32.cont [3/16] 0.0, 128
        %843 = vxpose.xlu0.b32.cont [4/16] 0.0, 128
        %844 = vxpose.xlu0.b32.cont [5/16] 0.0, 128
        %845 = vxpose.xlu0.b32.cont [6/16] 0.0, 128
        %846 = vxpose.xlu0.b32.cont [7/16] 0.0, 128
        %847 = vxpose.xlu0.b32.cont [8/16] 0.0, 128
        %848 = vxpose.xlu0.b32.cont [9/16] 0.0, 128
        %849 = vxpose.xlu0.b32.cont [10/16] 0.0, 128
        %850 = vxpose.xlu0.b32.cont [11/16] 0.0, 128
        %851 = vxpose.xlu0.b32.cont [12/16] 0.0, 128
        %852 = vxpose.xlu0.b32.cont [13/16] 0.0, 128
        %853 = vxpose.xlu0.b32.cont [14/16] 0.0, 128
        %854 = vxpose.xlu0.b32.cont [15/16] 0.0, 128
        %855 = vxpose.xlu0.b32.end [16/16] 0.0, 128
        %v856 = vpop.trf.xlu0
        %v857 = vpop.trf.xlu0
        %v858 = vpop.trf.xlu0
        %v859 = vpop.trf.xlu0
        %v860 = vpop.trf.xlu0
        %v861 = vpop.trf.xlu0
        %v862 = vpop.trf.xlu0
        %v863 = vpop.trf.xlu0
        %v864 = vpop.trf.xlu0
        %v865 = vpop.trf.xlu0
        %v866 = vpop.trf.xlu0
        %v867 = vpop.trf.xlu0
        %v868 = vpop.trf.xlu0
        %v869 = vpop.trf.xlu0
        %v870 = vpop.trf.xlu0
        %v871 = vpop.trf.xlu0
        %v873 = vsel %vm439, %v632, 0
        %v876 = vsel %vm439, %v633, 0
        %878 = vmatprep.subr.mxu0 0.0
        %879 = vmatpush1.msra.mxu0 0.0
        %880 = vmatprep.subr.mxu0 0.0
        %881 = vmatpush1.msra.mxu0 0.0
        %882 = vmatprep.subr.mxu0 0.0
        %883 = vmatpush1.msra.mxu0 0.0
        %884 = vmatprep.subr.mxu0 0.0
        %885 = vmatpush1.msra.mxu0 0.0
        %886 = vmatprep.subr.mxu0 0.0
        %887 = vmatpush1.msra.mxu0 0.0
        %888 = vmatprep.subr.mxu0 0.0
        %889 = vmatpush1.msra.mxu0 0.0
        %890 = vmatprep.subr.mxu0 0.0
        %891 = vmatpush1.msra.mxu0 0.0
        %892 = vmatprep.subr.mxu0 0.0
        %893 = vmatpush1.msra.mxu0 0.0
        %894 = vmatprep.subr.mxu0 0.0
        %895 = vmatpush1.msra.mxu0 0.0
        %896 = vmatprep.subr.mxu0 0.0
        %897 = vmatpush1.msra.mxu0 0.0
        %898 = vmatprep.subr.mxu0 0.0
        %899 = vmatpush1.msra.mxu0 0.0
        %900 = vmatprep.subr.mxu0 0.0
        %901 = vmatpush1.msra.mxu0 0.0
        %902 = vmatprep.subr.mxu0 0.0
        %903 = vmatpush1.msra.mxu0 0.0
        %904 = vmatprep.subr.mxu0 0.0
        %905 = vmatpush1.msra.mxu0 0.0
        %906 = vmatprep.subr.mxu0 0.0
        %907 = vmatpush1.msra.mxu0 %v256
        %908 = vmatprep.subr.mxu0 0.0
        %909 = vmatpush1.msra.mxu0 %v255
        %910 = vmatprep.subr.mxu0 0.0
        %911 = vmatpush2.msra.mxu0 0.0
        %912 = vmatprep.subr.mxu0 0.0
        %913 = vmatpush2.msra.mxu0 0.0
        %914 = vmatprep.subr.mxu0 0.0
        %915 = vmatpush2.msra.mxu0 0.0
        %916 = vmatprep.subr.mxu0 0.0
        %917 = vmatpush2.msra.mxu0 0.0
        %918 = vmatprep.subr.mxu0 0.0
        %919 = vmatpush2.msra.mxu0 0.0
        %920 = vmatprep.subr.mxu0 0.0
        %921 = vmatpush2.msra.mxu0 0.0
        %922 = vmatprep.subr.mxu0 0.0
        %923 = vmatpush2.msra.mxu0 0.0
        %924 = vmatprep.subr.mxu0 0.0
        %925 = vmatpush2.msra.mxu0 0.0
        %926 = vmatprep.subr.mxu0 0.0
        %927 = vmatpush2.msra.mxu0 0.0
        %928 = vmatprep.subr.mxu0 0.0
        %929 = vmatpush2.msra.mxu0 0.0
        %930 = vmatprep.subr.mxu0 0.0
        %931 = vmatpush2.msra.mxu0 0.0
        %932 = vmatprep.subr.mxu0 0.0
        %933 = vmatpush2.msra.mxu0 0.0
        %934 = vmatprep.subr.mxu0 0.0
        %935 = vmatpush2.msra.mxu0 0.0
        %936 = vmatprep.subr.mxu0 0.0
        %937 = vmatpush2.msra.mxu0 0.0
        %938 = vmatprep.subr.mxu0 0.0
        %939 = vmatpush2.msra.mxu0 0.0
        %940 = vmatprep.subr.mxu0 0.0
        %941 = vmatpush2.msra.mxu0 0.0
        %942 = vmatprep.mubr.f32.mxu0 0.0
        %943 = vmatmul.mubr.f32.gmra.mxu0 %v873
        %v944 = vpop.f32.mrf.mxu0
        %v945 = vadd.f32 0.0, %v944
        %v946 = vpop.f32.mrf.mxu0
        %947 = vmatprep.mubr.f32.mxu0 0.0
        %948 = vmatmul.mubr.f32.gmra.mxu0 %v876
        %v949 = vpop.f32.mrf.mxu0
        %v950 = vadd.f32 0.0, %v949
        %v951 = vpop.f32.mrf.mxu0
        %952 = vdwg.mxu0
        %v954 = vsel %vm439, %v664, 0
        %v957 = vsel %vm439, %v665, 0
        %959 = vmatprep.subr.mxu0 0.0
        %960 = vmatpush1.msra.mxu0 0.0
        %961 = vmatprep.subr.mxu0 0.0
        %962 = vmatpush1.msra.mxu0 0.0
        %963 = vmatprep.subr.mxu0 0.0
        %964 = vmatpush1.msra.mxu0 0.0
        %965 = vmatprep.subr.mxu0 0.0
        %966 = vmatpush1.msra.mxu0 0.0
        %967 = vmatprep.subr.mxu0 0.0
        %968 = vmatpush1.msra.mxu0 0.0
        %969 = vmatprep.subr.mxu0 0.0
        %970 = vmatpush1.msra.mxu0 0.0
        %971 = vmatprep.subr.mxu0 0.0
        %972 = vmatpush1.msra.mxu0 0.0
        %973 = vmatprep.subr.mxu0 0.0
        %974 = vmatpush1.msra.mxu0 0.0
        %975 = vmatprep.subr.mxu0 0.0
        %976 = vmatpush1.msra.mxu0 0.0
        %977 = vmatprep.subr.mxu0 0.0
        %978 = vmatpush1.msra.mxu0 0.0
        %979 = vmatprep.subr.mxu0 0.0
        %980 = vmatpush1.msra.mxu0 0.0
        %981 = vmatprep.subr.mxu0 0.0
        %982 = vmatpush1.msra.mxu0 0.0
        %983 = vmatprep.subr.mxu0 0.0
        %984 = vmatpush1.msra.mxu0 0.0
        %985 = vmatprep.subr.mxu0 0.0
        %986 = vmatpush1.msra.mxu0 0.0
        %987 = vmatprep.subr.mxu0 0.0
        %988 = vmatpush1.msra.mxu0 %v258
        %989 = vmatprep.subr.mxu0 0.0
        %990 = vmatpush1.msra.mxu0 %v257
        %991 = vmatprep.subr.mxu0 0.0
        %992 = vmatpush2.msra.mxu0 0.0
        %993 = vmatprep.subr.mxu0 0.0
        %994 = vmatpush2.msra.mxu0 0.0
        %995 = vmatprep.subr.mxu0 0.0
        %996 = vmatpush2.msra.mxu0 0.0
        %997 = vmatprep.subr.mxu0 0.0
        %998 = vmatpush2.msra.mxu0 0.0
        %999 = vmatprep.subr.mxu0 0.0
        %1000 = vmatpush2.msra.mxu0 0.0
        %1001 = vmatprep.subr.mxu0 0.0
        %1002 = vmatpush2.msra.mxu0 0.0
        %1003 = vmatprep.subr.mxu0 0.0
        %1004 = vmatpush2.msra.mxu0 0.0
        %1005 = vmatprep.subr.mxu0 0.0
        %1006 = vmatpush2.msra.mxu0 0.0
        %1007 = vmatprep.subr.mxu0 0.0
        %1008 = vmatpush2.msra.mxu0 0.0
        %1009 = vmatprep.subr.mxu0 0.0
        %1010 = vmatpush2.msra.mxu0 0.0
        %1011 = vmatprep.subr.mxu0 0.0
        %1012 = vmatpush2.msra.mxu0 0.0
        %1013 = vmatprep.subr.mxu0 0.0
        %1014 = vmatpush2.msra.mxu0 0.0
        %1015 = vmatprep.subr.mxu0 0.0
        %1016 = vmatpush2.msra.mxu0 0.0
        %1017 = vmatprep.subr.mxu0 0.0
        %1018 = vmatpush2.msra.mxu0 0.0
        %1019 = vmatprep.subr.mxu0 0.0
        %1020 = vmatpush2.msra.mxu0 0.0
        %1021 = vmatprep.subr.mxu0 0.0
        %1022 = vmatpush2.msra.mxu0 0.0
        %1023 = vmatprep.mubr.f32.mxu0 0.0
        %1024 = vmatmul.mubr.f32.gmra.mxu0 %v954
        %v1025 = vpop.f32.mrf.mxu0
        %v1026 = vadd.f32 0.0, %v1025
        %v1027 = vpop.f32.mrf.mxu0
        %1028 = vmatprep.mubr.f32.mxu0 0.0
        %1029 = vmatmul.mubr.f32.gmra.mxu0 %v957
        %v1030 = vpop.f32.mrf.mxu0
        %v1031 = vadd.f32 0.0, %v1030
        %v1032 = vpop.f32.mrf.mxu0
        %1033 = vdwg.mxu0
        %v1035 = vsel %vm439, %v696, 0
        %v1038 = vsel %vm439, %v697, 0
        %1040 = vmatprep.subr.mxu0 0.0
        %1041 = vmatpush1.msra.mxu0 0.0
        %1042 = vmatprep.subr.mxu0 0.0
        %1043 = vmatpush1.msra.mxu0 0.0
        %1044 = vmatprep.subr.mxu0 0.0
        %1045 = vmatpush1.msra.mxu0 0.0
        %1046 = vmatprep.subr.mxu0 0.0
        %1047 = vmatpush1.msra.mxu0 0.0
        %1048 = vmatprep.subr.mxu0 0.0
        %1049 = vmatpush1.msra.mxu0 0.0
        %1050 = vmatprep.subr.mxu0 0.0
        %1051 = vmatpush1.msra.mxu0 0.0
        %1052 = vmatprep.subr.mxu0 0.0
        %1053 = vmatpush1.msra.mxu0 0.0
        %1054 = vmatprep.subr.mxu0 0.0
        %1055 = vmatpush1.msra.mxu0 0.0
        %1056 = vmatprep.subr.mxu0 0.0
        %1057 = vmatpush1.msra.mxu0 0.0
        %1058 = vmatprep.subr.mxu0 0.0
        %1059 = vmatpush1.msra.mxu0 0.0
        %1060 = vmatprep.subr.mxu0 0.0
        %1061 = vmatpush1.msra.mxu0 0.0
        %1062 = vmatprep.subr.mxu0 0.0
        %1063 = vmatpush1.msra.mxu0 0.0
        %1064 = vmatprep.subr.mxu0 0.0
        %1065 = vmatpush1.msra.mxu0 0.0
        %1066 = vmatprep.subr.mxu0 0.0
        %1067 = vmatpush1.msra.mxu0 0.0
        %1068 = vmatprep.subr.mxu0 0.0
        %1069 = vmatpush1.msra.mxu0 %v260
        %1070 = vmatprep.subr.mxu0 0.0
        %1071 = vmatpush1.msra.mxu0 %v259
        %1072 = vmatprep.subr.mxu0 0.0
        %1073 = vmatpush2.msra.mxu0 0.0
        %1074 = vmatprep.subr.mxu0 0.0
        %1075 = vmatpush2.msra.mxu0 0.0
        %1076 = vmatprep.subr.mxu0 0.0
        %1077 = vmatpush2.msra.mxu0 0.0
        %1078 = vmatprep.subr.mxu0 0.0
        %1079 = vmatpush2.msra.mxu0 0.0
        %1080 = vmatprep.subr.mxu0 0.0
        %1081 = vmatpush2.msra.mxu0 0.0
        %1082 = vmatprep.subr.mxu0 0.0
        %1083 = vmatpush2.msra.mxu0 0.0
        %1084 = vmatprep.subr.mxu0 0.0
        %1085 = vmatpush2.msra.mxu0 0.0
        %1086 = vmatprep.subr.mxu0 0.0
        %1087 = vmatpush2.msra.mxu0 0.0
        %1088 = vmatprep.subr.mxu0 0.0
        %1089 = vmatpush2.msra.mxu0 0.0
        %1090 = vmatprep.subr.mxu0 0.0
        %1091 = vmatpush2.msra.mxu0 0.0
        %1092 = vmatprep.subr.mxu0 0.0
        %1093 = vmatpush2.msra.mxu0 0.0
        %1094 = vmatprep.subr.mxu0 0.0
        %1095 = vmatpush2.msra.mxu0 0.0
        %1096 = vmatprep.subr.mxu0 0.0
        %1097 = vmatpush2.msra.mxu0 0.0
        %1098 = vmatprep.subr.mxu0 0.0
        %1099 = vmatpush2.msra.mxu0 0.0
        %1100 = vmatprep.subr.mxu0 0.0
        %1101 = vmatpush2.msra.mxu0 0.0
        %1102 = vmatprep.subr.mxu0 0.0
        %1103 = vmatpush2.msra.mxu0 0.0
        %1104 = vmatprep.mubr.f32.mxu0 0.0
        %1105 = vmatmul.mubr.f32.gmra.mxu0 %v1035
        %v1106 = vpop.f32.mrf.mxu0
        %v1107 = vadd.f32 0.0, %v1106
        %v1108 = vpop.f32.mrf.mxu0
        %1109 = vmatprep.mubr.f32.mxu0 0.0
        %1110 = vmatmul.mubr.f32.gmra.mxu0 %v1038
        %v1111 = vpop.f32.mrf.mxu0
        %v1112 = vadd.f32 0.0, %v1111
        %v1113 = vpop.f32.mrf.mxu0
        %1114 = vdwg.mxu0
        %v1116 = vsel %vm439, %v728, 0
        %v1119 = vsel %vm439, %v729, 0
        %1121 = vmatprep.subr.mxu0 0.0
        %1122 = vmatpush1.msra.mxu0 0.0
        %1123 = vmatprep.subr.mxu0 0.0
        %1124 = vmatpush1.msra.mxu0 0.0
        %1125 = vmatprep.subr.mxu0 0.0
        %1126 = vmatpush1.msra.mxu0 0.0
        %1127 = vmatprep.subr.mxu0 0.0
        %1128 = vmatpush1.msra.mxu0 0.0
        %1129 = vmatprep.subr.mxu0 0.0
        %1130 = vmatpush1.msra.mxu0 0.0
        %1131 = vmatprep.subr.mxu0 0.0
        %1132 = vmatpush1.msra.mxu0 0.0
        %1133 = vmatprep.subr.mxu0 0.0
        %1134 = vmatpush1.msra.mxu0 0.0
        %1135 = vmatprep.subr.mxu0 0.0
        %1136 = vmatpush1.msra.mxu0 0.0
        %1137 = vmatprep.subr.mxu0 0.0
        %1138 = vmatpush1.msra.mxu0 0.0
        %1139 = vmatprep.subr.mxu0 0.0
        %1140 = vmatpush1.msra.mxu0 0.0
        %1141 = vmatprep.subr.mxu0 0.0
        %1142 = vmatpush1.msra.mxu0 0.0
        %1143 = vmatprep.subr.mxu0 0.0
        %1144 = vmatpush1.msra.mxu0 0.0
        %1145 = vmatprep.subr.mxu0 0.0
        %1146 = vmatpush1.msra.mxu0 0.0
        %1147 = vmatprep.subr.mxu0 0.0
        %1148 = vmatpush1.msra.mxu0 0.0
        %1149 = vmatprep.subr.mxu0 0.0
        %1150 = vmatpush1.msra.mxu0 %v262
        %1151 = vmatprep.subr.mxu0 0.0
        %1152 = vmatpush1.msra.mxu0 %v261
        %1153 = vmatprep.subr.mxu0 0.0
        %1154 = vmatpush2.msra.mxu0 0.0
        %1155 = vmatprep.subr.mxu0 0.0
        %1156 = vmatpush2.msra.mxu0 0.0
        %1157 = vmatprep.subr.mxu0 0.0
        %1158 = vmatpush2.msra.mxu0 0.0
        %1159 = vmatprep.subr.mxu0 0.0
        %1160 = vmatpush2.msra.mxu0 0.0
        %1161 = vmatprep.subr.mxu0 0.0
        %1162 = vmatpush2.msra.mxu0 0.0
        %1163 = vmatprep.subr.mxu0 0.0
        %1164 = vmatpush2.msra.mxu0 0.0
        %1165 = vmatprep.subr.mxu0 0.0
        %1166 = vmatpush2.msra.mxu0 0.0
        %1167 = vmatprep.subr.mxu0 0.0
        %1168 = vmatpush2.msra.mxu0 0.0
        %1169 = vmatprep.subr.mxu0 0.0
        %1170 = vmatpush2.msra.mxu0 0.0
        %1171 = vmatprep.subr.mxu0 0.0
        %1172 = vmatpush2.msra.mxu0 0.0
        %1173 = vmatprep.subr.mxu0 0.0
        %1174 = vmatpush2.msra.mxu0 0.0
        %1175 = vmatprep.subr.mxu0 0.0
        %1176 = vmatpush2.msra.mxu0 0.0
        %1177 = vmatprep.subr.mxu0 0.0
        %1178 = vmatpush2.msra.mxu0 0.0
        %1179 = vmatprep.subr.mxu0 0.0
        %1180 = vmatpush2.msra.mxu0 0.0
        %1181 = vmatprep.subr.mxu0 0.0
        %1182 = vmatpush2.msra.mxu0 0.0
        %1183 = vmatprep.subr.mxu0 0.0
        %1184 = vmatpush2.msra.mxu0 0.0
        %1185 = vmatprep.mubr.f32.mxu0 0.0
        %1186 = vmatmul.mubr.f32.gmra.mxu0 %v1116
        %v1187 = vpop.f32.mrf.mxu0
        %v1188 = vadd.f32 0.0, %v1187
        %v1189 = vpop.f32.mrf.mxu0
        %1190 = vmatprep.mubr.f32.mxu0 0.0
        %1191 = vmatmul.mubr.f32.gmra.mxu0 %v1119
        %v1192 = vpop.f32.mrf.mxu0
        %v1193 = vadd.f32 0.0, %v1192
        %v1194 = vpop.f32.mrf.mxu0
        %1195 = vdwg.mxu0
        %v1197 = vsel %vm439, %v760, 0
        %v1200 = vsel %vm439, %v761, 0
        %1202 = vmatprep.subr.mxu0 0.0
        %1203 = vmatpush1.msra.mxu0 0.0
        %1204 = vmatprep.subr.mxu0 0.0
        %1205 = vmatpush1.msra.mxu0 0.0
        %1206 = vmatprep.subr.mxu0 0.0
        %1207 = vmatpush1.msra.mxu0 0.0
        %1208 = vmatprep.subr.mxu0 0.0
        %1209 = vmatpush1.msra.mxu0 0.0
        %1210 = vmatprep.subr.mxu0 0.0
        %1211 = vmatpush1.msra.mxu0 0.0
        %1212 = vmatprep.subr.mxu0 0.0
        %1213 = vmatpush1.msra.mxu0 0.0
        %1214 = vmatprep.subr.mxu0 0.0
        %1215 = vmatpush1.msra.mxu0 0.0
        %1216 = vmatprep.subr.mxu0 0.0
        %1217 = vmatpush1.msra.mxu0 0.0
        %1218 = vmatprep.subr.mxu0 0.0
        %1219 = vmatpush1.msra.mxu0 0.0
        %1220 = vmatprep.subr.mxu0 0.0
        %1221 = vmatpush1.msra.mxu0 0.0
        %1222 = vmatprep.subr.mxu0 0.0
        %1223 = vmatpush1.msra.mxu0 0.0
        %1224 = vmatprep.subr.mxu0 0.0
        %1225 = vmatpush1.msra.mxu0 0.0
        %1226 = vmatprep.subr.mxu0 0.0
        %1227 = vmatpush1.msra.mxu0 0.0
        %1228 = vmatprep.subr.mxu0 0.0
        %1229 = vmatpush1.msra.mxu0 0.0
        %1230 = vmatprep.subr.mxu0 0.0
        %1231 = vmatpush1.msra.mxu0 %v264
        %1232 = vmatprep.subr.mxu0 0.0
        %1233 = vmatpush1.msra.mxu0 %v263
        %1234 = vmatprep.subr.mxu0 0.0
        %1235 = vmatpush2.msra.mxu0 0.0
        %1236 = vmatprep.subr.mxu0 0.0
        %1237 = vmatpush2.msra.mxu0 0.0
        %1238 = vmatprep.subr.mxu0 0.0
        %1239 = vmatpush2.msra.mxu0 0.0
        %1240 = vmatprep.subr.mxu0 0.0
        %1241 = vmatpush2.msra.mxu0 0.0
        %1242 = vmatprep.subr.mxu0 0.0
        %1243 = vmatpush2.msra.mxu0 0.0
        %1244 = vmatprep.subr.mxu0 0.0
        %1245 = vmatpush2.msra.mxu0 0.0
        %1246 = vmatprep.subr.mxu0 0.0
        %1247 = vmatpush2.msra.mxu0 0.0
        %1248 = vmatprep.subr.mxu0 0.0
        %1249 = vmatpush2.msra.mxu0 0.0
        %1250 = vmatprep.subr.mxu0 0.0
        %1251 = vmatpush2.msra.mxu0 0.0
        %1252 = vmatprep.subr.mxu0 0.0
        %1253 = vmatpush2.msra.mxu0 0.0
        %1254 = vmatprep.subr.mxu0 0.0
        %1255 = vmatpush2.msra.mxu0 0.0
        %1256 = vmatprep.subr.mxu0 0.0
        %1257 = vmatpush2.msra.mxu0 0.0
        %1258 = vmatprep.subr.mxu0 0.0
        %1259 = vmatpush2.msra.mxu0 0.0
        %1260 = vmatprep.subr.mxu0 0.0
        %1261 = vmatpush2.msra.mxu0 0.0
        %1262 = vmatprep.subr.mxu0 0.0
        %1263 = vmatpush2.msra.mxu0 0.0
        %1264 = vmatprep.subr.mxu0 0.0
        %1265 = vmatpush2.msra.mxu0 0.0
        %1266 = vmatprep.mubr.f32.mxu0 0.0
        %1267 = vmatmul.mubr.f32.gmra.mxu0 %v1197
        %v1268 = vpop.f32.mrf.mxu0
        %v1269 = vadd.f32 0.0, %v1268
        %v1270 = vpop.f32.mrf.mxu0
        %1271 = vmatprep.mubr.f32.mxu0 0.0
        %1272 = vmatmul.mubr.f32.gmra.mxu0 %v1200
        %v1273 = vpop.f32.mrf.mxu0
        %v1274 = vadd.f32 0.0, %v1273
        %v1275 = vpop.f32.mrf.mxu0
        %1276 = vdwg.mxu0
        %v1278 = vsel %vm439, %v792, 0
        %v1281 = vsel %vm439, %v793, 0
        %1283 = vmatprep.subr.mxu0 0.0
        %1284 = vmatpush1.msra.mxu0 0.0
        %1285 = vmatprep.subr.mxu0 0.0
        %1286 = vmatpush1.msra.mxu0 0.0
        %1287 = vmatprep.subr.mxu0 0.0
        %1288 = vmatpush1.msra.mxu0 0.0
        %1289 = vmatprep.subr.mxu0 0.0
        %1290 = vmatpush1.msra.mxu0 0.0
        %1291 = vmatprep.subr.mxu0 0.0
        %1292 = vmatpush1.msra.mxu0 0.0
        %1293 = vmatprep.subr.mxu0 0.0
        %1294 = vmatpush1.msra.mxu0 0.0
        %1295 = vmatprep.subr.mxu0 0.0
        %1296 = vmatpush1.msra.mxu0 0.0
        %1297 = vmatprep.subr.mxu0 0.0
        %1298 = vmatpush1.msra.mxu0 0.0
        %1299 = vmatprep.subr.mxu0 0.0
        %1300 = vmatpush1.msra.mxu0 0.0
        %1301 = vmatprep.subr.mxu0 0.0
        %1302 = vmatpush1.msra.mxu0 0.0
        %1303 = vmatprep.subr.mxu0 0.0
        %1304 = vmatpush1.msra.mxu0 0.0
        %1305 = vmatprep.subr.mxu0 0.0
        %1306 = vmatpush1.msra.mxu0 0.0
        %1307 = vmatprep.subr.mxu0 0.0
        %1308 = vmatpush1.msra.mxu0 0.0
        %1309 = vmatprep.subr.mxu0 0.0
        %1310 = vmatpush1.msra.mxu0 0.0
        %1311 = vmatprep.subr.mxu0 0.0
        %1312 = vmatpush1.msra.mxu0 %v266
        %1313 = vmatprep.subr.mxu0 0.0
        %1314 = vmatpush1.msra.mxu0 %v265
        %1315 = vmatprep.subr.mxu0 0.0
        %1316 = vmatpush2.msra.mxu0 0.0
        %1317 = vmatprep.subr.mxu0 0.0
        %1318 = vmatpush2.msra.mxu0 0.0
        %1319 = vmatprep.subr.mxu0 0.0
        %1320 = vmatpush2.msra.mxu0 0.0
        %1321 = vmatprep.subr.mxu0 0.0
        %1322 = vmatpush2.msra.mxu0 0.0
        %1323 = vmatprep.subr.mxu0 0.0
        %1324 = vmatpush2.msra.mxu0 0.0
        %1325 = vmatprep.subr.mxu0 0.0
        %1326 = vmatpush2.msra.mxu0 0.0
        %1327 = vmatprep.subr.mxu0 0.0
        %1328 = vmatpush2.msra.mxu0 0.0
        %1329 = vmatprep.subr.mxu0 0.0
        %1330 = vmatpush2.msra.mxu0 0.0
        %1331 = vmatprep.subr.mxu0 0.0
        %1332 = vmatpush2.msra.mxu0 0.0
        %1333 = vmatprep.subr.mxu0 0.0
        %1334 = vmatpush2.msra.mxu0 0.0
        %1335 = vmatprep.subr.mxu0 0.0
        %1336 = vmatpush2.msra.mxu0 0.0
        %1337 = vmatprep.subr.mxu0 0.0
        %1338 = vmatpush2.msra.mxu0 0.0
        %1339 = vmatprep.subr.mxu0 0.0
        %1340 = vmatpush2.msra.mxu0 0.0
        %1341 = vmatprep.subr.mxu0 0.0
        %1342 = vmatpush2.msra.mxu0 0.0
        %1343 = vmatprep.subr.mxu0 0.0
        %1344 = vmatpush2.msra.mxu0 0.0
        %1345 = vmatprep.subr.mxu0 0.0
        %1346 = vmatpush2.msra.mxu0 0.0
        %1347 = vmatprep.mubr.f32.mxu0 0.0
        %1348 = vmatmul.mubr.f32.gmra.mxu0 %v1278
        %v1349 = vpop.f32.mrf.mxu0
        %v1350 = vadd.f32 0.0, %v1349
        %v1351 = vpop.f32.mrf.mxu0
        %1352 = vmatprep.mubr.f32.mxu0 0.0
        %1353 = vmatmul.mubr.f32.gmra.mxu0 %v1281
        %v1354 = vpop.f32.mrf.mxu0
        %v1355 = vadd.f32 0.0, %v1354
        %v1356 = vpop.f32.mrf.mxu0
        %1357 = vdwg.mxu0
        %v1359 = vsel %vm439, %v824, 0
        %v1362 = vsel %vm439, %v825, 0
        %1364 = vmatprep.subr.mxu0 0.0
        %1365 = vmatpush1.msra.mxu0 0.0
        %1366 = vmatprep.subr.mxu0 0.0
        %1367 = vmatpush1.msra.mxu0 0.0
        %1368 = vmatprep.subr.mxu0 0.0
        %1369 = vmatpush1.msra.mxu0 0.0
        %1370 = vmatprep.subr.mxu0 0.0
        %1371 = vmatpush1.msra.mxu0 0.0
        %1372 = vmatprep.subr.mxu0 0.0
        %1373 = vmatpush1.msra.mxu0 0.0
        %1374 = vmatprep.subr.mxu0 0.0
        %1375 = vmatpush1.msra.mxu0 0.0
        %1376 = vmatprep.subr.mxu0 0.0
        %1377 = vmatpush1.msra.mxu0 0.0
        %1378 = vmatprep.subr.mxu0 0.0
        %1379 = vmatpush1.msra.mxu0 0.0
        %1380 = vmatprep.subr.mxu0 0.0
        %1381 = vmatpush1.msra.mxu0 0.0
        %1382 = vmatprep.subr.mxu0 0.0
        %1383 = vmatpush1.msra.mxu0 0.0
        %1384 = vmatprep.subr.mxu0 0.0
        %1385 = vmatpush1.msra.mxu0 0.0
        %1386 = vmatprep.subr.mxu0 0.0
        %1387 = vmatpush1.msra.mxu0 0.0
        %1388 = vmatprep.subr.mxu0 0.0
        %1389 = vmatpush1.msra.mxu0 0.0
        %1390 = vmatprep.subr.mxu0 0.0
        %1391 = vmatpush1.msra.mxu0 0.0
        %1392 = vmatprep.subr.mxu0 0.0
        %1393 = vmatpush1.msra.mxu0 %v268
        %1394 = vmatprep.subr.mxu0 0.0
        %1395 = vmatpush1.msra.mxu0 %v267
        %1396 = vmatprep.subr.mxu0 0.0
        %1397 = vmatpush2.msra.mxu0 0.0
        %1398 = vmatprep.subr.mxu0 0.0
        %1399 = vmatpush2.msra.mxu0 0.0
        %1400 = vmatprep.subr.mxu0 0.0
        %1401 = vmatpush2.msra.mxu0 0.0
        %1402 = vmatprep.subr.mxu0 0.0
        %1403 = vmatpush2.msra.mxu0 0.0
        %1404 = vmatprep.subr.mxu0 0.0
        %1405 = vmatpush2.msra.mxu0 0.0
        %1406 = vmatprep.subr.mxu0 0.0
        %1407 = vmatpush2.msra.mxu0 0.0
        %1408 = vmatprep.subr.mxu0 0.0
        %1409 = vmatpush2.msra.mxu0 0.0
        %1410 = vmatprep.subr.mxu0 0.0
        %1411 = vmatpush2.msra.mxu0 0.0
        %1412 = vmatprep.subr.mxu0 0.0
        %1413 = vmatpush2.msra.mxu0 0.0
        %1414 = vmatprep.subr.mxu0 0.0
        %1415 = vmatpush2.msra.mxu0 0.0
        %1416 = vmatprep.subr.mxu0 0.0
        %1417 = vmatpush2.msra.mxu0 0.0
        %1418 = vmatprep.subr.mxu0 0.0
        %1419 = vmatpush2.msra.mxu0 0.0
        %1420 = vmatprep.subr.mxu0 0.0
        %1421 = vmatpush2.msra.mxu0 0.0
        %1422 = vmatprep.subr.mxu0 0.0
        %1423 = vmatpush2.msra.mxu0 0.0
        %1424 = vmatprep.subr.mxu0 0.0
        %1425 = vmatpush2.msra.mxu0 0.0
        %1426 = vmatprep.subr.mxu0 0.0
        %1427 = vmatpush2.msra.mxu0 0.0
        %1428 = vmatprep.mubr.f32.mxu0 0.0
        %1429 = vmatmul.mubr.f32.gmra.mxu0 %v1359
        %v1430 = vpop.f32.mrf.mxu0
        %v1431 = vadd.f32 0.0, %v1430
        %v1432 = vpop.f32.mrf.mxu0
        %1433 = vmatprep.mubr.f32.mxu0 0.0
        %1434 = vmatmul.mubr.f32.gmra.mxu0 %v1362
        %v1435 = vpop.f32.mrf.mxu0
        %v1436 = vadd.f32 0.0, %v1435
        %v1437 = vpop.f32.mrf.mxu0
        %1438 = vdwg.mxu0
        %v1440 = vsel %vm439, %v856, 0
        %v1443 = vsel %vm439, %v857, 0
        %1445 = vmatprep.subr.mxu0 0.0
        %1446 = vmatpush1.msra.mxu0 0.0
        %1447 = vmatprep.subr.mxu0 0.0
        %1448 = vmatpush1.msra.mxu0 0.0
        %1449 = vmatprep.subr.mxu0 0.0
        %1450 = vmatpush1.msra.mxu0 0.0
        %1451 = vmatprep.subr.mxu0 0.0
        %1452 = vmatpush1.msra.mxu0 0.0
        %1453 = vmatprep.subr.mxu0 0.0
        %1454 = vmatpush1.msra.mxu0 0.0
        %1455 = vmatprep.subr.mxu0 0.0
        %1456 = vmatpush1.msra.mxu0 0.0
        %1457 = vmatprep.subr.mxu0 0.0
        %1458 = vmatpush1.msra.mxu0 0.0
        %1459 = vmatprep.subr.mxu0 0.0
        %1460 = vmatpush1.msra.mxu0 0.0
        %1461 = vmatprep.subr.mxu0 0.0
        %1462 = vmatpush1.msra.mxu0 0.0
        %1463 = vmatprep.subr.mxu0 0.0
        %1464 = vmatpush1.msra.mxu0 0.0
        %1465 = vmatprep.subr.mxu0 0.0
        %1466 = vmatpush1.msra.mxu0 0.0
        %1467 = vmatprep.subr.mxu0 0.0
        %1468 = vmatpush1.msra.mxu0 0.0
        %1469 = vmatprep.subr.mxu0 0.0
        %1470 = vmatpush1.msra.mxu0 0.0
        %1471 = vmatprep.subr.mxu0 0.0
        %1472 = vmatpush1.msra.mxu0 0.0
        %1473 = vmatprep.subr.mxu0 0.0
        %1474 = vmatpush1.msra.mxu0 %v270
        %1475 = vmatprep.subr.mxu0 0.0
        %1476 = vmatpush1.msra.mxu0 %v269
        %1477 = vmatprep.subr.mxu0 0.0
        %1478 = vmatpush2.msra.mxu0 0.0
        %1479 = vmatprep.subr.mxu0 0.0
        %1480 = vmatpush2.msra.mxu0 0.0
        %1481 = vmatprep.subr.mxu0 0.0
        %1482 = vmatpush2.msra.mxu0 0.0
        %1483 = vmatprep.subr.mxu0 0.0
        %1484 = vmatpush2.msra.mxu0 0.0
        %1485 = vmatprep.subr.mxu0 0.0
        %1486 = vmatpush2.msra.mxu0 0.0
        %1487 = vmatprep.subr.mxu0 0.0
        %1488 = vmatpush2.msra.mxu0 0.0
        %1489 = vmatprep.subr.mxu0 0.0
        %1490 = vmatpush2.msra.mxu0 0.0
        %1491 = vmatprep.subr.mxu0 0.0
        %1492 = vmatpush2.msra.mxu0 0.0
        %1493 = vmatprep.subr.mxu0 0.0
        %1494 = vmatpush2.msra.mxu0 0.0
        %1495 = vmatprep.subr.mxu0 0.0
        %1496 = vmatpush2.msra.mxu0 0.0
        %1497 = vmatprep.subr.mxu0 0.0
        %1498 = vmatpush2.msra.mxu0 0.0
        %1499 = vmatprep.subr.mxu0 0.0
        %1500 = vmatpush2.msra.mxu0 0.0
        %1501 = vmatprep.subr.mxu0 0.0
        %1502 = vmatpush2.msra.mxu0 0.0
        %1503 = vmatprep.subr.mxu0 0.0
        %1504 = vmatpush2.msra.mxu0 0.0
        %1505 = vmatprep.subr.mxu0 0.0
        %1506 = vmatpush2.msra.mxu0 0.0
        %1507 = vmatprep.subr.mxu0 0.0
        %1508 = vmatpush2.msra.mxu0 0.0
        %1509 = vmatprep.mubr.f32.mxu0 0.0
        %1510 = vmatmul.mubr.f32.gmra.mxu0 %v1440
        %v1511 = vpop.f32.mrf.mxu0
        %v1512 = vadd.f32 0.0, %v1511
        %v1513 = vpop.f32.mrf.mxu0
        %1514 = vmatprep.mubr.f32.mxu0 0.0
        %1515 = vmatmul.mubr.f32.gmra.mxu0 %v1443
        %v1516 = vpop.f32.mrf.mxu0
        %v1517 = vadd.f32 0.0, %v1516
        %v1518 = vpop.f32.mrf.mxu0
        %1519 = vdwg.mxu0
        %v1520 = vsel %vm439, %v632, 0.0
        %1521 = vadd.xlane.f32.xlu0 %v1520
        %v1522 = vpop.xlane.xlu0 %1521
        %v1523 = vsel %vm439, %v633, 0.0
        %1524 = vadd.xlane.f32.xlu0 %v1523
        %v1525 = vpop.xlane.xlu0 %1524
        %v1526 = vsel %vm439, %v664, 0.0
        %1527 = vadd.xlane.f32.xlu0 %v1526
        %v1528 = vpop.xlane.xlu0 %1527
        %v1529 = vsel %vm439, %v665, 0.0
        %1530 = vadd.xlane.f32.xlu0 %v1529
        %v1531 = vpop.xlane.xlu0 %1530
        %v1532 = vsel %vm439, %v696, 0.0
        %1533 = vadd.xlane.f32.xlu0 %v1532
        %v1534 = vpop.xlane.xlu0 %1533
        %v1535 = vsel %vm439, %v697, 0.0
        %1536 = vadd.xlane.f32.xlu0 %v1535
        %v1537 = vpop.xlane.xlu0 %1536
        %v1538 = vsel %vm439, %v728, 0.0
        %1539 = vadd.xlane.f32.xlu0 %v1538
        %v1540 = vpop.xlane.xlu0 %1539
        %v1541 = vsel %vm439, %v729, 0.0
        %1542 = vadd.xlane.f32.xlu0 %v1541
        %v1543 = vpop.xlane.xlu0 %1542
        %v1544 = vsel %vm439, %v760, 0.0
        %1545 = vadd.xlane.f32.xlu0 %v1544
        %v1546 = vpop.xlane.xlu0 %1545
        %v1547 = vsel %vm439, %v761, 0.0
        %1548 = vadd.xlane.f32.xlu0 %v1547
        %v1549 = vpop.xlane.xlu0 %1548
        %v1550 = vsel %vm439, %v792, 0.0
        %1551 = vadd.xlane.f32.xlu0 %v1550
        %v1552 = vpop.xlane.xlu0 %1551
        %v1553 = vsel %vm439, %v793, 0.0
        %1554 = vadd.xlane.f32.xlu0 %v1553
        %v1555 = vpop.xlane.xlu0 %1554
        %v1556 = vsel %vm439, %v824, 0.0
        %1557 = vadd.xlane.f32.xlu0 %v1556
        %v1558 = vpop.xlane.xlu0 %1557
        %v1559 = vsel %vm439, %v825, 0.0
        %1560 = vadd.xlane.f32.xlu0 %v1559
        %v1561 = vpop.xlane.xlu0 %1560
        %v1562 = vsel %vm439, %v856, 0.0
        %1563 = vadd.xlane.f32.xlu0 %v1562
        %v1564 = vpop.xlane.xlu0 %1563
        %v1565 = vsel %vm439, %v857, 0.0
        %1566 = vadd.xlane.f32.xlu0 %v1565
        %v1567 = vpop.xlane.xlu0 %1566
        %v1568 = vld [vmem:[%s3] sm:$0xff]
        %v1569 = vld [vmem:[%s3 + $0x8] sm:$0xff]
        %v1570 = vmul.f32 %v1522, %v1568
        %v1571 = vmul.f32 %v1525, %v1569
        %v1572 = vmul.f32 %v1528, %v1568
        %v1573 = vmul.f32 %v1531, %v1569
        %v1574 = vmul.f32 %v1534, %v1568
        %v1575 = vmul.f32 %v1537, %v1569
        %v1576 = vmul.f32 %v1540, %v1568
        %v1577 = vmul.f32 %v1543, %v1569
        %v1578 = vmul.f32 %v1546, %v1568
        %v1579 = vmul.f32 %v1549, %v1569
        %v1580 = vmul.f32 %v1552, %v1568
        %v1581 = vmul.f32 %v1555, %v1569
        %v1582 = vmul.f32 %v1558, %v1568
        %v1583 = vmul.f32 %v1561, %v1569
        %v1584 = vmul.f32 %v1564, %v1568
        %v1585 = vmul.f32 %v1567, %v1569
        %v1586 = vsub.f32 %v945, %v1570
        %v1587 = vsub.f32 %v950, %v1571
        %v1588 = vsub.f32 %v1026, %v1572
        %v1589 = vsub.f32 %v1031, %v1573
        %v1590 = vsub.f32 %v1107, %v1574
        %v1591 = vsub.f32 %v1112, %v1575
        %v1592 = vsub.f32 %v1188, %v1576
        %v1593 = vsub.f32 %v1193, %v1577
        %v1594 = vsub.f32 %v1269, %v1578
        %v1595 = vsub.f32 %v1274, %v1579
        %v1596 = vsub.f32 %v1350, %v1580
        %v1597 = vsub.f32 %v1355, %v1581
        %v1598 = vsub.f32 %v1431, %v1582
        %v1599 = vsub.f32 %v1436, %v1583
        %v1600 = vsub.f32 %v1512, %v1584
        %v1601 = vsub.f32 %v1517, %v1585
        %v1602 = vmul.f32 %v1586, %v1586
        %v1603 = vmul.f32 %v1587, %v1587
        %v1604 = vmul.f32 %v1588, %v1588
        %v1605 = vmul.f32 %v1589, %v1589
        %v1606 = vmul.f32 %v1590, %v1590
        %v1607 = vmul.f32 %v1591, %v1591
        %v1608 = vmul.f32 %v1592, %v1592
        %v1609 = vmul.f32 %v1593, %v1593
        %v1610 = vmul.f32 %v1594, %v1594
        %v1611 = vmul.f32 %v1595, %v1595
        %v1612 = vmul.f32 %v1596, %v1596
        %v1613 = vmul.f32 %v1597, %v1597
        %v1614 = vmul.f32 %v1598, %v1598
        %v1615 = vmul.f32 %v1599, %v1599
        %v1616 = vmul.f32 %v1600, %v1600
        %v1617 = vmul.f32 %v1601, %v1601
        %1618 = vadd.xlane.f32.xlu0 %v1602
        %v1619 = vpop.xlane.xlu0 %1618
        %1620 = vadd.xlane.f32.xlu0 %v1603
        %v1621 = vpop.xlane.xlu0 %1620
        %1622 = vadd.xlane.f32.xlu0 %v1604
        %v1623 = vpop.xlane.xlu0 %1622
        %1624 = vadd.xlane.f32.xlu0 %v1605
        %v1625 = vpop.xlane.xlu0 %1624
        %1626 = vadd.xlane.f32.xlu0 %v1606
        %v1627 = vpop.xlane.xlu0 %1626
        %1628 = vadd.xlane.f32.xlu0 %v1607
        %v1629 = vpop.xlane.xlu0 %1628
        %1630 = vadd.xlane.f32.xlu0 %v1608
        %v1631 = vpop.xlane.xlu0 %1630
        %1632 = vadd.xlane.f32.xlu0 %v1609
        %v1633 = vpop.xlane.xlu0 %1632
        %1634 = vadd.xlane.f32.xlu0 %v1610
        %v1635 = vpop.xlane.xlu0 %1634
        %1636 = vadd.xlane.f32.xlu0 %v1611
        %v1637 = vpop.xlane.xlu0 %1636
        %1638 = vadd.xlane.f32.xlu0 %v1612
        %v1639 = vpop.xlane.xlu0 %1638
        %1640 = vadd.xlane.f32.xlu0 %v1613
        %v1641 = vpop.xlane.xlu0 %1640
        %1642 = vadd.xlane.f32.xlu0 %v1614
        %v1643 = vpop.xlane.xlu0 %1642
        %1644 = vadd.xlane.f32.xlu0 %v1615
        %v1645 = vpop.xlane.xlu0 %1644
        %1646 = vadd.xlane.f32.xlu0 %v1616
        %v1647 = vpop.xlane.xlu0 %1646
        %1648 = vadd.xlane.f32.xlu0 %v1617
        %v1649 = vpop.xlane.xlu0 %1648
        %v1650 = vmax.f32 %v1619, 1e-24
        %v1651 = vmax.f32 %v1621, 1e-24
        %v1652 = vmax.f32 %v1623, 1e-24
        %v1653 = vmax.f32 %v1625, 1e-24
        %v1654 = vmax.f32 %v1627, 1e-24
        %v1655 = vmax.f32 %v1629, 1e-24
        %v1656 = vmax.f32 %v1631, 1e-24
        %v1657 = vmax.f32 %v1633, 1e-24
        %v1658 = vmax.f32 %v1635, 1e-24
        %v1659 = vmax.f32 %v1637, 1e-24
        %v1660 = vmax.f32 %v1639, 1e-24
        %v1661 = vmax.f32 %v1641, 1e-24
        %v1662 = vmax.f32 %v1643, 1e-24
        %v1663 = vmax.f32 %v1645, 1e-24
        %v1664 = vmax.f32 %v1647, 1e-24
        %v1665 = vmax.f32 %v1649, 1e-24
        %v1666 = vrsqrt.pop %v1650
        %v1667 = vrsqrt.pop %v1651
        %v1668 = vrsqrt.pop %v1652
        %v1669 = vrsqrt.pop %v1653
        %v1670 = vrsqrt.pop %v1654
        %v1671 = vrsqrt.pop %v1655
        %v1672 = vrsqrt.pop %v1656
        %v1673 = vrsqrt.pop %v1657
        %v1674 = vrsqrt.pop %v1658
        %v1675 = vrsqrt.pop %v1659
        %v1676 = vrsqrt.pop %v1660
        %v1677 = vrsqrt.pop %v1661
        %v1678 = vrsqrt.pop %v1662
        %v1679 = vrsqrt.pop %v1663
        %v1680 = vrsqrt.pop %v1664
        %v1681 = vrsqrt.pop %v1665
        %v1682 = vmul.f32 %v1586, %v1666
        %v1683 = vmul.f32 %v1587, %v1667
        %v1684 = vmul.f32 %v1588, %v1668
        %v1685 = vmul.f32 %v1589, %v1669
        %v1686 = vmul.f32 %v1590, %v1670
        %v1687 = vmul.f32 %v1591, %v1671
        %v1688 = vmul.f32 %v1592, %v1672
        %v1689 = vmul.f32 %v1593, %v1673
        %v1690 = vmul.f32 %v1594, %v1674
        %v1691 = vmul.f32 %v1595, %v1675
        %v1692 = vmul.f32 %v1596, %v1676
        %v1693 = vmul.f32 %v1597, %v1677
        %v1694 = vmul.f32 %v1598, %v1678
        %v1695 = vmul.f32 %v1599, %v1679
        %v1696 = vmul.f32 %v1600, %v1680
        %v1697 = vmul.f32 %v1601, %v1681
        %v1698 = vmul.f32 %v1682, %v1682
        %v1699 = vmul.f32 %v1683, %v1683
        %v1700 = vmul.f32 %v1684, %v1684
        %v1701 = vmul.f32 %v1685, %v1685
        %v1702 = vmul.f32 %v1686, %v1686
        %v1703 = vmul.f32 %v1687, %v1687
        %v1704 = vmul.f32 %v1688, %v1688
        %v1705 = vmul.f32 %v1689, %v1689
        %v1706 = vmul.f32 %v1690, %v1690
        %v1707 = vmul.f32 %v1691, %v1691
        %v1708 = vmul.f32 %v1692, %v1692
        %v1709 = vmul.f32 %v1693, %v1693
        %v1710 = vmul.f32 %v1694, %v1694
        %v1711 = vmul.f32 %v1695, %v1695
        %v1712 = vmul.f32 %v1696, %v1696
        %v1713 = vmul.f32 %v1697, %v1697
        %1714 = vadd.xlane.f32.xlu0 %v1698
        %v1715 = vpop.xlane.xlu0 %1714
        %1716 = vadd.xlane.f32.xlu0 %v1699
        %v1717 = vpop.xlane.xlu0 %1716
        %1718 = vadd.xlane.f32.xlu0 %v1700
        %v1719 = vpop.xlane.xlu0 %1718
        %1720 = vadd.xlane.f32.xlu0 %v1701
        %v1721 = vpop.xlane.xlu0 %1720
        %1722 = vadd.xlane.f32.xlu0 %v1702
        %v1723 = vpop.xlane.xlu0 %1722
        %1724 = vadd.xlane.f32.xlu0 %v1703
        %v1725 = vpop.xlane.xlu0 %1724
        %1726 = vadd.xlane.f32.xlu0 %v1704
        %v1727 = vpop.xlane.xlu0 %1726
        %1728 = vadd.xlane.f32.xlu0 %v1705
        %v1729 = vpop.xlane.xlu0 %1728
        %1730 = vadd.xlane.f32.xlu0 %v1706
        %v1731 = vpop.xlane.xlu0 %1730
        %1732 = vadd.xlane.f32.xlu0 %v1707
        %v1733 = vpop.xlane.xlu0 %1732
        %1734 = vadd.xlane.f32.xlu0 %v1708
        %v1735 = vpop.xlane.xlu0 %1734
        %1736 = vadd.xlane.f32.xlu0 %v1709
        %v1737 = vpop.xlane.xlu0 %1736
        %1738 = vadd.xlane.f32.xlu0 %v1710
        %v1739 = vpop.xlane.xlu0 %1738
        %1740 = vadd.xlane.f32.xlu0 %v1711
        %v1741 = vpop.xlane.xlu0 %1740
        %1742 = vadd.xlane.f32.xlu0 %v1712
        %v1743 = vpop.xlane.xlu0 %1742
        %1744 = vadd.xlane.f32.xlu0 %v1713
        %v1745 = vpop.xlane.xlu0 %1744
        %v1746 = vadd.f32 %v1715, %v1717
        %v1747 = vrot.slane %v1746, 4
        %v1748 = vadd.f32 %v1746, %v1747
        %v1749 = vrot.slane %v1748, 2
        %v1750 = vadd.f32 %v1748, %v1749
        %v1751 = vrot.slane %v1750, 1
        %v1752 = vadd.f32 %v1750, %v1751
        %v1753 = vadd.f32 %v1719, %v1721
        %v1754 = vrot.slane %v1753, 4
        %v1755 = vadd.f32 %v1753, %v1754
        %v1756 = vrot.slane %v1755, 2
        %v1757 = vadd.f32 %v1755, %v1756
        %v1758 = vrot.slane %v1757, 1
        %v1759 = vadd.f32 %v1757, %v1758
        %v1760 = vadd.f32 %v1723, %v1725
        %v1761 = vrot.slane %v1760, 4
        %v1762 = vadd.f32 %v1760, %v1761
        %v1763 = vrot.slane %v1762, 2
        %v1764 = vadd.f32 %v1762, %v1763
        %v1765 = vrot.slane %v1764, 1
        %v1766 = vadd.f32 %v1764, %v1765
        %v1767 = vadd.f32 %v1727, %v1729
        %v1768 = vrot.slane %v1767, 4
        %v1769 = vadd.f32 %v1767, %v1768
        %v1770 = vrot.slane %v1769, 2
        %v1771 = vadd.f32 %v1769, %v1770
        %v1772 = vrot.slane %v1771, 1
        %v1773 = vadd.f32 %v1771, %v1772
        %v1774 = vadd.f32 %v1731, %v1733
        %v1775 = vrot.slane %v1774, 4
        %v1776 = vadd.f32 %v1774, %v1775
        %v1777 = vrot.slane %v1776, 2
        %v1778 = vadd.f32 %v1776, %v1777
        %v1779 = vrot.slane %v1778, 1
        %v1780 = vadd.f32 %v1778, %v1779
        %v1781 = vadd.f32 %v1735, %v1737
        %v1782 = vrot.slane %v1781, 4
        %v1783 = vadd.f32 %v1781, %v1782
        %v1784 = vrot.slane %v1783, 2
        %v1785 = vadd.f32 %v1783, %v1784
        %v1786 = vrot.slane %v1785, 1
        %v1787 = vadd.f32 %v1785, %v1786
        %v1788 = vadd.f32 %v1739, %v1741
        %v1789 = vrot.slane %v1788, 4
        %v1790 = vadd.f32 %v1788, %v1789
        %v1791 = vrot.slane %v1790, 2
        %v1792 = vadd.f32 %v1790, %v1791
        %v1793 = vrot.slane %v1792, 1
        %v1794 = vadd.f32 %v1792, %v1793
        %v1795 = vadd.f32 %v1743, %v1745
        %v1796 = vrot.slane %v1795, 4
        %v1797 = vadd.f32 %v1795, %v1796
        %v1798 = vrot.slane %v1797, 2
        %v1799 = vadd.f32 %v1797, %v1798
        %v1800 = vrot.slane %v1799, 1
        %v1801 = vadd.f32 %v1799, %v1800
        %v1802 = vmax.f32 %v1752, 1e-24
        %v1803 = vmax.f32 %v1759, 1e-24
        %v1804 = vmax.f32 %v1766, 1e-24
        %v1805 = vmax.f32 %v1773, 1e-24
        %v1806 = vmax.f32 %v1780, 1e-24
        %v1807 = vmax.f32 %v1787, 1e-24
        %v1808 = vmax.f32 %v1794, 1e-24
        %v1809 = vmax.f32 %v1801, 1e-24
        %v1810 = vrsqrt.pop %v1802
        %v1811 = vrsqrt.pop %v1803
        %v1812 = vrsqrt.pop %v1804
        %v1813 = vrsqrt.pop %v1805
        %v1814 = vrsqrt.pop %v1806
        %v1815 = vrsqrt.pop %v1807
        %v1816 = vrsqrt.pop %v1808
        %v1817 = vrsqrt.pop %v1809
        %v1818 = vmul.f32 %v1682, %v1810
        %v1819 = vmul.f32 %v1683, %v1810
        %v1820 = vmul.f32 %v1684, %v1811
        %v1821 = vmul.f32 %v1685, %v1811
        %v1822 = vmul.f32 %v1686, %v1812
        %v1823 = vmul.f32 %v1687, %v1812
        %v1824 = vmul.f32 %v1688, %v1813
        %v1825 = vmul.f32 %v1689, %v1813
        %v1826 = vmul.f32 %v1690, %v1814
        %v1827 = vmul.f32 %v1691, %v1814
        %v1828 = vmul.f32 %v1692, %v1815
        %v1829 = vmul.f32 %v1693, %v1815
        %v1830 = vmul.f32 %v1694, %v1816
        %v1831 = vmul.f32 %v1695, %v1816
        %v1832 = vmul.f32 %v1696, %v1817
        %v1833 = vmul.f32 %v1697, %v1817
        %v1834 = vcombine.low %v1818, %v1822
        %v1835 = vcombine.high %v1818, %v1822
        %v1837 = vunpack.c.l.s4 1983009808
        %v1838 = vunpack.c.0.s8 %v1837
        %v1839 = vlaneseq
        %v1840 = vshrl.u32 %v1839, 7
        %v1841 = vsub.s32 %v1838, %v1840
        %v1842 = vrot.slane %v1834, %v1841
        %v1844 = vunpack.c.l.s4 1983009808
        %v1845 = vunpack.c.0.s8 %v1844
        %v1846 = vlaneseq
        %v1847 = vshrl.u32 %v1846, 7
        %v1848 = vsub.s32 %v1845, %v1847
        %v1849 = vrot.slane %v1835, %v1848
        %v1850 = vcombine.low %v1820, %v1824
        %v1851 = vcombine.high %v1820, %v1824
        %v1853 = vunpack.c.l.s4 1983009808
        %v1854 = vunpack.c.0.s8 %v1853
        %v1855 = vlaneseq
        %v1856 = vshrl.u32 %v1855, 7
        %v1857 = vsub.s32 %v1854, %v1856
        %v1858 = vrot.slane %v1850, %v1857
        %v1860 = vunpack.c.l.s4 1983009808
        %v1861 = vunpack.c.0.s8 %v1860
        %v1862 = vlaneseq
        %v1863 = vshrl.u32 %v1862, 7
        %v1864 = vsub.s32 %v1861, %v1863
        %v1865 = vrot.slane %v1851, %v1864
        %v1866 = vcombine.low %v1826, %v1830
        %v1867 = vcombine.high %v1826, %v1830
        %v1869 = vunpack.c.l.s4 1983009808
        %v1870 = vunpack.c.0.s8 %v1869
        %v1871 = vlaneseq
        %v1872 = vshrl.u32 %v1871, 7
        %v1873 = vsub.s32 %v1870, %v1872
        %v1874 = vrot.slane %v1866, %v1873
        %v1876 = vunpack.c.l.s4 1983009808
        %v1877 = vunpack.c.0.s8 %v1876
        %v1878 = vlaneseq
        %v1879 = vshrl.u32 %v1878, 7
        %v1880 = vsub.s32 %v1877, %v1879
        %v1881 = vrot.slane %v1867, %v1880
        %v1882 = vcombine.low %v1828, %v1832
        %v1883 = vcombine.high %v1828, %v1832
        %v1885 = vunpack.c.l.s4 1983009808
        %v1886 = vunpack.c.0.s8 %v1885
        %v1887 = vlaneseq
        %v1888 = vshrl.u32 %v1887, 7
        %v1889 = vsub.s32 %v1886, %v1888
        %v1890 = vrot.slane %v1882, %v1889
        %v1892 = vunpack.c.l.s4 1983009808
        %v1893 = vunpack.c.0.s8 %v1892
        %v1894 = vlaneseq
        %v1895 = vshrl.u32 %v1894, 7
        %v1896 = vsub.s32 %v1893, %v1895
        %v1897 = vrot.slane %v1883, %v1896
        %v1898 = vcombine.low %v1842, %v1858
        %v1899 = vcombine.high %v1842, %v1858
        %v1901 = vunpack.c.l.s4 1934713408
        %v1902 = vunpack.c.0.s8 %v1901
        %v1903 = vlaneseq
        %v1904 = vshrl.u32 %v1903, 7
        %v1905 = vsub.s32 %v1902, %v1904
        %v1906 = vrot.slane %v1898, %v1905
        %v1908 = vunpack.c.l.s4 1934713408
        %v1909 = vunpack.c.0.s8 %v1908
        %v1910 = vlaneseq
        %v1911 = vshrl.u32 %v1910, 7
        %v1912 = vsub.s32 %v1909, %v1911
        %v1913 = vrot.slane %v1899, %v1912
        %v1914 = vcombine.low %v1849, %v1865
        %v1915 = vcombine.high %v1849, %v1865
        %v1917 = vunpack.c.l.s4 1934713408
        %v1918 = vunpack.c.0.s8 %v1917
        %v1919 = vlaneseq
        %v1920 = vshrl.u32 %v1919, 7
        %v1921 = vsub.s32 %v1918, %v1920
        %v1922 = vrot.slane %v1914, %v1921
        %v1924 = vunpack.c.l.s4 1934713408
        %v1925 = vunpack.c.0.s8 %v1924
        %v1926 = vlaneseq
        %v1927 = vshrl.u32 %v1926, 7
        %v1928 = vsub.s32 %v1925, %v1927
        %v1929 = vrot.slane %v1915, %v1928
        %v1930 = vcombine.low %v1874, %v1890
        %v1931 = vcombine.high %v1874, %v1890
        %v1933 = vunpack.c.l.s4 1934713408
        %v1934 = vunpack.c.0.s8 %v1933
        %v1935 = vlaneseq
        %v1936 = vshrl.u32 %v1935, 7
        %v1937 = vsub.s32 %v1934, %v1936
        %v1938 = vrot.slane %v1930, %v1937
        %v1940 = vunpack.c.l.s4 1934713408
        %v1941 = vunpack.c.0.s8 %v1940
        %v1942 = vlaneseq
        %v1943 = vshrl.u32 %v1942, 7
        %v1944 = vsub.s32 %v1941, %v1943
        %v1945 = vrot.slane %v1931, %v1944
        %v1946 = vcombine.low %v1881, %v1897
        %v1947 = vcombine.high %v1881, %v1897
        %v1949 = vunpack.c.l.s4 1934713408
        %v1950 = vunpack.c.0.s8 %v1949
        %v1951 = vlaneseq
        %v1952 = vshrl.u32 %v1951, 7
        %v1953 = vsub.s32 %v1950, %v1952
        %v1954 = vrot.slane %v1946, %v1953
        %v1956 = vunpack.c.l.s4 1934713408
        %v1957 = vunpack.c.0.s8 %v1956
        %v1958 = vlaneseq
        %v1959 = vshrl.u32 %v1958, 7
        %v1960 = vsub.s32 %v1957, %v1959
        %v1961 = vrot.slane %v1947, %v1960
        %v1962 = vcombine.low %v1906, %v1938
        %v1963 = vcombine.high %v1906, %v1938
        %v1964 = vcombine.low %v1913, %v1945
        %v1965 = vcombine.high %v1913, %v1945
        %v1966 = vcombine.low %v1922, %v1954
        %v1967 = vcombine.high %v1922, %v1954
        %v1968 = vcombine.low %v1929, %v1961
        %v1969 = vcombine.high %v1929, %v1961
        %v1970 = vcombine.low %v1819, %v1823
        %v1971 = vcombine.high %v1819, %v1823
        %v1973 = vunpack.c.l.s4 1983009808
        %v1974 = vunpack.c.0.s8 %v1973
        %v1975 = vlaneseq
        %v1976 = vshrl.u32 %v1975, 7
        %v1977 = vsub.s32 %v1974, %v1976
        %v1978 = vrot.slane %v1970, %v1977
        %v1980 = vunpack.c.l.s4 1983009808
        %v1981 = vunpack.c.0.s8 %v1980
        %v1982 = vlaneseq
        %v1983 = vshrl.u32 %v1982, 7
        %v1984 = vsub.s32 %v1981, %v1983
        %v1985 = vrot.slane %v1971, %v1984
        %v1986 = vcombine.low %v1821, %v1825
        %v1987 = vcombine.high %v1821, %v1825
        %v1989 = vunpack.c.l.s4 1983009808
        %v1990 = vunpack.c.0.s8 %v1989
        %v1991 = vlaneseq
        %v1992 = vshrl.u32 %v1991, 7
        %v1993 = vsub.s32 %v1990, %v1992
        %v1994 = vrot.slane %v1986, %v1993
        %v1996 = vunpack.c.l.s4 1983009808
        %v1997 = vunpack.c.0.s8 %v1996
        %v1998 = vlaneseq
        %v1999 = vshrl.u32 %v1998, 7
        %v2000 = vsub.s32 %v1997, %v1999
        %v2001 = vrot.slane %v1987, %v2000
        %v2002 = vcombine.low %v1827, %v1831
        %v2003 = vcombine.high %v1827, %v1831
        %v2005 = vunpack.c.l.s4 1983009808
        %v2006 = vunpack.c.0.s8 %v2005
        %v2007 = vlaneseq
        %v2008 = vshrl.u32 %v2007, 7
        %v2009 = vsub.s32 %v2006, %v2008
        %v2010 = vrot.slane %v2002, %v2009
        %v2012 = vunpack.c.l.s4 1983009808
        %v2013 = vunpack.c.0.s8 %v2012
        %v2014 = vlaneseq
        %v2015 = vshrl.u32 %v2014, 7
        %v2016 = vsub.s32 %v2013, %v2015
        %v2017 = vrot.slane %v2003, %v2016
        %v2018 = vcombine.low %v1829, %v1833
        %v2019 = vcombine.high %v1829, %v1833
        %v2021 = vunpack.c.l.s4 1983009808
        %v2022 = vunpack.c.0.s8 %v2021
        %v2023 = vlaneseq
        %v2024 = vshrl.u32 %v2023, 7
        %v2025 = vsub.s32 %v2022, %v2024
        %v2026 = vrot.slane %v2018, %v2025
        %v2028 = vunpack.c.l.s4 1983009808
        %v2029 = vunpack.c.0.s8 %v2028
        %v2030 = vlaneseq
        %v2031 = vshrl.u32 %v2030, 7
        %v2032 = vsub.s32 %v2029, %v2031
        %v2033 = vrot.slane %v2019, %v2032
        %v2034 = vcombine.low %v1978, %v1994
        %v2035 = vcombine.high %v1978, %v1994
        %v2037 = vunpack.c.l.s4 1934713408
        %v2038 = vunpack.c.0.s8 %v2037
        %v2039 = vlaneseq
        %v2040 = vshrl.u32 %v2039, 7
        %v2041 = vsub.s32 %v2038, %v2040
        %v2042 = vrot.slane %v2034, %v2041
        %v2044 = vunpack.c.l.s4 1934713408
        %v2045 = vunpack.c.0.s8 %v2044
        %v2046 = vlaneseq
        %v2047 = vshrl.u32 %v2046, 7
        %v2048 = vsub.s32 %v2045, %v2047
        %v2049 = vrot.slane %v2035, %v2048
        %v2050 = vcombine.low %v1985, %v2001
        %v2051 = vcombine.high %v1985, %v2001
        %v2053 = vunpack.c.l.s4 1934713408
        %v2054 = vunpack.c.0.s8 %v2053
        %v2055 = vlaneseq
        %v2056 = vshrl.u32 %v2055, 7
        %v2057 = vsub.s32 %v2054, %v2056
        %v2058 = vrot.slane %v2050, %v2057
        %v2060 = vunpack.c.l.s4 1934713408
        %v2061 = vunpack.c.0.s8 %v2060
        %v2062 = vlaneseq
        %v2063 = vshrl.u32 %v2062, 7
        %v2064 = vsub.s32 %v2061, %v2063
        %v2065 = vrot.slane %v2051, %v2064
        %v2066 = vcombine.low %v2010, %v2026
        %v2067 = vcombine.high %v2010, %v2026
        %v2069 = vunpack.c.l.s4 1934713408
        %v2070 = vunpack.c.0.s8 %v2069
        %v2071 = vlaneseq
        %v2072 = vshrl.u32 %v2071, 7
        %v2073 = vsub.s32 %v2070, %v2072
        %v2074 = vrot.slane %v2066, %v2073
        %v2076 = vunpack.c.l.s4 1934713408
        %v2077 = vunpack.c.0.s8 %v2076
        %v2078 = vlaneseq
        %v2079 = vshrl.u32 %v2078, 7
        %v2080 = vsub.s32 %v2077, %v2079
        %v2081 = vrot.slane %v2067, %v2080
        %v2082 = vcombine.low %v2017, %v2033
        %v2083 = vcombine.high %v2017, %v2033
        %v2085 = vunpack.c.l.s4 1934713408
        %v2086 = vunpack.c.0.s8 %v2085
        %v2087 = vlaneseq
        %v2088 = vshrl.u32 %v2087, 7
        %v2089 = vsub.s32 %v2086, %v2088
        %v2090 = vrot.slane %v2082, %v2089
        %v2092 = vunpack.c.l.s4 1934713408
        %v2093 = vunpack.c.0.s8 %v2092
        %v2094 = vlaneseq
        %v2095 = vshrl.u32 %v2094, 7
        %v2096 = vsub.s32 %v2093, %v2095
        %v2097 = vrot.slane %v2083, %v2096
        %v2098 = vcombine.low %v2042, %v2074
        %v2099 = vcombine.high %v2042, %v2074
        %v2100 = vcombine.low %v2049, %v2081
        %v2101 = vcombine.high %v2049, %v2081
        %v2102 = vcombine.low %v2058, %v2090
        %v2103 = vcombine.high %v2058, %v2090
        %v2104 = vcombine.low %v2065, %v2097
        %v2105 = vcombine.high %v2065, %v2097
        %v2106 = vld [vmem:[%s4] sm:$0xff]
        %v2107 = vld [vmem:[%s4 + $0x8] sm:$0xff]
        %v2108 = vld [vmem:[%s4 + $0x10] sm:$0xff]
        %v2109 = vld [vmem:[%s4 + $0x18] sm:$0xff]
        %v2110 = vld [vmem:[%s4 + $0x20] sm:$0xff]
        %v2111 = vld [vmem:[%s4 + $0x28] sm:$0xff]
        %v2112 = vld [vmem:[%s4 + $0x30] sm:$0xff]
        %v2113 = vld [vmem:[%s4 + $0x38] sm:$0xff]
        %v2114 = vld [vmem:[%s4 + $0x40] sm:$0xff]
        %v2115 = vld [vmem:[%s4 + $0x48] sm:$0xff]
        %v2116 = vld [vmem:[%s4 + $0x50] sm:$0xff]
        %v2117 = vld [vmem:[%s4 + $0x58] sm:$0xff]
        %v2118 = vld [vmem:[%s4 + $0x60] sm:$0xff]
        %v2119 = vld [vmem:[%s4 + $0x68] sm:$0xff]
        %v2120 = vld [vmem:[%s4 + $0x70] sm:$0xff]
        %v2121 = vld [vmem:[%s4 + $0x78] sm:$0xff]
        %v2122 = vld [vmem:[%s4 + $0x80] sm:$0xff]
        %v2123 = vld [vmem:[%s4 + $0x88] sm:$0xff]
        %v2124 = vld [vmem:[%s4 + $0x90] sm:$0xff]
        %v2125 = vld [vmem:[%s4 + $0x98] sm:$0xff]
        %v2126 = vld [vmem:[%s4 + $0xa0] sm:$0xff]
        %v2127 = vld [vmem:[%s4 + $0xa8] sm:$0xff]
        %v2128 = vld [vmem:[%s4 + $0xb0] sm:$0xff]
        %v2129 = vld [vmem:[%s4 + $0xb8] sm:$0xff]
        %v2130 = vld [vmem:[%s4 + $0xc0] sm:$0xff]
        %v2131 = vld [vmem:[%s4 + $0xc8] sm:$0xff]
        %v2132 = vld [vmem:[%s4 + $0xd0] sm:$0xff]
        %v2133 = vld [vmem:[%s4 + $0xd8] sm:$0xff]
        %v2134 = vld [vmem:[%s4 + $0xe0] sm:$0xff]
        %v2135 = vld [vmem:[%s4 + $0xe8] sm:$0xff]
        %v2136 = vld [vmem:[%s4 + $0xf0] sm:$0xff]
        %v2137 = vld [vmem:[%s4 + $0xf8] sm:$0xff]
        %v2138 = vld [vmem:[%s4 + $0x100] sm:$0xff]
        %v2139 = vld [vmem:[%s4 + $0x108] sm:$0xff]
        %v2140 = vld [vmem:[%s4 + $0x110] sm:$0xff]
        %v2141 = vld [vmem:[%s4 + $0x118] sm:$0xff]
        %v2142 = vld [vmem:[%s4 + $0x120] sm:$0xff]
        %v2143 = vld [vmem:[%s4 + $0x128] sm:$0xff]
        %v2144 = vld [vmem:[%s4 + $0x130] sm:$0xff]
        %v2145 = vld [vmem:[%s4 + $0x138] sm:$0xff]
        %v2146 = vld [vmem:[%s4 + $0x140] sm:$0xff]
        %v2147 = vld [vmem:[%s4 + $0x148] sm:$0xff]
        %v2148 = vld [vmem:[%s4 + $0x150] sm:$0xff]
        %v2149 = vld [vmem:[%s4 + $0x158] sm:$0xff]
        %v2150 = vld [vmem:[%s4 + $0x160] sm:$0xff]
        %v2151 = vld [vmem:[%s4 + $0x168] sm:$0xff]
        %v2152 = vld [vmem:[%s4 + $0x170] sm:$0xff]
        %v2153 = vld [vmem:[%s4 + $0x178] sm:$0xff]
        %v2154 = vld [vmem:[%s4 + $0x180] sm:$0xff]
        %v2155 = vld [vmem:[%s4 + $0x188] sm:$0xff]
        %v2156 = vld [vmem:[%s4 + $0x190] sm:$0xff]
        %v2157 = vld [vmem:[%s4 + $0x198] sm:$0xff]
        %v2158 = vld [vmem:[%s4 + $0x1a0] sm:$0xff]
        %v2159 = vld [vmem:[%s4 + $0x1a8] sm:$0xff]
        %v2160 = vld [vmem:[%s4 + $0x1b0] sm:$0xff]
        %v2161 = vld [vmem:[%s4 + $0x1b8] sm:$0xff]
        %v2162 = vld [vmem:[%s4 + $0x1c0] sm:$0xff]
        %v2163 = vld [vmem:[%s4 + $0x1c8] sm:$0xff]
        %v2164 = vld [vmem:[%s4 + $0x1d0] sm:$0xff]
        %v2165 = vld [vmem:[%s4 + $0x1d8] sm:$0xff]
        %v2166 = vld [vmem:[%s4 + $0x1e0] sm:$0xff]
        %v2167 = vld [vmem:[%s4 + $0x1e8] sm:$0xff]
        %v2168 = vld [vmem:[%s4 + $0x1f0] sm:$0xff]
        %v2169 = vld [vmem:[%s4 + $0x1f8] sm:$0xff]
        %v2170 = vld [vmem:[%s4 + $0x200] sm:$0xff]
        %v2171 = vld [vmem:[%s4 + $0x208] sm:$0xff]
        %v2172 = vld [vmem:[%s4 + $0x210] sm:$0xff]
        %v2173 = vld [vmem:[%s4 + $0x218] sm:$0xff]
        %v2174 = vld [vmem:[%s4 + $0x220] sm:$0xff]
        %v2175 = vld [vmem:[%s4 + $0x228] sm:$0xff]
        %v2176 = vld [vmem:[%s4 + $0x230] sm:$0xff]
        %v2177 = vld [vmem:[%s4 + $0x238] sm:$0xff]
        %v2178 = vld [vmem:[%s4 + $0x240] sm:$0xff]
        %v2179 = vld [vmem:[%s4 + $0x248] sm:$0xff]
        %v2180 = vld [vmem:[%s4 + $0x250] sm:$0xff]
        %v2181 = vld [vmem:[%s4 + $0x258] sm:$0xff]
        %v2182 = vld [vmem:[%s4 + $0x260] sm:$0xff]
        %v2183 = vld [vmem:[%s4 + $0x268] sm:$0xff]
        %v2184 = vld [vmem:[%s4 + $0x270] sm:$0xff]
        %v2185 = vld [vmem:[%s4 + $0x278] sm:$0xff]
        %v2186 = vld [vmem:[%s4 + $0x280] sm:$0xff]
        %v2187 = vld [vmem:[%s4 + $0x288] sm:$0xff]
        %v2188 = vld [vmem:[%s4 + $0x290] sm:$0xff]
        %v2189 = vld [vmem:[%s4 + $0x298] sm:$0xff]
        %v2190 = vld [vmem:[%s4 + $0x2a0] sm:$0xff]
        %v2191 = vld [vmem:[%s4 + $0x2a8] sm:$0xff]
        %v2192 = vld [vmem:[%s4 + $0x2b0] sm:$0xff]
        %v2193 = vld [vmem:[%s4 + $0x2b8] sm:$0xff]
        %v2194 = vld [vmem:[%s4 + $0x2c0] sm:$0xff]
        %v2195 = vld [vmem:[%s4 + $0x2c8] sm:$0xff]
        %v2196 = vld [vmem:[%s4 + $0x2d0] sm:$0xff]
        %v2197 = vld [vmem:[%s4 + $0x2d8] sm:$0xff]
        %v2198 = vld [vmem:[%s4 + $0x2e0] sm:$0xff]
        %v2199 = vld [vmem:[%s4 + $0x2e8] sm:$0xff]
        %v2200 = vld [vmem:[%s4 + $0x2f0] sm:$0xff]
        %v2201 = vld [vmem:[%s4 + $0x2f8] sm:$0xff]
        %v2202 = vld [vmem:[%s4 + $0x300] sm:$0xff]
        %v2203 = vld [vmem:[%s4 + $0x308] sm:$0xff]
        %v2204 = vld [vmem:[%s4 + $0x310] sm:$0xff]
        %v2205 = vld [vmem:[%s4 + $0x318] sm:$0xff]
        %v2206 = vld [vmem:[%s4 + $0x320] sm:$0xff]
        %v2207 = vld [vmem:[%s4 + $0x328] sm:$0xff]
        %v2208 = vld [vmem:[%s4 + $0x330] sm:$0xff]
        %v2209 = vld [vmem:[%s4 + $0x338] sm:$0xff]
        %v2210 = vld [vmem:[%s4 + $0x340] sm:$0xff]
        %v2211 = vld [vmem:[%s4 + $0x348] sm:$0xff]
        %v2212 = vld [vmem:[%s4 + $0x350] sm:$0xff]
        %v2213 = vld [vmem:[%s4 + $0x358] sm:$0xff]
        %v2214 = vld [vmem:[%s4 + $0x360] sm:$0xff]
        %v2215 = vld [vmem:[%s4 + $0x368] sm:$0xff]
        %v2216 = vld [vmem:[%s4 + $0x370] sm:$0xff]
        %v2217 = vld [vmem:[%s4 + $0x378] sm:$0xff]
        %v2218 = vld [vmem:[%s4 + $0x380] sm:$0xff]
        %v2219 = vld [vmem:[%s4 + $0x388] sm:$0xff]
        %v2220 = vld [vmem:[%s4 + $0x390] sm:$0xff]
        %v2221 = vld [vmem:[%s4 + $0x398] sm:$0xff]
        %v2222 = vld [vmem:[%s4 + $0x3a0] sm:$0xff]
        %v2223 = vld [vmem:[%s4 + $0x3a8] sm:$0xff]
        %v2224 = vld [vmem:[%s4 + $0x3b0] sm:$0xff]
        %v2225 = vld [vmem:[%s4 + $0x3b8] sm:$0xff]
        %v2226 = vld [vmem:[%s4 + $0x3c0] sm:$0xff]
        %v2227 = vld [vmem:[%s4 + $0x3c8] sm:$0xff]
        %v2228 = vld [vmem:[%s4 + $0x3d0] sm:$0xff]
        %v2229 = vld [vmem:[%s4 + $0x3d8] sm:$0xff]
        %v2230 = vld [vmem:[%s4 + $0x3e0] sm:$0xff]
        %v2231 = vld [vmem:[%s4 + $0x3e8] sm:$0xff]
        %v2232 = vld [vmem:[%s4 + $0x3f0] sm:$0xff]
        %v2233 = vld [vmem:[%s4 + $0x3f8] sm:$0xff]
        %v2234 = vld [vmem:[%s4 + $0x400] sm:$0xff]
        %v2235 = vld [vmem:[%s4 + $0x408] sm:$0xff]
        %v2236 = vld [vmem:[%s4 + $0x410] sm:$0xff]
        %v2237 = vld [vmem:[%s4 + $0x418] sm:$0xff]
        %v2238 = vld [vmem:[%s4 + $0x420] sm:$0xff]
        %v2239 = vld [vmem:[%s4 + $0x428] sm:$0xff]
        %v2240 = vld [vmem:[%s4 + $0x430] sm:$0xff]
        %v2241 = vld [vmem:[%s4 + $0x438] sm:$0xff]
        %v2242 = vld [vmem:[%s4 + $0x440] sm:$0xff]
        %v2243 = vld [vmem:[%s4 + $0x448] sm:$0xff]
        %v2244 = vld [vmem:[%s4 + $0x450] sm:$0xff]
        %v2245 = vld [vmem:[%s4 + $0x458] sm:$0xff]
        %v2246 = vld [vmem:[%s4 + $0x460] sm:$0xff]
        %v2247 = vld [vmem:[%s4 + $0x468] sm:$0xff]
        %v2248 = vld [vmem:[%s4 + $0x470] sm:$0xff]
        %v2249 = vld [vmem:[%s4 + $0x478] sm:$0xff]
        %v2250 = vld [vmem:[%s4 + $0x480] sm:$0xff]
        %v2251 = vld [vmem:[%s4 + $0x488] sm:$0xff]
        %v2252 = vld [vmem:[%s4 + $0x490] sm:$0xff]
        %v2253 = vld [vmem:[%s4 + $0x498] sm:$0xff]
        %v2254 = vld [vmem:[%s4 + $0x4a0] sm:$0xff]
        %v2255 = vld [vmem:[%s4 + $0x4a8] sm:$0xff]
        %v2256 = vld [vmem:[%s4 + $0x4b0] sm:$0xff]
        %v2257 = vld [vmem:[%s4 + $0x4b8] sm:$0xff]
        %v2258 = vld [vmem:[%s4 + $0x4c0] sm:$0xff]
        %v2259 = vld [vmem:[%s4 + $0x4c8] sm:$0xff]
        %v2260 = vld [vmem:[%s4 + $0x4d0] sm:$0xff]
        %v2261 = vld [vmem:[%s4 + $0x4d8] sm:$0xff]
        %v2262 = vld [vmem:[%s4 + $0x4e0] sm:$0xff]
        %v2263 = vld [vmem:[%s4 + $0x4e8] sm:$0xff]
        %v2264 = vld [vmem:[%s4 + $0x4f0] sm:$0xff]
        %v2265 = vld [vmem:[%s4 + $0x4f8] sm:$0xff]
        %v2266 = vld [vmem:[%s4 + $0x500] sm:$0xff]
        %v2267 = vld [vmem:[%s4 + $0x508] sm:$0xff]
        %v2268 = vld [vmem:[%s4 + $0x510] sm:$0xff]
        %v2269 = vld [vmem:[%s4 + $0x518] sm:$0xff]
        %v2270 = vld [vmem:[%s4 + $0x520] sm:$0xff]
        %v2271 = vld [vmem:[%s4 + $0x528] sm:$0xff]
        %v2272 = vld [vmem:[%s4 + $0x530] sm:$0xff]
        %v2273 = vld [vmem:[%s4 + $0x538] sm:$0xff]
        %v2274 = vld [vmem:[%s4 + $0x540] sm:$0xff]
        %v2275 = vld [vmem:[%s4 + $0x548] sm:$0xff]
        %v2276 = vld [vmem:[%s4 + $0x550] sm:$0xff]
        %v2277 = vld [vmem:[%s4 + $0x558] sm:$0xff]
        %v2278 = vld [vmem:[%s4 + $0x560] sm:$0xff]
        %v2279 = vld [vmem:[%s4 + $0x568] sm:$0xff]
        %v2280 = vld [vmem:[%s4 + $0x570] sm:$0xff]
        %v2281 = vld [vmem:[%s4 + $0x578] sm:$0xff]
        %v2282 = vld [vmem:[%s4 + $0x580] sm:$0xff]
        %v2283 = vld [vmem:[%s4 + $0x588] sm:$0xff]
        %v2284 = vld [vmem:[%s4 + $0x590] sm:$0xff]
        %v2285 = vld [vmem:[%s4 + $0x598] sm:$0xff]
        %v2286 = vld [vmem:[%s4 + $0x5a0] sm:$0xff]
        %v2287 = vld [vmem:[%s4 + $0x5a8] sm:$0xff]
        %v2288 = vld [vmem:[%s4 + $0x5b0] sm:$0xff]
        %v2289 = vld [vmem:[%s4 + $0x5b8] sm:$0xff]
        %v2290 = vld [vmem:[%s4 + $0x5c0] sm:$0xff]
        %v2291 = vld [vmem:[%s4 + $0x5c8] sm:$0xff]
        %v2292 = vld [vmem:[%s4 + $0x5d0] sm:$0xff]
        %v2293 = vld [vmem:[%s4 + $0x5d8] sm:$0xff]
        %v2294 = vld [vmem:[%s4 + $0x5e0] sm:$0xff]
        %v2295 = vld [vmem:[%s4 + $0x5e8] sm:$0xff]
        %v2296 = vld [vmem:[%s4 + $0x5f0] sm:$0xff]
        %v2297 = vld [vmem:[%s4 + $0x5f8] sm:$0xff]
        %v2298 = vld [vmem:[%s4 + $0x600] sm:$0xff]
        %v2299 = vld [vmem:[%s4 + $0x608] sm:$0xff]
        %v2300 = vld [vmem:[%s4 + $0x610] sm:$0xff]
        %v2301 = vld [vmem:[%s4 + $0x618] sm:$0xff]
        %v2302 = vld [vmem:[%s4 + $0x620] sm:$0xff]
        %v2303 = vld [vmem:[%s4 + $0x628] sm:$0xff]
        %v2304 = vld [vmem:[%s4 + $0x630] sm:$0xff]
        %v2305 = vld [vmem:[%s4 + $0x638] sm:$0xff]
        %v2306 = vld [vmem:[%s4 + $0x640] sm:$0xff]
        %v2307 = vld [vmem:[%s4 + $0x648] sm:$0xff]
        %v2308 = vld [vmem:[%s4 + $0x650] sm:$0xff]
        %v2309 = vld [vmem:[%s4 + $0x658] sm:$0xff]
        %v2310 = vld [vmem:[%s4 + $0x660] sm:$0xff]
        %v2311 = vld [vmem:[%s4 + $0x668] sm:$0xff]
        %v2312 = vld [vmem:[%s4 + $0x670] sm:$0xff]
        %v2313 = vld [vmem:[%s4 + $0x678] sm:$0xff]
        %v2314 = vld [vmem:[%s4 + $0x680] sm:$0xff]
        %v2315 = vld [vmem:[%s4 + $0x688] sm:$0xff]
        %v2316 = vld [vmem:[%s4 + $0x690] sm:$0xff]
        %v2317 = vld [vmem:[%s4 + $0x698] sm:$0xff]
        %v2318 = vld [vmem:[%s4 + $0x6a0] sm:$0xff]
        %v2319 = vld [vmem:[%s4 + $0x6a8] sm:$0xff]
        %v2320 = vld [vmem:[%s4 + $0x6b0] sm:$0xff]
        %v2321 = vld [vmem:[%s4 + $0x6b8] sm:$0xff]
        %v2322 = vld [vmem:[%s4 + $0x6c0] sm:$0xff]
        %v2323 = vld [vmem:[%s4 + $0x6c8] sm:$0xff]
        %v2324 = vld [vmem:[%s4 + $0x6d0] sm:$0xff]
        %v2325 = vld [vmem:[%s4 + $0x6d8] sm:$0xff]
        %v2326 = vld [vmem:[%s4 + $0x6e0] sm:$0xff]
        %v2327 = vld [vmem:[%s4 + $0x6e8] sm:$0xff]
        %v2328 = vld [vmem:[%s4 + $0x6f0] sm:$0xff]
        %v2329 = vld [vmem:[%s4 + $0x6f8] sm:$0xff]
        %v2330 = vld [vmem:[%s4 + $0x700] sm:$0xff]
        %v2331 = vld [vmem:[%s4 + $0x708] sm:$0xff]
        %v2332 = vld [vmem:[%s4 + $0x710] sm:$0xff]
        %v2333 = vld [vmem:[%s4 + $0x718] sm:$0xff]
        %v2334 = vld [vmem:[%s4 + $0x720] sm:$0xff]
        %v2335 = vld [vmem:[%s4 + $0x728] sm:$0xff]
        %v2336 = vld [vmem:[%s4 + $0x730] sm:$0xff]
        %v2337 = vld [vmem:[%s4 + $0x738] sm:$0xff]
        %v2338 = vld [vmem:[%s4 + $0x740] sm:$0xff]
        %v2339 = vld [vmem:[%s4 + $0x748] sm:$0xff]
        %v2340 = vld [vmem:[%s4 + $0x750] sm:$0xff]
        %v2341 = vld [vmem:[%s4 + $0x758] sm:$0xff]
        %v2342 = vld [vmem:[%s4 + $0x760] sm:$0xff]
        %v2343 = vld [vmem:[%s4 + $0x768] sm:$0xff]
        %v2344 = vld [vmem:[%s4 + $0x770] sm:$0xff]
        %v2345 = vld [vmem:[%s4 + $0x778] sm:$0xff]
        %v2346 = vld [vmem:[%s4 + $0x780] sm:$0xff]
        %v2347 = vld [vmem:[%s4 + $0x788] sm:$0xff]
        %v2348 = vld [vmem:[%s4 + $0x790] sm:$0xff]
        %v2349 = vld [vmem:[%s4 + $0x798] sm:$0xff]
        %v2350 = vld [vmem:[%s4 + $0x7a0] sm:$0xff]
        %v2351 = vld [vmem:[%s4 + $0x7a8] sm:$0xff]
        %v2352 = vld [vmem:[%s4 + $0x7b0] sm:$0xff]
        %v2353 = vld [vmem:[%s4 + $0x7b8] sm:$0xff]
        %v2354 = vld [vmem:[%s4 + $0x7c0] sm:$0xff]
        %v2355 = vld [vmem:[%s4 + $0x7c8] sm:$0xff]
        %v2356 = vld [vmem:[%s4 + $0x7d0] sm:$0xff]
        %v2357 = vld [vmem:[%s4 + $0x7d8] sm:$0xff]
        %v2358 = vld [vmem:[%s4 + $0x7e0] sm:$0xff]
        %v2359 = vld [vmem:[%s4 + $0x7e8] sm:$0xff]
        %v2360 = vld [vmem:[%s4 + $0x7f0] sm:$0xff]
        %v2361 = vld [vmem:[%s4 + $0x7f8] sm:$0xff]
        %v2362 = vld [vmem:[%s4 + $0x800] sm:$0xff]
        %v2363 = vld [vmem:[%s4 + $0x808] sm:$0xff]
        %v2364 = vld [vmem:[%s4 + $0x810] sm:$0xff]
        %v2365 = vld [vmem:[%s4 + $0x818] sm:$0xff]
        %v2366 = vld [vmem:[%s4 + $0x820] sm:$0xff]
        %v2367 = vld [vmem:[%s4 + $0x828] sm:$0xff]
        %v2368 = vld [vmem:[%s4 + $0x830] sm:$0xff]
        %v2369 = vld [vmem:[%s4 + $0x838] sm:$0xff]
        %v2370 = vld [vmem:[%s4 + $0x840] sm:$0xff]
        %v2371 = vld [vmem:[%s4 + $0x848] sm:$0xff]
        %v2372 = vld [vmem:[%s4 + $0x850] sm:$0xff]
        %v2373 = vld [vmem:[%s4 + $0x858] sm:$0xff]
        %v2374 = vld [vmem:[%s4 + $0x860] sm:$0xff]
        %v2375 = vld [vmem:[%s4 + $0x868] sm:$0xff]
        %v2376 = vld [vmem:[%s4 + $0x870] sm:$0xff]
        %v2377 = vld [vmem:[%s4 + $0x878] sm:$0xff]
        %v2378 = vld [vmem:[%s4 + $0x880] sm:$0xff]
        %v2379 = vld [vmem:[%s4 + $0x888] sm:$0xff]
        %v2380 = vld [vmem:[%s4 + $0x890] sm:$0xff]
        %v2381 = vld [vmem:[%s4 + $0x898] sm:$0xff]
        %v2382 = vld [vmem:[%s4 + $0x8a0] sm:$0xff]
        %v2383 = vld [vmem:[%s4 + $0x8a8] sm:$0xff]
        %v2384 = vld [vmem:[%s4 + $0x8b0] sm:$0xff]
        %v2385 = vld [vmem:[%s4 + $0x8b8] sm:$0xff]
        %v2386 = vld [vmem:[%s4 + $0x8c0] sm:$0xff]
        %v2387 = vld [vmem:[%s4 + $0x8c8] sm:$0xff]
        %v2388 = vld [vmem:[%s4 + $0x8d0] sm:$0xff]
        %v2389 = vld [vmem:[%s4 + $0x8d8] sm:$0xff]
        %v2390 = vld [vmem:[%s4 + $0x8e0] sm:$0xff]
        %v2391 = vld [vmem:[%s4 + $0x8e8] sm:$0xff]
        %v2392 = vld [vmem:[%s4 + $0x8f0] sm:$0xff]
        %v2393 = vld [vmem:[%s4 + $0x8f8] sm:$0xff]
        %v2394 = vld [vmem:[%s4 + $0x900] sm:$0xff]
        %v2395 = vld [vmem:[%s4 + $0x908] sm:$0xff]
        %v2396 = vld [vmem:[%s4 + $0x910] sm:$0xff]
        %v2397 = vld [vmem:[%s4 + $0x918] sm:$0xff]
        %v2398 = vld [vmem:[%s4 + $0x920] sm:$0xff]
        %v2399 = vld [vmem:[%s4 + $0x928] sm:$0xff]
        %v2400 = vld [vmem:[%s4 + $0x930] sm:$0xff]
        %v2401 = vld [vmem:[%s4 + $0x938] sm:$0xff]
        %v2402 = vld [vmem:[%s4 + $0x940] sm:$0xff]
        %v2403 = vld [vmem:[%s4 + $0x948] sm:$0xff]
        %v2404 = vld [vmem:[%s4 + $0x950] sm:$0xff]
        %v2405 = vld [vmem:[%s4 + $0x958] sm:$0xff]
        %v2406 = vld [vmem:[%s4 + $0x960] sm:$0xff]
        %v2407 = vld [vmem:[%s4 + $0x968] sm:$0xff]
        %v2408 = vld [vmem:[%s4 + $0x970] sm:$0xff]
        %v2409 = vld [vmem:[%s4 + $0x978] sm:$0xff]
        %v2410 = vld [vmem:[%s4 + $0x980] sm:$0xff]
        %v2411 = vld [vmem:[%s4 + $0x988] sm:$0xff]
        %v2412 = vld [vmem:[%s4 + $0x990] sm:$0xff]
        %v2413 = vld [vmem:[%s4 + $0x998] sm:$0xff]
        %v2414 = vld [vmem:[%s4 + $0x9a0] sm:$0xff]
        %v2415 = vld [vmem:[%s4 + $0x9a8] sm:$0xff]
        %v2416 = vld [vmem:[%s4 + $0x9b0] sm:$0xff]
        %v2417 = vld [vmem:[%s4 + $0x9b8] sm:$0xff]
        %v2418 = vld [vmem:[%s4 + $0x9c0] sm:$0xff]
        %v2419 = vld [vmem:[%s4 + $0x9c8] sm:$0xff]
        %v2420 = vld [vmem:[%s4 + $0x9d0] sm:$0xff]
        %v2421 = vld [vmem:[%s4 + $0x9d8] sm:$0xff]
        %v2422 = vld [vmem:[%s4 + $0x9e0] sm:$0xff]
        %v2423 = vld [vmem:[%s4 + $0x9e8] sm:$0xff]
        %v2424 = vld [vmem:[%s4 + $0x9f0] sm:$0xff]
        %v2425 = vld [vmem:[%s4 + $0x9f8] sm:$0xff]
        %v2426 = vld [vmem:[%s4 + $0xa00] sm:$0xff]
        %v2427 = vld [vmem:[%s4 + $0xa08] sm:$0xff]
        %v2428 = vld [vmem:[%s4 + $0xa10] sm:$0xff]
        %v2429 = vld [vmem:[%s4 + $0xa18] sm:$0xff]
        %v2430 = vld [vmem:[%s4 + $0xa20] sm:$0xff]
        %v2431 = vld [vmem:[%s4 + $0xa28] sm:$0xff]
        %v2432 = vld [vmem:[%s4 + $0xa30] sm:$0xff]
        %v2433 = vld [vmem:[%s4 + $0xa38] sm:$0xff]
        %v2434 = vld [vmem:[%s4 + $0xa40] sm:$0xff]
        %v2435 = vld [vmem:[%s4 + $0xa48] sm:$0xff]
        %v2436 = vld [vmem:[%s4 + $0xa50] sm:$0xff]
        %v2437 = vld [vmem:[%s4 + $0xa58] sm:$0xff]
        %v2438 = vld [vmem:[%s4 + $0xa60] sm:$0xff]
        %v2439 = vld [vmem:[%s4 + $0xa68] sm:$0xff]
        %v2440 = vld [vmem:[%s4 + $0xa70] sm:$0xff]
        %v2441 = vld [vmem:[%s4 + $0xa78] sm:$0xff]
        %v2442 = vld [vmem:[%s4 + $0xa80] sm:$0xff]
        %v2443 = vld [vmem:[%s4 + $0xa88] sm:$0xff]
        %v2444 = vld [vmem:[%s4 + $0xa90] sm:$0xff]
        %v2445 = vld [vmem:[%s4 + $0xa98] sm:$0xff]
        %v2446 = vld [vmem:[%s4 + $0xaa0] sm:$0xff]
        %v2447 = vld [vmem:[%s4 + $0xaa8] sm:$0xff]
        %v2448 = vld [vmem:[%s4 + $0xab0] sm:$0xff]
        %v2449 = vld [vmem:[%s4 + $0xab8] sm:$0xff]
        %v2450 = vld [vmem:[%s4 + $0xac0] sm:$0xff]
        %v2451 = vld [vmem:[%s4 + $0xac8] sm:$0xff]
        %v2452 = vld [vmem:[%s4 + $0xad0] sm:$0xff]
        %v2453 = vld [vmem:[%s4 + $0xad8] sm:$0xff]
        %v2454 = vld [vmem:[%s4 + $0xae0] sm:$0xff]
        %v2455 = vld [vmem:[%s4 + $0xae8] sm:$0xff]
        %v2456 = vld [vmem:[%s4 + $0xaf0] sm:$0xff]
        %v2457 = vld [vmem:[%s4 + $0xaf8] sm:$0xff]
        %v2458 = vld [vmem:[%s4 + $0xb00] sm:$0xff]
        %v2459 = vld [vmem:[%s4 + $0xb08] sm:$0xff]
        %v2460 = vld [vmem:[%s4 + $0xb10] sm:$0xff]
        %v2461 = vld [vmem:[%s4 + $0xb18] sm:$0xff]
        %v2462 = vld [vmem:[%s4 + $0xb20] sm:$0xff]
        %v2463 = vld [vmem:[%s4 + $0xb28] sm:$0xff]
        %v2464 = vld [vmem:[%s4 + $0xb30] sm:$0xff]
        %v2465 = vld [vmem:[%s4 + $0xb38] sm:$0xff]
        %v2466 = vld [vmem:[%s4 + $0xb40] sm:$0xff]
        %v2467 = vld [vmem:[%s4 + $0xb48] sm:$0xff]
        %v2468 = vld [vmem:[%s4 + $0xb50] sm:$0xff]
        %v2469 = vld [vmem:[%s4 + $0xb58] sm:$0xff]
        %v2470 = vld [vmem:[%s4 + $0xb60] sm:$0xff]
        %v2471 = vld [vmem:[%s4 + $0xb68] sm:$0xff]
        %v2472 = vld [vmem:[%s4 + $0xb70] sm:$0xff]
        %v2473 = vld [vmem:[%s4 + $0xb78] sm:$0xff]
        %v2474 = vld [vmem:[%s4 + $0xb80] sm:$0xff]
        %v2475 = vld [vmem:[%s4 + $0xb88] sm:$0xff]
        %v2476 = vld [vmem:[%s4 + $0xb90] sm:$0xff]
        %v2477 = vld [vmem:[%s4 + $0xb98] sm:$0xff]
        %v2478 = vld [vmem:[%s4 + $0xba0] sm:$0xff]
        %v2479 = vld [vmem:[%s4 + $0xba8] sm:$0xff]
        %v2480 = vld [vmem:[%s4 + $0xbb0] sm:$0xff]
        %v2481 = vld [vmem:[%s4 + $0xbb8] sm:$0xff]
        %v2482 = vld [vmem:[%s4 + $0xbc0] sm:$0xff]
        %v2483 = vld [vmem:[%s4 + $0xbc8] sm:$0xff]
        %v2484 = vld [vmem:[%s4 + $0xbd0] sm:$0xff]
        %v2485 = vld [vmem:[%s4 + $0xbd8] sm:$0xff]
        %v2486 = vld [vmem:[%s4 + $0xbe0] sm:$0xff]
        %v2487 = vld [vmem:[%s4 + $0xbe8] sm:$0xff]
        %v2488 = vld [vmem:[%s4 + $0xbf0] sm:$0xff]
        %v2489 = vld [vmem:[%s4 + $0xbf8] sm:$0xff]
        %v2490 = vld [vmem:[%s4 + $0xc00] sm:$0xff]
        %v2491 = vld [vmem:[%s4 + $0xc08] sm:$0xff]
        %v2492 = vld [vmem:[%s4 + $0xc10] sm:$0xff]
        %v2493 = vld [vmem:[%s4 + $0xc18] sm:$0xff]
        %v2494 = vld [vmem:[%s4 + $0xc20] sm:$0xff]
        %v2495 = vld [vmem:[%s4 + $0xc28] sm:$0xff]
        %v2496 = vld [vmem:[%s4 + $0xc30] sm:$0xff]
        %v2497 = vld [vmem:[%s4 + $0xc38] sm:$0xff]
        %v2498 = vld [vmem:[%s4 + $0xc40] sm:$0xff]
        %v2499 = vld [vmem:[%s4 + $0xc48] sm:$0xff]
        %v2500 = vld [vmem:[%s4 + $0xc50] sm:$0xff]
        %v2501 = vld [vmem:[%s4 + $0xc58] sm:$0xff]
        %v2502 = vld [vmem:[%s4 + $0xc60] sm:$0xff]
        %v2503 = vld [vmem:[%s4 + $0xc68] sm:$0xff]
        %v2504 = vld [vmem:[%s4 + $0xc70] sm:$0xff]
        %v2505 = vld [vmem:[%s4 + $0xc78] sm:$0xff]
        %v2506 = vld [vmem:[%s4 + $0xc80] sm:$0xff]
        %v2507 = vld [vmem:[%s4 + $0xc88] sm:$0xff]
        %v2508 = vld [vmem:[%s4 + $0xc90] sm:$0xff]
        %v2509 = vld [vmem:[%s4 + $0xc98] sm:$0xff]
        %v2510 = vld [vmem:[%s4 + $0xca0] sm:$0xff]
        %v2511 = vld [vmem:[%s4 + $0xca8] sm:$0xff]
        %v2512 = vld [vmem:[%s4 + $0xcb0] sm:$0xff]
        %v2513 = vld [vmem:[%s4 + $0xcb8] sm:$0xff]
        %v2514 = vld [vmem:[%s4 + $0xcc0] sm:$0xff]
        %v2515 = vld [vmem:[%s4 + $0xcc8] sm:$0xff]
        %v2516 = vld [vmem:[%s4 + $0xcd0] sm:$0xff]
        %v2517 = vld [vmem:[%s4 + $0xcd8] sm:$0xff]
        %v2518 = vld [vmem:[%s4 + $0xce0] sm:$0xff]
        %v2519 = vld [vmem:[%s4 + $0xce8] sm:$0xff]
        %v2520 = vld [vmem:[%s4 + $0xcf0] sm:$0xff]
        %v2521 = vld [vmem:[%s4 + $0xcf8] sm:$0xff]
        %v2522 = vld [vmem:[%s4 + $0xd00] sm:$0xff]
        %v2523 = vld [vmem:[%s4 + $0xd08] sm:$0xff]
        %v2524 = vld [vmem:[%s4 + $0xd10] sm:$0xff]
        %v2525 = vld [vmem:[%s4 + $0xd18] sm:$0xff]
        %v2526 = vld [vmem:[%s4 + $0xd20] sm:$0xff]
        %v2527 = vld [vmem:[%s4 + $0xd28] sm:$0xff]
        %v2528 = vld [vmem:[%s4 + $0xd30] sm:$0xff]
        %v2529 = vld [vmem:[%s4 + $0xd38] sm:$0xff]
        %v2530 = vld [vmem:[%s4 + $0xd40] sm:$0xff]
        %v2531 = vld [vmem:[%s4 + $0xd48] sm:$0xff]
        %v2532 = vld [vmem:[%s4 + $0xd50] sm:$0xff]
        %v2533 = vld [vmem:[%s4 + $0xd58] sm:$0xff]
        %v2534 = vld [vmem:[%s4 + $0xd60] sm:$0xff]
        %v2535 = vld [vmem:[%s4 + $0xd68] sm:$0xff]
        %v2536 = vld [vmem:[%s4 + $0xd70] sm:$0xff]
        %v2537 = vld [vmem:[%s4 + $0xd78] sm:$0xff]
        %v2538 = vld [vmem:[%s4 + $0xd80] sm:$0xff]
        %v2539 = vld [vmem:[%s4 + $0xd88] sm:$0xff]
        %v2540 = vld [vmem:[%s4 + $0xd90] sm:$0xff]
        %v2541 = vld [vmem:[%s4 + $0xd98] sm:$0xff]
        %v2542 = vld [vmem:[%s4 + $0xda0] sm:$0xff]
        %v2543 = vld [vmem:[%s4 + $0xda8] sm:$0xff]
        %v2544 = vld [vmem:[%s4 + $0xdb0] sm:$0xff]
        %v2545 = vld [vmem:[%s4 + $0xdb8] sm:$0xff]
        %v2546 = vld [vmem:[%s4 + $0xdc0] sm:$0xff]
        %v2547 = vld [vmem:[%s4 + $0xdc8] sm:$0xff]
        %v2548 = vld [vmem:[%s4 + $0xdd0] sm:$0xff]
        %v2549 = vld [vmem:[%s4 + $0xdd8] sm:$0xff]
        %v2550 = vld [vmem:[%s4 + $0xde0] sm:$0xff]
        %v2551 = vld [vmem:[%s4 + $0xde8] sm:$0xff]
        %v2552 = vld [vmem:[%s4 + $0xdf0] sm:$0xff]
        %v2553 = vld [vmem:[%s4 + $0xdf8] sm:$0xff]
        %v2554 = vld [vmem:[%s4 + $0xe00] sm:$0xff]
        %v2555 = vld [vmem:[%s4 + $0xe08] sm:$0xff]
        %v2556 = vld [vmem:[%s4 + $0xe10] sm:$0xff]
        %v2557 = vld [vmem:[%s4 + $0xe18] sm:$0xff]
        %v2558 = vld [vmem:[%s4 + $0xe20] sm:$0xff]
        %v2559 = vld [vmem:[%s4 + $0xe28] sm:$0xff]
        %v2560 = vld [vmem:[%s4 + $0xe30] sm:$0xff]
        %v2561 = vld [vmem:[%s4 + $0xe38] sm:$0xff]
        %v2562 = vld [vmem:[%s4 + $0xe40] sm:$0xff]
        %v2563 = vld [vmem:[%s4 + $0xe48] sm:$0xff]
        %v2564 = vld [vmem:[%s4 + $0xe50] sm:$0xff]
        %v2565 = vld [vmem:[%s4 + $0xe58] sm:$0xff]
        %v2566 = vld [vmem:[%s4 + $0xe60] sm:$0xff]
        %v2567 = vld [vmem:[%s4 + $0xe68] sm:$0xff]
        %v2568 = vld [vmem:[%s4 + $0xe70] sm:$0xff]
        %v2569 = vld [vmem:[%s4 + $0xe78] sm:$0xff]
        %v2570 = vld [vmem:[%s4 + $0xe80] sm:$0xff]
        %v2571 = vld [vmem:[%s4 + $0xe88] sm:$0xff]
        %v2572 = vld [vmem:[%s4 + $0xe90] sm:$0xff]
        %v2573 = vld [vmem:[%s4 + $0xe98] sm:$0xff]
        %v2574 = vld [vmem:[%s4 + $0xea0] sm:$0xff]
        %v2575 = vld [vmem:[%s4 + $0xea8] sm:$0xff]
        %v2576 = vld [vmem:[%s4 + $0xeb0] sm:$0xff]
        %v2577 = vld [vmem:[%s4 + $0xeb8] sm:$0xff]
        %v2578 = vld [vmem:[%s4 + $0xec0] sm:$0xff]
        %v2579 = vld [vmem:[%s4 + $0xec8] sm:$0xff]
        %v2580 = vld [vmem:[%s4 + $0xed0] sm:$0xff]
        %v2581 = vld [vmem:[%s4 + $0xed8] sm:$0xff]
        %v2582 = vld [vmem:[%s4 + $0xee0] sm:$0xff]
        %v2583 = vld [vmem:[%s4 + $0xee8] sm:$0xff]
        %v2584 = vld [vmem:[%s4 + $0xef0] sm:$0xff]
        %v2585 = vld [vmem:[%s4 + $0xef8] sm:$0xff]
        %v2586 = vld [vmem:[%s4 + $0xf00] sm:$0xff]
        %v2587 = vld [vmem:[%s4 + $0xf08] sm:$0xff]
        %v2588 = vld [vmem:[%s4 + $0xf10] sm:$0xff]
        %v2589 = vld [vmem:[%s4 + $0xf18] sm:$0xff]
        %v2590 = vld [vmem:[%s4 + $0xf20] sm:$0xff]
        %v2591 = vld [vmem:[%s4 + $0xf28] sm:$0xff]
        %v2592 = vld [vmem:[%s4 + $0xf30] sm:$0xff]
        %v2593 = vld [vmem:[%s4 + $0xf38] sm:$0xff]
        %v2594 = vld [vmem:[%s4 + $0xf40] sm:$0xff]
        %v2595 = vld [vmem:[%s4 + $0xf48] sm:$0xff]
        %v2596 = vld [vmem:[%s4 + $0xf50] sm:$0xff]
        %v2597 = vld [vmem:[%s4 + $0xf58] sm:$0xff]
        %v2598 = vld [vmem:[%s4 + $0xf60] sm:$0xff]
        %v2599 = vld [vmem:[%s4 + $0xf68] sm:$0xff]
        %v2600 = vld [vmem:[%s4 + $0xf70] sm:$0xff]
        %v2601 = vld [vmem:[%s4 + $0xf78] sm:$0xff]
        %v2602 = vld [vmem:[%s4 + $0xf80] sm:$0xff]
        %v2603 = vld [vmem:[%s4 + $0xf88] sm:$0xff]
        %v2604 = vld [vmem:[%s4 + $0xf90] sm:$0xff]
        %v2605 = vld [vmem:[%s4 + $0xf98] sm:$0xff]
        %v2606 = vld [vmem:[%s4 + $0xfa0] sm:$0xff]
        %v2607 = vld [vmem:[%s4 + $0xfa8] sm:$0xff]
        %v2608 = vld [vmem:[%s4 + $0xfb0] sm:$0xff]
        %v2609 = vld [vmem:[%s4 + $0xfb8] sm:$0xff]
        %v2610 = vld [vmem:[%s4 + $0xfc0] sm:$0xff]
        %v2611 = vld [vmem:[%s4 + $0xfc8] sm:$0xff]
        %v2612 = vld [vmem:[%s4 + $0xfd0] sm:$0xff]
        %v2613 = vld [vmem:[%s4 + $0xfd8] sm:$0xff]
        %v2614 = vld [vmem:[%s4 + $0xfe0] sm:$0xff]
        %v2615 = vld [vmem:[%s4 + $0xfe8] sm:$0xff]
        %v2616 = vld [vmem:[%s4 + $0xff0] sm:$0xff]
        %v2617 = vld [vmem:[%s4 + $0xff8] sm:$0xff]
        %v2618 = vld [vmem:[%s4 + $0x1000] sm:$0xff]
        %v2619 = vld [vmem:[%s4 + $0x1008] sm:$0xff]
        %v2620 = vld [vmem:[%s4 + $0x1010] sm:$0xff]
        %v2621 = vld [vmem:[%s4 + $0x1018] sm:$0xff]
        %v2622 = vld [vmem:[%s4 + $0x1020] sm:$0xff]
        %v2623 = vld [vmem:[%s4 + $0x1028] sm:$0xff]
        %v2624 = vld [vmem:[%s4 + $0x1030] sm:$0xff]
        %v2625 = vld [vmem:[%s4 + $0x1038] sm:$0xff]
        %v2626 = vld [vmem:[%s4 + $0x1040] sm:$0xff]
        %v2627 = vld [vmem:[%s4 + $0x1048] sm:$0xff]
        %v2628 = vld [vmem:[%s4 + $0x1050] sm:$0xff]
        %v2629 = vld [vmem:[%s4 + $0x1058] sm:$0xff]
        %v2630 = vld [vmem:[%s4 + $0x1060] sm:$0xff]
        %v2631 = vld [vmem:[%s4 + $0x1068] sm:$0xff]
        %v2632 = vld [vmem:[%s4 + $0x1070] sm:$0xff]
        %v2633 = vld [vmem:[%s4 + $0x1078] sm:$0xff]
        %v2634 = vld [vmem:[%s4 + $0x1080] sm:$0xff]
        %v2635 = vld [vmem:[%s4 + $0x1088] sm:$0xff]
        %v2636 = vld [vmem:[%s4 + $0x1090] sm:$0xff]
        %v2637 = vld [vmem:[%s4 + $0x1098] sm:$0xff]
        %v2638 = vld [vmem:[%s4 + $0x10a0] sm:$0xff]
        %v2639 = vld [vmem:[%s4 + $0x10a8] sm:$0xff]
        %v2640 = vld [vmem:[%s4 + $0x10b0] sm:$0xff]
        %v2641 = vld [vmem:[%s4 + $0x10b8] sm:$0xff]
        %v2642 = vld [vmem:[%s4 + $0x10c0] sm:$0xff]
        %v2643 = vld [vmem:[%s4 + $0x10c8] sm:$0xff]
        %v2644 = vld [vmem:[%s4 + $0x10d0] sm:$0xff]
        %v2645 = vld [vmem:[%s4 + $0x10d8] sm:$0xff]
        %v2646 = vld [vmem:[%s4 + $0x10e0] sm:$0xff]
        %v2647 = vld [vmem:[%s4 + $0x10e8] sm:$0xff]
        %v2648 = vld [vmem:[%s4 + $0x10f0] sm:$0xff]
        %v2649 = vld [vmem:[%s4 + $0x10f8] sm:$0xff]
        %v2650 = vld [vmem:[%s4 + $0x1100] sm:$0xff]
        %v2651 = vld [vmem:[%s4 + $0x1108] sm:$0xff]
        %v2652 = vld [vmem:[%s4 + $0x1110] sm:$0xff]
        %v2653 = vld [vmem:[%s4 + $0x1118] sm:$0xff]
        %v2654 = vld [vmem:[%s4 + $0x1120] sm:$0xff]
        %v2655 = vld [vmem:[%s4 + $0x1128] sm:$0xff]
        %v2656 = vld [vmem:[%s4 + $0x1130] sm:$0xff]
        %v2657 = vld [vmem:[%s4 + $0x1138] sm:$0xff]
        %v2658 = vld [vmem:[%s4 + $0x1140] sm:$0xff]
        %v2659 = vld [vmem:[%s4 + $0x1148] sm:$0xff]
        %v2660 = vld [vmem:[%s4 + $0x1150] sm:$0xff]
        %v2661 = vld [vmem:[%s4 + $0x1158] sm:$0xff]
        %v2662 = vld [vmem:[%s4 + $0x1160] sm:$0xff]
        %v2663 = vld [vmem:[%s4 + $0x1168] sm:$0xff]
        %v2664 = vld [vmem:[%s4 + $0x1170] sm:$0xff]
        %v2665 = vld [vmem:[%s4 + $0x1178] sm:$0xff]
        %v2666 = vld [vmem:[%s4 + $0x1180] sm:$0xff]
        %v2667 = vld [vmem:[%s4 + $0x1188] sm:$0xff]
        %v2668 = vld [vmem:[%s4 + $0x1190] sm:$0xff]
        %v2669 = vld [vmem:[%s4 + $0x1198] sm:$0xff]
        %v2670 = vld [vmem:[%s4 + $0x11a0] sm:$0xff]
        %v2671 = vld [vmem:[%s4 + $0x11a8] sm:$0xff]
        %v2672 = vld [vmem:[%s4 + $0x11b0] sm:$0xff]
        %v2673 = vld [vmem:[%s4 + $0x11b8] sm:$0xff]
        %v2674 = vld [vmem:[%s4 + $0x11c0] sm:$0xff]
        %v2675 = vld [vmem:[%s4 + $0x11c8] sm:$0xff]
        %v2676 = vld [vmem:[%s4 + $0x11d0] sm:$0xff]
        %v2677 = vld [vmem:[%s4 + $0x11d8] sm:$0xff]
        %v2678 = vld [vmem:[%s4 + $0x11e0] sm:$0xff]
        %v2679 = vld [vmem:[%s4 + $0x11e8] sm:$0xff]
        %v2680 = vld [vmem:[%s4 + $0x11f0] sm:$0xff]
        %v2681 = vld [vmem:[%s4 + $0x11f8] sm:$0xff]
        %v2682 = vld [vmem:[%s4 + $0x1200] sm:$0xff]
        %v2683 = vld [vmem:[%s4 + $0x1208] sm:$0xff]
        %v2684 = vld [vmem:[%s4 + $0x1210] sm:$0xff]
        %v2685 = vld [vmem:[%s4 + $0x1218] sm:$0xff]
        %v2686 = vld [vmem:[%s4 + $0x1220] sm:$0xff]
        %v2687 = vld [vmem:[%s4 + $0x1228] sm:$0xff]
        %v2688 = vld [vmem:[%s4 + $0x1230] sm:$0xff]
        %v2689 = vld [vmem:[%s4 + $0x1238] sm:$0xff]
        %v2690 = vld [vmem:[%s4 + $0x1240] sm:$0xff]
        %v2691 = vld [vmem:[%s4 + $0x1248] sm:$0xff]
        %v2692 = vld [vmem:[%s4 + $0x1250] sm:$0xff]
        %v2693 = vld [vmem:[%s4 + $0x1258] sm:$0xff]
        %v2694 = vld [vmem:[%s4 + $0x1260] sm:$0xff]
        %v2695 = vld [vmem:[%s4 + $0x1268] sm:$0xff]
        %v2696 = vld [vmem:[%s4 + $0x1270] sm:$0xff]
        %v2697 = vld [vmem:[%s4 + $0x1278] sm:$0xff]
        %v2698 = vld [vmem:[%s4 + $0x1280] sm:$0xff]
        %v2699 = vld [vmem:[%s4 + $0x1288] sm:$0xff]
        %v2700 = vld [vmem:[%s4 + $0x1290] sm:$0xff]
        %v2701 = vld [vmem:[%s4 + $0x1298] sm:$0xff]
        %v2702 = vld [vmem:[%s4 + $0x12a0] sm:$0xff]
        %v2703 = vld [vmem:[%s4 + $0x12a8] sm:$0xff]
        %v2704 = vld [vmem:[%s4 + $0x12b0] sm:$0xff]
        %v2705 = vld [vmem:[%s4 + $0x12b8] sm:$0xff]
        %v2706 = vld [vmem:[%s4 + $0x12c0] sm:$0xff]
        %v2707 = vld [vmem:[%s4 + $0x12c8] sm:$0xff]
        %v2708 = vld [vmem:[%s4 + $0x12d0] sm:$0xff]
        %v2709 = vld [vmem:[%s4 + $0x12d8] sm:$0xff]
        %v2710 = vld [vmem:[%s4 + $0x12e0] sm:$0xff]
        %v2711 = vld [vmem:[%s4 + $0x12e8] sm:$0xff]
        %v2712 = vld [vmem:[%s4 + $0x12f0] sm:$0xff]
        %v2713 = vld [vmem:[%s4 + $0x12f8] sm:$0xff]
        %v2714 = vld [vmem:[%s4 + $0x1300] sm:$0xff]
        %v2715 = vld [vmem:[%s4 + $0x1308] sm:$0xff]
        %v2716 = vld [vmem:[%s4 + $0x1310] sm:$0xff]
        %v2717 = vld [vmem:[%s4 + $0x1318] sm:$0xff]
        %v2718 = vld [vmem:[%s4 + $0x1320] sm:$0xff]
        %v2719 = vld [vmem:[%s4 + $0x1328] sm:$0xff]
        %v2720 = vld [vmem:[%s4 + $0x1330] sm:$0xff]
        %v2721 = vld [vmem:[%s4 + $0x1338] sm:$0xff]
        %v2722 = vld [vmem:[%s4 + $0x1340] sm:$0xff]
        %v2723 = vld [vmem:[%s4 + $0x1348] sm:$0xff]
        %v2724 = vld [vmem:[%s4 + $0x1350] sm:$0xff]
        %v2725 = vld [vmem:[%s4 + $0x1358] sm:$0xff]
        %v2726 = vld [vmem:[%s4 + $0x1360] sm:$0xff]
        %v2727 = vld [vmem:[%s4 + $0x1368] sm:$0xff]
        %v2728 = vld [vmem:[%s4 + $0x1370] sm:$0xff]
        %v2729 = vld [vmem:[%s4 + $0x1378] sm:$0xff]
        %v2730 = vld [vmem:[%s4 + $0x1380] sm:$0xff]
        %v2731 = vld [vmem:[%s4 + $0x1388] sm:$0xff]
        %v2732 = vld [vmem:[%s4 + $0x1390] sm:$0xff]
        %v2733 = vld [vmem:[%s4 + $0x1398] sm:$0xff]
        %v2734 = vld [vmem:[%s4 + $0x13a0] sm:$0xff]
        %v2735 = vld [vmem:[%s4 + $0x13a8] sm:$0xff]
        %v2736 = vld [vmem:[%s4 + $0x13b0] sm:$0xff]
        %v2737 = vld [vmem:[%s4 + $0x13b8] sm:$0xff]
        %v2738 = vld [vmem:[%s4 + $0x13c0] sm:$0xff]
        %v2739 = vld [vmem:[%s4 + $0x13c8] sm:$0xff]
        %v2740 = vld [vmem:[%s4 + $0x13d0] sm:$0xff]
        %v2741 = vld [vmem:[%s4 + $0x13d8] sm:$0xff]
        %v2742 = vld [vmem:[%s4 + $0x13e0] sm:$0xff]
        %v2743 = vld [vmem:[%s4 + $0x13e8] sm:$0xff]
        %v2744 = vld [vmem:[%s4 + $0x13f0] sm:$0xff]
        %v2745 = vld [vmem:[%s4 + $0x13f8] sm:$0xff]
        %v2746 = vld [vmem:[%s4 + $0x1400] sm:$0xff]
        %v2747 = vld [vmem:[%s4 + $0x1408] sm:$0xff]
        %v2748 = vld [vmem:[%s4 + $0x1410] sm:$0xff]
        %v2749 = vld [vmem:[%s4 + $0x1418] sm:$0xff]
        %v2750 = vld [vmem:[%s4 + $0x1420] sm:$0xff]
        %v2751 = vld [vmem:[%s4 + $0x1428] sm:$0xff]
        %v2752 = vld [vmem:[%s4 + $0x1430] sm:$0xff]
        %v2753 = vld [vmem:[%s4 + $0x1438] sm:$0xff]
        %v2754 = vld [vmem:[%s4 + $0x1440] sm:$0xff]
        %v2755 = vld [vmem:[%s4 + $0x1448] sm:$0xff]
        %v2756 = vld [vmem:[%s4 + $0x1450] sm:$0xff]
        %v2757 = vld [vmem:[%s4 + $0x1458] sm:$0xff]
        %v2758 = vld [vmem:[%s4 + $0x1460] sm:$0xff]
        %v2759 = vld [vmem:[%s4 + $0x1468] sm:$0xff]
        %v2760 = vld [vmem:[%s4 + $0x1470] sm:$0xff]
        %v2761 = vld [vmem:[%s4 + $0x1478] sm:$0xff]
        %v2762 = vld [vmem:[%s4 + $0x1480] sm:$0xff]
        %v2763 = vld [vmem:[%s4 + $0x1488] sm:$0xff]
        %v2764 = vld [vmem:[%s4 + $0x1490] sm:$0xff]
        %v2765 = vld [vmem:[%s4 + $0x1498] sm:$0xff]
        %v2766 = vld [vmem:[%s4 + $0x14a0] sm:$0xff]
        %v2767 = vld [vmem:[%s4 + $0x14a8] sm:$0xff]
        %v2768 = vld [vmem:[%s4 + $0x14b0] sm:$0xff]
        %v2769 = vld [vmem:[%s4 + $0x14b8] sm:$0xff]
        %v2770 = vld [vmem:[%s4 + $0x14c0] sm:$0xff]
        %v2771 = vld [vmem:[%s4 + $0x14c8] sm:$0xff]
        %v2772 = vld [vmem:[%s4 + $0x14d0] sm:$0xff]
        %v2773 = vld [vmem:[%s4 + $0x14d8] sm:$0xff]
        %v2774 = vld [vmem:[%s4 + $0x14e0] sm:$0xff]
        %v2775 = vld [vmem:[%s4 + $0x14e8] sm:$0xff]
        %v2776 = vld [vmem:[%s4 + $0x14f0] sm:$0xff]
        %v2777 = vld [vmem:[%s4 + $0x14f8] sm:$0xff]
        %v2778 = vld [vmem:[%s4 + $0x1500] sm:$0xff]
        %v2779 = vld [vmem:[%s4 + $0x1508] sm:$0xff]
        %v2780 = vld [vmem:[%s4 + $0x1510] sm:$0xff]
        %v2781 = vld [vmem:[%s4 + $0x1518] sm:$0xff]
        %v2782 = vld [vmem:[%s4 + $0x1520] sm:$0xff]
        %v2783 = vld [vmem:[%s4 + $0x1528] sm:$0xff]
        %v2784 = vld [vmem:[%s4 + $0x1530] sm:$0xff]
        %v2785 = vld [vmem:[%s4 + $0x1538] sm:$0xff]
        %v2786 = vld [vmem:[%s4 + $0x1540] sm:$0xff]
        %v2787 = vld [vmem:[%s4 + $0x1548] sm:$0xff]
        %v2788 = vld [vmem:[%s4 + $0x1550] sm:$0xff]
        %v2789 = vld [vmem:[%s4 + $0x1558] sm:$0xff]
        %v2790 = vld [vmem:[%s4 + $0x1560] sm:$0xff]
        %v2791 = vld [vmem:[%s4 + $0x1568] sm:$0xff]
        %v2792 = vld [vmem:[%s4 + $0x1570] sm:$0xff]
        %v2793 = vld [vmem:[%s4 + $0x1578] sm:$0xff]
        %v2794 = vld [vmem:[%s4 + $0x1580] sm:$0xff]
        %v2795 = vld [vmem:[%s4 + $0x1588] sm:$0xff]
        %v2796 = vld [vmem:[%s4 + $0x1590] sm:$0xff]
        %v2797 = vld [vmem:[%s4 + $0x1598] sm:$0xff]
        %v2798 = vld [vmem:[%s4 + $0x15a0] sm:$0xff]
        %v2799 = vld [vmem:[%s4 + $0x15a8] sm:$0xff]
        %v2800 = vld [vmem:[%s4 + $0x15b0] sm:$0xff]
        %v2801 = vld [vmem:[%s4 + $0x15b8] sm:$0xff]
        %v2802 = vld [vmem:[%s4 + $0x15c0] sm:$0xff]
        %v2803 = vld [vmem:[%s4 + $0x15c8] sm:$0xff]
        %v2804 = vld [vmem:[%s4 + $0x15d0] sm:$0xff]
        %v2805 = vld [vmem:[%s4 + $0x15d8] sm:$0xff]
        %v2806 = vld [vmem:[%s4 + $0x15e0] sm:$0xff]
        %v2807 = vld [vmem:[%s4 + $0x15e8] sm:$0xff]
        %v2808 = vld [vmem:[%s4 + $0x15f0] sm:$0xff]
        %v2809 = vld [vmem:[%s4 + $0x15f8] sm:$0xff]
        %v2810 = vld [vmem:[%s4 + $0x1600] sm:$0xff]
        %v2811 = vld [vmem:[%s4 + $0x1608] sm:$0xff]
        %v2812 = vld [vmem:[%s4 + $0x1610] sm:$0xff]
        %v2813 = vld [vmem:[%s4 + $0x1618] sm:$0xff]
        %v2814 = vld [vmem:[%s4 + $0x1620] sm:$0xff]
        %v2815 = vld [vmem:[%s4 + $0x1628] sm:$0xff]
        %v2816 = vld [vmem:[%s4 + $0x1630] sm:$0xff]
        %v2817 = vld [vmem:[%s4 + $0x1638] sm:$0xff]
        %v2818 = vld [vmem:[%s4 + $0x1640] sm:$0xff]
        %v2819 = vld [vmem:[%s4 + $0x1648] sm:$0xff]
        %v2820 = vld [vmem:[%s4 + $0x1650] sm:$0xff]
        %v2821 = vld [vmem:[%s4 + $0x1658] sm:$0xff]
        %v2822 = vld [vmem:[%s4 + $0x1660] sm:$0xff]
        %v2823 = vld [vmem:[%s4 + $0x1668] sm:$0xff]
        %v2824 = vld [vmem:[%s4 + $0x1670] sm:$0xff]
        %v2825 = vld [vmem:[%s4 + $0x1678] sm:$0xff]
        %v2826 = vld [vmem:[%s4 + $0x1680] sm:$0xff]
        %v2827 = vld [vmem:[%s4 + $0x1688] sm:$0xff]
        %v2828 = vld [vmem:[%s4 + $0x1690] sm:$0xff]
        %v2829 = vld [vmem:[%s4 + $0x1698] sm:$0xff]
        %v2830 = vld [vmem:[%s4 + $0x16a0] sm:$0xff]
        %v2831 = vld [vmem:[%s4 + $0x16a8] sm:$0xff]
        %v2832 = vld [vmem:[%s4 + $0x16b0] sm:$0xff]
        %v2833 = vld [vmem:[%s4 + $0x16b8] sm:$0xff]
        %v2834 = vld [vmem:[%s4 + $0x16c0] sm:$0xff]
        %v2835 = vld [vmem:[%s4 + $0x16c8] sm:$0xff]
        %v2836 = vld [vmem:[%s4 + $0x16d0] sm:$0xff]
        %v2837 = vld [vmem:[%s4 + $0x16d8] sm:$0xff]
        %v2838 = vld [vmem:[%s4 + $0x16e0] sm:$0xff]
        %v2839 = vld [vmem:[%s4 + $0x16e8] sm:$0xff]
        %v2840 = vld [vmem:[%s4 + $0x16f0] sm:$0xff]
        %v2841 = vld [vmem:[%s4 + $0x16f8] sm:$0xff]
        %v2842 = vld [vmem:[%s4 + $0x1700] sm:$0xff]
        %v2843 = vld [vmem:[%s4 + $0x1708] sm:$0xff]
        %v2844 = vld [vmem:[%s4 + $0x1710] sm:$0xff]
        %v2845 = vld [vmem:[%s4 + $0x1718] sm:$0xff]
        %v2846 = vld [vmem:[%s4 + $0x1720] sm:$0xff]
        %v2847 = vld [vmem:[%s4 + $0x1728] sm:$0xff]
        %v2848 = vld [vmem:[%s4 + $0x1730] sm:$0xff]
        %v2849 = vld [vmem:[%s4 + $0x1738] sm:$0xff]
        %v2850 = vld [vmem:[%s4 + $0x1740] sm:$0xff]
        %v2851 = vld [vmem:[%s4 + $0x1748] sm:$0xff]
        %v2852 = vld [vmem:[%s4 + $0x1750] sm:$0xff]
        %v2853 = vld [vmem:[%s4 + $0x1758] sm:$0xff]
        %v2854 = vld [vmem:[%s4 + $0x1760] sm:$0xff]
        %v2855 = vld [vmem:[%s4 + $0x1768] sm:$0xff]
        %v2856 = vld [vmem:[%s4 + $0x1770] sm:$0xff]
        %v2857 = vld [vmem:[%s4 + $0x1778] sm:$0xff]
        %v2858 = vld [vmem:[%s4 + $0x1780] sm:$0xff]
        %v2859 = vld [vmem:[%s4 + $0x1788] sm:$0xff]
        %v2860 = vld [vmem:[%s4 + $0x1790] sm:$0xff]
        %v2861 = vld [vmem:[%s4 + $0x1798] sm:$0xff]
        %v2862 = vld [vmem:[%s4 + $0x17a0] sm:$0xff]
        %v2863 = vld [vmem:[%s4 + $0x17a8] sm:$0xff]
        %v2864 = vld [vmem:[%s4 + $0x17b0] sm:$0xff]
        %v2865 = vld [vmem:[%s4 + $0x17b8] sm:$0xff]
        %v2866 = vld [vmem:[%s4 + $0x17c0] sm:$0xff]
        %v2867 = vld [vmem:[%s4 + $0x17c8] sm:$0xff]
        %v2868 = vld [vmem:[%s4 + $0x17d0] sm:$0xff]
        %v2869 = vld [vmem:[%s4 + $0x17d8] sm:$0xff]
        %v2870 = vld [vmem:[%s4 + $0x17e0] sm:$0xff]
        %v2871 = vld [vmem:[%s4 + $0x17e8] sm:$0xff]
        %v2872 = vld [vmem:[%s4 + $0x17f0] sm:$0xff]
        %v2873 = vld [vmem:[%s4 + $0x17f8] sm:$0xff]
        %v2874 = vld [vmem:[%s4 + $0x1800] sm:$0xff]
        %v2875 = vld [vmem:[%s4 + $0x1808] sm:$0xff]
        %v2876 = vld [vmem:[%s4 + $0x1810] sm:$0xff]
        %v2877 = vld [vmem:[%s4 + $0x1818] sm:$0xff]
        %v2878 = vld [vmem:[%s4 + $0x1820] sm:$0xff]
        %v2879 = vld [vmem:[%s4 + $0x1828] sm:$0xff]
        %v2880 = vld [vmem:[%s4 + $0x1830] sm:$0xff]
        %v2881 = vld [vmem:[%s4 + $0x1838] sm:$0xff]
        %v2882 = vld [vmem:[%s4 + $0x1840] sm:$0xff]
        %v2883 = vld [vmem:[%s4 + $0x1848] sm:$0xff]
        %v2884 = vld [vmem:[%s4 + $0x1850] sm:$0xff]
        %v2885 = vld [vmem:[%s4 + $0x1858] sm:$0xff]
        %v2886 = vld [vmem:[%s4 + $0x1860] sm:$0xff]
        %v2887 = vld [vmem:[%s4 + $0x1868] sm:$0xff]
        %v2888 = vld [vmem:[%s4 + $0x1870] sm:$0xff]
        %v2889 = vld [vmem:[%s4 + $0x1878] sm:$0xff]
        %v2890 = vld [vmem:[%s4 + $0x1880] sm:$0xff]
        %v2891 = vld [vmem:[%s4 + $0x1888] sm:$0xff]
        %v2892 = vld [vmem:[%s4 + $0x1890] sm:$0xff]
        %v2893 = vld [vmem:[%s4 + $0x1898] sm:$0xff]
        %v2894 = vld [vmem:[%s4 + $0x18a0] sm:$0xff]
        %v2895 = vld [vmem:[%s4 + $0x18a8] sm:$0xff]
        %v2896 = vld [vmem:[%s4 + $0x18b0] sm:$0xff]
        %v2897 = vld [vmem:[%s4 + $0x18b8] sm:$0xff]
        %v2898 = vld [vmem:[%s4 + $0x18c0] sm:$0xff]
        %v2899 = vld [vmem:[%s4 + $0x18c8] sm:$0xff]
        %v2900 = vld [vmem:[%s4 + $0x18d0] sm:$0xff]
        %v2901 = vld [vmem:[%s4 + $0x18d8] sm:$0xff]
        %v2902 = vld [vmem:[%s4 + $0x18e0] sm:$0xff]
        %v2903 = vld [vmem:[%s4 + $0x18e8] sm:$0xff]
        %v2904 = vld [vmem:[%s4 + $0x18f0] sm:$0xff]
        %v2905 = vld [vmem:[%s4 + $0x18f8] sm:$0xff]
        %v2906 = vld [vmem:[%s4 + $0x1900] sm:$0xff]
        %v2907 = vld [vmem:[%s4 + $0x1908] sm:$0xff]
        %v2908 = vld [vmem:[%s4 + $0x1910] sm:$0xff]
        %v2909 = vld [vmem:[%s4 + $0x1918] sm:$0xff]
        %v2910 = vld [vmem:[%s4 + $0x1920] sm:$0xff]
        %v2911 = vld [vmem:[%s4 + $0x1928] sm:$0xff]
        %v2912 = vld [vmem:[%s4 + $0x1930] sm:$0xff]
        %v2913 = vld [vmem:[%s4 + $0x1938] sm:$0xff]
        %v2914 = vld [vmem:[%s4 + $0x1940] sm:$0xff]
        %v2915 = vld [vmem:[%s4 + $0x1948] sm:$0xff]
        %v2916 = vld [vmem:[%s4 + $0x1950] sm:$0xff]
        %v2917 = vld [vmem:[%s4 + $0x1958] sm:$0xff]
        %v2918 = vld [vmem:[%s4 + $0x1960] sm:$0xff]
        %v2919 = vld [vmem:[%s4 + $0x1968] sm:$0xff]
        %v2920 = vld [vmem:[%s4 + $0x1970] sm:$0xff]
        %v2921 = vld [vmem:[%s4 + $0x1978] sm:$0xff]
        %v2922 = vld [vmem:[%s4 + $0x1980] sm:$0xff]
        %v2923 = vld [vmem:[%s4 + $0x1988] sm:$0xff]
        %v2924 = vld [vmem:[%s4 + $0x1990] sm:$0xff]
        %v2925 = vld [vmem:[%s4 + $0x1998] sm:$0xff]
        %v2926 = vld [vmem:[%s4 + $0x19a0] sm:$0xff]
        %v2927 = vld [vmem:[%s4 + $0x19a8] sm:$0xff]
        %v2928 = vld [vmem:[%s4 + $0x19b0] sm:$0xff]
        %v2929 = vld [vmem:[%s4 + $0x19b8] sm:$0xff]
        %v2930 = vld [vmem:[%s4 + $0x19c0] sm:$0xff]
        %v2931 = vld [vmem:[%s4 + $0x19c8] sm:$0xff]
        %v2932 = vld [vmem:[%s4 + $0x19d0] sm:$0xff]
        %v2933 = vld [vmem:[%s4 + $0x19d8] sm:$0xff]
        %v2934 = vld [vmem:[%s4 + $0x19e0] sm:$0xff]
        %v2935 = vld [vmem:[%s4 + $0x19e8] sm:$0xff]
        %v2936 = vld [vmem:[%s4 + $0x19f0] sm:$0xff]
        %v2937 = vld [vmem:[%s4 + $0x19f8] sm:$0xff]
        %v2938 = vld [vmem:[%s4 + $0x1a00] sm:$0xff]
        %v2939 = vld [vmem:[%s4 + $0x1a08] sm:$0xff]
        %v2940 = vld [vmem:[%s4 + $0x1a10] sm:$0xff]
        %v2941 = vld [vmem:[%s4 + $0x1a18] sm:$0xff]
        %v2942 = vld [vmem:[%s4 + $0x1a20] sm:$0xff]
        %v2943 = vld [vmem:[%s4 + $0x1a28] sm:$0xff]
        %v2944 = vld [vmem:[%s4 + $0x1a30] sm:$0xff]
        %v2945 = vld [vmem:[%s4 + $0x1a38] sm:$0xff]
        %v2946 = vld [vmem:[%s4 + $0x1a40] sm:$0xff]
        %v2947 = vld [vmem:[%s4 + $0x1a48] sm:$0xff]
        %v2948 = vld [vmem:[%s4 + $0x1a50] sm:$0xff]
        %v2949 = vld [vmem:[%s4 + $0x1a58] sm:$0xff]
        %v2950 = vld [vmem:[%s4 + $0x1a60] sm:$0xff]
        %v2951 = vld [vmem:[%s4 + $0x1a68] sm:$0xff]
        %v2952 = vld [vmem:[%s4 + $0x1a70] sm:$0xff]
        %v2953 = vld [vmem:[%s4 + $0x1a78] sm:$0xff]
        %v2954 = vld [vmem:[%s4 + $0x1a80] sm:$0xff]
        %v2955 = vld [vmem:[%s4 + $0x1a88] sm:$0xff]
        %v2956 = vld [vmem:[%s4 + $0x1a90] sm:$0xff]
        %v2957 = vld [vmem:[%s4 + $0x1a98] sm:$0xff]
        %v2958 = vld [vmem:[%s4 + $0x1aa0] sm:$0xff]
        %v2959 = vld [vmem:[%s4 + $0x1aa8] sm:$0xff]
        %v2960 = vld [vmem:[%s4 + $0x1ab0] sm:$0xff]
        %v2961 = vld [vmem:[%s4 + $0x1ab8] sm:$0xff]
        %v2962 = vld [vmem:[%s4 + $0x1ac0] sm:$0xff]
        %v2963 = vld [vmem:[%s4 + $0x1ac8] sm:$0xff]
        %v2964 = vld [vmem:[%s4 + $0x1ad0] sm:$0xff]
        %v2965 = vld [vmem:[%s4 + $0x1ad8] sm:$0xff]
        %v2966 = vld [vmem:[%s4 + $0x1ae0] sm:$0xff]
        %v2967 = vld [vmem:[%s4 + $0x1ae8] sm:$0xff]
        %v2968 = vld [vmem:[%s4 + $0x1af0] sm:$0xff]
        %v2969 = vld [vmem:[%s4 + $0x1af8] sm:$0xff]
        %v2970 = vld [vmem:[%s4 + $0x1b00] sm:$0xff]
        %v2971 = vld [vmem:[%s4 + $0x1b08] sm:$0xff]
        %v2972 = vld [vmem:[%s4 + $0x1b10] sm:$0xff]
        %v2973 = vld [vmem:[%s4 + $0x1b18] sm:$0xff]
        %v2974 = vld [vmem:[%s4 + $0x1b20] sm:$0xff]
        %v2975 = vld [vmem:[%s4 + $0x1b28] sm:$0xff]
        %v2976 = vld [vmem:[%s4 + $0x1b30] sm:$0xff]
        %v2977 = vld [vmem:[%s4 + $0x1b38] sm:$0xff]
        %v2978 = vld [vmem:[%s4 + $0x1b40] sm:$0xff]
        %v2979 = vld [vmem:[%s4 + $0x1b48] sm:$0xff]
        %v2980 = vld [vmem:[%s4 + $0x1b50] sm:$0xff]
        %v2981 = vld [vmem:[%s4 + $0x1b58] sm:$0xff]
        %v2982 = vld [vmem:[%s4 + $0x1b60] sm:$0xff]
        %v2983 = vld [vmem:[%s4 + $0x1b68] sm:$0xff]
        %v2984 = vld [vmem:[%s4 + $0x1b70] sm:$0xff]
        %v2985 = vld [vmem:[%s4 + $0x1b78] sm:$0xff]
        %v2986 = vld [vmem:[%s4 + $0x1b80] sm:$0xff]
        %v2987 = vld [vmem:[%s4 + $0x1b88] sm:$0xff]
        %v2988 = vld [vmem:[%s4 + $0x1b90] sm:$0xff]
        %v2989 = vld [vmem:[%s4 + $0x1b98] sm:$0xff]
        %v2990 = vld [vmem:[%s4 + $0x1ba0] sm:$0xff]
        %v2991 = vld [vmem:[%s4 + $0x1ba8] sm:$0xff]
        %v2992 = vld [vmem:[%s4 + $0x1bb0] sm:$0xff]
        %v2993 = vld [vmem:[%s4 + $0x1bb8] sm:$0xff]
        %v2994 = vld [vmem:[%s4 + $0x1bc0] sm:$0xff]
        %v2995 = vld [vmem:[%s4 + $0x1bc8] sm:$0xff]
        %v2996 = vld [vmem:[%s4 + $0x1bd0] sm:$0xff]
        %v2997 = vld [vmem:[%s4 + $0x1bd8] sm:$0xff]
        %v2998 = vld [vmem:[%s4 + $0x1be0] sm:$0xff]
        %v2999 = vld [vmem:[%s4 + $0x1be8] sm:$0xff]
        %v3000 = vld [vmem:[%s4 + $0x1bf0] sm:$0xff]
        %v3001 = vld [vmem:[%s4 + $0x1bf8] sm:$0xff]
        %v3002 = vld [vmem:[%s4 + $0x1c00] sm:$0xff]
        %v3003 = vld [vmem:[%s4 + $0x1c08] sm:$0xff]
        %v3004 = vld [vmem:[%s4 + $0x1c10] sm:$0xff]
        %v3005 = vld [vmem:[%s4 + $0x1c18] sm:$0xff]
        %v3006 = vld [vmem:[%s4 + $0x1c20] sm:$0xff]
        %v3007 = vld [vmem:[%s4 + $0x1c28] sm:$0xff]
        %v3008 = vld [vmem:[%s4 + $0x1c30] sm:$0xff]
        %v3009 = vld [vmem:[%s4 + $0x1c38] sm:$0xff]
        %v3010 = vld [vmem:[%s4 + $0x1c40] sm:$0xff]
        %v3011 = vld [vmem:[%s4 + $0x1c48] sm:$0xff]
        %v3012 = vld [vmem:[%s4 + $0x1c50] sm:$0xff]
        %v3013 = vld [vmem:[%s4 + $0x1c58] sm:$0xff]
        %v3014 = vld [vmem:[%s4 + $0x1c60] sm:$0xff]
        %v3015 = vld [vmem:[%s4 + $0x1c68] sm:$0xff]
        %v3016 = vld [vmem:[%s4 + $0x1c70] sm:$0xff]
        %v3017 = vld [vmem:[%s4 + $0x1c78] sm:$0xff]
        %v3018 = vld [vmem:[%s4 + $0x1c80] sm:$0xff]
        %v3019 = vld [vmem:[%s4 + $0x1c88] sm:$0xff]
        %v3020 = vld [vmem:[%s4 + $0x1c90] sm:$0xff]
        %v3021 = vld [vmem:[%s4 + $0x1c98] sm:$0xff]
        %v3022 = vld [vmem:[%s4 + $0x1ca0] sm:$0xff]
        %v3023 = vld [vmem:[%s4 + $0x1ca8] sm:$0xff]
        %v3024 = vld [vmem:[%s4 + $0x1cb0] sm:$0xff]
        %v3025 = vld [vmem:[%s4 + $0x1cb8] sm:$0xff]
        %v3026 = vld [vmem:[%s4 + $0x1cc0] sm:$0xff]
        %v3027 = vld [vmem:[%s4 + $0x1cc8] sm:$0xff]
        %v3028 = vld [vmem:[%s4 + $0x1cd0] sm:$0xff]
        %v3029 = vld [vmem:[%s4 + $0x1cd8] sm:$0xff]
        %v3030 = vld [vmem:[%s4 + $0x1ce0] sm:$0xff]
        %v3031 = vld [vmem:[%s4 + $0x1ce8] sm:$0xff]
        %v3032 = vld [vmem:[%s4 + $0x1cf0] sm:$0xff]
        %v3033 = vld [vmem:[%s4 + $0x1cf8] sm:$0xff]
        %v3034 = vld [vmem:[%s4 + $0x1d00] sm:$0xff]
        %v3035 = vld [vmem:[%s4 + $0x1d08] sm:$0xff]
        %v3036 = vld [vmem:[%s4 + $0x1d10] sm:$0xff]
        %v3037 = vld [vmem:[%s4 + $0x1d18] sm:$0xff]
        %v3038 = vld [vmem:[%s4 + $0x1d20] sm:$0xff]
        %v3039 = vld [vmem:[%s4 + $0x1d28] sm:$0xff]
        %v3040 = vld [vmem:[%s4 + $0x1d30] sm:$0xff]
        %v3041 = vld [vmem:[%s4 + $0x1d38] sm:$0xff]
        %v3042 = vld [vmem:[%s4 + $0x1d40] sm:$0xff]
        %v3043 = vld [vmem:[%s4 + $0x1d48] sm:$0xff]
        %v3044 = vld [vmem:[%s4 + $0x1d50] sm:$0xff]
        %v3045 = vld [vmem:[%s4 + $0x1d58] sm:$0xff]
        %v3046 = vld [vmem:[%s4 + $0x1d60] sm:$0xff]
        %v3047 = vld [vmem:[%s4 + $0x1d68] sm:$0xff]
        %v3048 = vld [vmem:[%s4 + $0x1d70] sm:$0xff]
        %v3049 = vld [vmem:[%s4 + $0x1d78] sm:$0xff]
        %v3050 = vld [vmem:[%s4 + $0x1d80] sm:$0xff]
        %v3051 = vld [vmem:[%s4 + $0x1d88] sm:$0xff]
        %v3052 = vld [vmem:[%s4 + $0x1d90] sm:$0xff]
        %v3053 = vld [vmem:[%s4 + $0x1d98] sm:$0xff]
        %v3054 = vld [vmem:[%s4 + $0x1da0] sm:$0xff]
        %v3055 = vld [vmem:[%s4 + $0x1da8] sm:$0xff]
        %v3056 = vld [vmem:[%s4 + $0x1db0] sm:$0xff]
        %v3057 = vld [vmem:[%s4 + $0x1db8] sm:$0xff]
        %v3058 = vld [vmem:[%s4 + $0x1dc0] sm:$0xff]
        %v3059 = vld [vmem:[%s4 + $0x1dc8] sm:$0xff]
        %v3060 = vld [vmem:[%s4 + $0x1dd0] sm:$0xff]
        %v3061 = vld [vmem:[%s4 + $0x1dd8] sm:$0xff]
        %v3062 = vld [vmem:[%s4 + $0x1de0] sm:$0xff]
        %v3063 = vld [vmem:[%s4 + $0x1de8] sm:$0xff]
        %v3064 = vld [vmem:[%s4 + $0x1df0] sm:$0xff]
        %v3065 = vld [vmem:[%s4 + $0x1df8] sm:$0xff]
        %v3066 = vld [vmem:[%s4 + $0x1e00] sm:$0xff]
        %v3067 = vld [vmem:[%s4 + $0x1e08] sm:$0xff]
        %v3068 = vld [vmem:[%s4 + $0x1e10] sm:$0xff]
        %v3069 = vld [vmem:[%s4 + $0x1e18] sm:$0xff]
        %v3070 = vld [vmem:[%s4 + $0x1e20] sm:$0xff]
        %v3071 = vld [vmem:[%s4 + $0x1e28] sm:$0xff]
        %v3072 = vld [vmem:[%s4 + $0x1e30] sm:$0xff]
        %v3073 = vld [vmem:[%s4 + $0x1e38] sm:$0xff]
        %v3074 = vld [vmem:[%s4 + $0x1e40] sm:$0xff]
        %v3075 = vld [vmem:[%s4 + $0x1e48] sm:$0xff]
        %v3076 = vld [vmem:[%s4 + $0x1e50] sm:$0xff]
        %v3077 = vld [vmem:[%s4 + $0x1e58] sm:$0xff]
        %v3078 = vld [vmem:[%s4 + $0x1e60] sm:$0xff]
        %v3079 = vld [vmem:[%s4 + $0x1e68] sm:$0xff]
        %v3080 = vld [vmem:[%s4 + $0x1e70] sm:$0xff]
        %v3081 = vld [vmem:[%s4 + $0x1e78] sm:$0xff]
        %v3082 = vld [vmem:[%s4 + $0x1e80] sm:$0xff]
        %v3083 = vld [vmem:[%s4 + $0x1e88] sm:$0xff]
        %v3084 = vld [vmem:[%s4 + $0x1e90] sm:$0xff]
        %v3085 = vld [vmem:[%s4 + $0x1e98] sm:$0xff]
        %v3086 = vld [vmem:[%s4 + $0x1ea0] sm:$0xff]
        %v3087 = vld [vmem:[%s4 + $0x1ea8] sm:$0xff]
        %v3088 = vld [vmem:[%s4 + $0x1eb0] sm:$0xff]
        %v3089 = vld [vmem:[%s4 + $0x1eb8] sm:$0xff]
        %v3090 = vld [vmem:[%s4 + $0x1ec0] sm:$0xff]
        %v3091 = vld [vmem:[%s4 + $0x1ec8] sm:$0xff]
        %v3092 = vld [vmem:[%s4 + $0x1ed0] sm:$0xff]
        %v3093 = vld [vmem:[%s4 + $0x1ed8] sm:$0xff]
        %v3094 = vld [vmem:[%s4 + $0x1ee0] sm:$0xff]
        %v3095 = vld [vmem:[%s4 + $0x1ee8] sm:$0xff]
        %v3096 = vld [vmem:[%s4 + $0x1ef0] sm:$0xff]
        %v3097 = vld [vmem:[%s4 + $0x1ef8] sm:$0xff]
        %v3098 = vld [vmem:[%s4 + $0x1f00] sm:$0xff]
        %v3099 = vld [vmem:[%s4 + $0x1f08] sm:$0xff]
        %v3100 = vld [vmem:[%s4 + $0x1f10] sm:$0xff]
        %v3101 = vld [vmem:[%s4 + $0x1f18] sm:$0xff]
        %v3102 = vld [vmem:[%s4 + $0x1f20] sm:$0xff]
        %v3103 = vld [vmem:[%s4 + $0x1f28] sm:$0xff]
        %v3104 = vld [vmem:[%s4 + $0x1f30] sm:$0xff]
        %v3105 = vld [vmem:[%s4 + $0x1f38] sm:$0xff]
        %v3106 = vld [vmem:[%s4 + $0x1f40] sm:$0xff]
        %v3107 = vld [vmem:[%s4 + $0x1f48] sm:$0xff]
        %v3108 = vld [vmem:[%s4 + $0x1f50] sm:$0xff]
        %v3109 = vld [vmem:[%s4 + $0x1f58] sm:$0xff]
        %v3110 = vld [vmem:[%s4 + $0x1f60] sm:$0xff]
        %v3111 = vld [vmem:[%s4 + $0x1f68] sm:$0xff]
        %v3112 = vld [vmem:[%s4 + $0x1f70] sm:$0xff]
        %v3113 = vld [vmem:[%s4 + $0x1f78] sm:$0xff]
        %v3114 = vld [vmem:[%s4 + $0x1f80] sm:$0xff]
        %v3115 = vld [vmem:[%s4 + $0x1f88] sm:$0xff]
        %v3116 = vld [vmem:[%s4 + $0x1f90] sm:$0xff]
        %v3117 = vld [vmem:[%s4 + $0x1f98] sm:$0xff]
        %v3118 = vld [vmem:[%s4 + $0x1fa0] sm:$0xff]
        %v3119 = vld [vmem:[%s4 + $0x1fa8] sm:$0xff]
        %v3120 = vld [vmem:[%s4 + $0x1fb0] sm:$0xff]
        %v3121 = vld [vmem:[%s4 + $0x1fb8] sm:$0xff]
        %v3122 = vld [vmem:[%s4 + $0x1fc0] sm:$0xff]
        %v3123 = vld [vmem:[%s4 + $0x1fc8] sm:$0xff]
        %v3124 = vld [vmem:[%s4 + $0x1fd0] sm:$0xff]
        %v3125 = vld [vmem:[%s4 + $0x1fd8] sm:$0xff]
        %v3126 = vld [vmem:[%s4 + $0x1fe0] sm:$0xff]
        %v3127 = vld [vmem:[%s4 + $0x1fe8] sm:$0xff]
        %v3128 = vld [vmem:[%s4 + $0x1ff0] sm:$0xff]
        %v3129 = vld [vmem:[%s4 + $0x1ff8] sm:$0xff]
        %v3130 = vld [vmem:[%s5] sm:$0xf]
        %v3132 = vlaneseq
        %v3133 = vshrl.u32 %v3132, 7
        %v3134 = vsub.s32 0, %v3133
        %v3135 = vrot.slane %v3130, %v3134
        %v3136 = vlaneseq
        %v3137 = vshrl.u32 %v3136, 7
        %v3138 = vsub.s32 1, %v3137
        %v3139 = vrot.slane %v3130, %v3138
        %v3140 = vlaneseq
        %v3141 = vshrl.u32 %v3140, 7
        %v3142 = vsub.s32 2, %v3141
        %v3143 = vrot.slane %v3130, %v3142
        %v3144 = vlaneseq
        %v3145 = vshrl.u32 %v3144, 7
        %v3146 = vsub.s32 3, %v3145
        %v3147 = vrot.slane %v3130, %v3146
        %3152 = vmatprep.subr.mxu0 %v2167
        %3153 = vmatpush1.msra.mxu0 %v2166
        %3154 = vmatprep.subr.mxu0 %v2163
        %3155 = vmatpush1.msra.mxu0 %v2162
        %3156 = vmatprep.subr.mxu0 %v2159
        %3157 = vmatpush1.msra.mxu0 %v2158
        %3158 = vmatprep.subr.mxu0 %v2155
        %3159 = vmatpush1.msra.mxu0 %v2154
        %3160 = vmatprep.subr.mxu0 %v2151
        %3161 = vmatpush1.msra.mxu0 %v2150
        %3162 = vmatprep.subr.mxu0 %v2147
        %3163 = vmatpush1.msra.mxu0 %v2146
        %3164 = vmatprep.subr.mxu0 %v2143
        %3165 = vmatpush1.msra.mxu0 %v2142
        %3166 = vmatprep.subr.mxu0 %v2139
        %3167 = vmatpush1.msra.mxu0 %v2138
        %3168 = vmatprep.subr.mxu0 %v2135
        %3169 = vmatpush1.msra.mxu0 %v2134
        %3170 = vmatprep.subr.mxu0 %v2131
        %3171 = vmatpush1.msra.mxu0 %v2130
        %3172 = vmatprep.subr.mxu0 %v2127
        %3173 = vmatpush1.msra.mxu0 %v2126
        %3174 = vmatprep.subr.mxu0 %v2123
        %3175 = vmatpush1.msra.mxu0 %v2122
        %3176 = vmatprep.subr.mxu0 %v2119
        %3177 = vmatpush1.msra.mxu0 %v2118
        %3178 = vmatprep.subr.mxu0 %v2115
        %3179 = vmatpush1.msra.mxu0 %v2114
        %3180 = vmatprep.subr.mxu0 %v2111
        %3181 = vmatpush1.msra.mxu0 %v2110
        %3182 = vmatprep.subr.mxu0 %v2107
        %3183 = vmatpush1.msra.mxu0 %v2106
        %3184 = vmatprep.subr.mxu0 %v2231
        %3185 = vmatpush2.msra.mxu0 %v2230
        %3186 = vmatprep.subr.mxu0 %v2227
        %3187 = vmatpush2.msra.mxu0 %v2226
        %3188 = vmatprep.subr.mxu0 %v2223
        %3189 = vmatpush2.msra.mxu0 %v2222
        %3190 = vmatprep.subr.mxu0 %v2219
        %3191 = vmatpush2.msra.mxu0 %v2218
        %3192 = vmatprep.subr.mxu0 %v2215
        %3193 = vmatpush2.msra.mxu0 %v2214
        %3194 = vmatprep.subr.mxu0 %v2211
        %3195 = vmatpush2.msra.mxu0 %v2210
        %3196 = vmatprep.subr.mxu0 %v2207
        %3197 = vmatpush2.msra.mxu0 %v2206
        %3198 = vmatprep.subr.mxu0 %v2203
        %3199 = vmatpush2.msra.mxu0 %v2202
        %3200 = vmatprep.subr.mxu0 %v2199
        %3201 = vmatpush2.msra.mxu0 %v2198
        %3202 = vmatprep.subr.mxu0 %v2195
        %3203 = vmatpush2.msra.mxu0 %v2194
        %3204 = vmatprep.subr.mxu0 %v2191
        %3205 = vmatpush2.msra.mxu0 %v2190
        %3206 = vmatprep.subr.mxu0 %v2187
        %3207 = vmatpush2.msra.mxu0 %v2186
        %3208 = vmatprep.subr.mxu0 %v2183
        %3209 = vmatpush2.msra.mxu0 %v2182
        %3210 = vmatprep.subr.mxu0 %v2179
        %3211 = vmatpush2.msra.mxu0 %v2178
        %3212 = vmatprep.subr.mxu0 %v2175
        %3213 = vmatpush2.msra.mxu0 %v2174
        %3214 = vmatprep.subr.mxu0 %v2171
        %3215 = vmatpush2.msra.mxu0 %v2170
        %3216 = vmatprep.mubr.f32.mxu0 %v1963
        %3217 = vmatmul.mubr.f32.gmra.mxu0 %v1962
        %v3218 = vpop.f32.mrf.mxu0
        %v3219 = vadd.f32 %v3135, %v3218
        %v3220 = vpop.f32.mrf.mxu0
        %v3221 = vadd.f32 %v3139, %v3220
        %3222 = vdwg.mxu0
        %3223 = vmatprep.subr.mxu0 %v2295
        %3224 = vmatpush1.msra.mxu0 %v2294
        %3225 = vmatprep.subr.mxu0 %v2291
        %3226 = vmatpush1.msra.mxu0 %v2290
        %3227 = vmatprep.subr.mxu0 %v2287
        %3228 = vmatpush1.msra.mxu0 %v2286
        %3229 = vmatprep.subr.mxu0 %v2283
        %3230 = vmatpush1.msra.mxu0 %v2282
        %3231 = vmatprep.subr.mxu0 %v2279
        %3232 = vmatpush1.msra.mxu0 %v2278
        %3233 = vmatprep.subr.mxu0 %v2275
        %3234 = vmatpush1.msra.mxu0 %v2274
        %3235 = vmatprep.subr.mxu0 %v2271
        %3236 = vmatpush1.msra.mxu0 %v2270
        %3237 = vmatprep.subr.mxu0 %v2267
        %3238 = vmatpush1.msra.mxu0 %v2266
        %3239 = vmatprep.subr.mxu0 %v2263
        %3240 = vmatpush1.msra.mxu0 %v2262
        %3241 = vmatprep.subr.mxu0 %v2259
        %3242 = vmatpush1.msra.mxu0 %v2258
        %3243 = vmatprep.subr.mxu0 %v2255
        %3244 = vmatpush1.msra.mxu0 %v2254
        %3245 = vmatprep.subr.mxu0 %v2251
        %3246 = vmatpush1.msra.mxu0 %v2250
        %3247 = vmatprep.subr.mxu0 %v2247
        %3248 = vmatpush1.msra.mxu0 %v2246
        %3249 = vmatprep.subr.mxu0 %v2243
        %3250 = vmatpush1.msra.mxu0 %v2242
        %3251 = vmatprep.subr.mxu0 %v2239
        %3252 = vmatpush1.msra.mxu0 %v2238
        %3253 = vmatprep.subr.mxu0 %v2235
        %3254 = vmatpush1.msra.mxu0 %v2234
        %3255 = vmatprep.subr.mxu0 %v2359
        %3256 = vmatpush2.msra.mxu0 %v2358
        %3257 = vmatprep.subr.mxu0 %v2355
        %3258 = vmatpush2.msra.mxu0 %v2354
        %3259 = vmatprep.subr.mxu0 %v2351
        %3260 = vmatpush2.msra.mxu0 %v2350
        %3261 = vmatprep.subr.mxu0 %v2347
        %3262 = vmatpush2.msra.mxu0 %v2346
        %3263 = vmatprep.subr.mxu0 %v2343
        %3264 = vmatpush2.msra.mxu0 %v2342
        %3265 = vmatprep.subr.mxu0 %v2339
        %3266 = vmatpush2.msra.mxu0 %v2338
        %3267 = vmatprep.subr.mxu0 %v2335
        %3268 = vmatpush2.msra.mxu0 %v2334
        %3269 = vmatprep.subr.mxu0 %v2331
        %3270 = vmatpush2.msra.mxu0 %v2330
        %3271 = vmatprep.subr.mxu0 %v2327
        %3272 = vmatpush2.msra.mxu0 %v2326
        %3273 = vmatprep.subr.mxu0 %v2323
        %3274 = vmatpush2.msra.mxu0 %v2322
        %3275 = vmatprep.subr.mxu0 %v2319
        %3276 = vmatpush2.msra.mxu0 %v2318
        %3277 = vmatprep.subr.mxu0 %v2315
        %3278 = vmatpush2.msra.mxu0 %v2314
        %3279 = vmatprep.subr.mxu0 %v2311
        %3280 = vmatpush2.msra.mxu0 %v2310
        %3281 = vmatprep.subr.mxu0 %v2307
        %3282 = vmatpush2.msra.mxu0 %v2306
        %3283 = vmatprep.subr.mxu0 %v2303
        %3284 = vmatpush2.msra.mxu0 %v2302
        %3285 = vmatprep.subr.mxu0 %v2299
        %3286 = vmatpush2.msra.mxu0 %v2298
        %3287 = vmatprep.mubr.f32.mxu0 %v1965
        %3288 = vmatmul.mubr.f32.gmra.mxu0 %v1964
        %v3289 = vpop.f32.mrf.mxu0
        %v3290 = vadd.f32 %v3219, %v3289
        %v3291 = vpop.f32.mrf.mxu0
        %v3292 = vadd.f32 %v3221, %v3291
        %3293 = vdwg.mxu0
        %3294 = vmatprep.subr.mxu0 %v2423
        %3295 = vmatpush1.msra.mxu0 %v2422
        %3296 = vmatprep.subr.mxu0 %v2419
        %3297 = vmatpush1.msra.mxu0 %v2418
        %3298 = vmatprep.subr.mxu0 %v2415
        %3299 = vmatpush1.msra.mxu0 %v2414
        %3300 = vmatprep.subr.mxu0 %v2411
        %3301 = vmatpush1.msra.mxu0 %v2410
        %3302 = vmatprep.subr.mxu0 %v2407
        %3303 = vmatpush1.msra.mxu0 %v2406
        %3304 = vmatprep.subr.mxu0 %v2403
        %3305 = vmatpush1.msra.mxu0 %v2402
        %3306 = vmatprep.subr.mxu0 %v2399
        %3307 = vmatpush1.msra.mxu0 %v2398
        %3308 = vmatprep.subr.mxu0 %v2395
        %3309 = vmatpush1.msra.mxu0 %v2394
        %3310 = vmatprep.subr.mxu0 %v2391
        %3311 = vmatpush1.msra.mxu0 %v2390
        %3312 = vmatprep.subr.mxu0 %v2387
        %3313 = vmatpush1.msra.mxu0 %v2386
        %3314 = vmatprep.subr.mxu0 %v2383
        %3315 = vmatpush1.msra.mxu0 %v2382
        %3316 = vmatprep.subr.mxu0 %v2379
        %3317 = vmatpush1.msra.mxu0 %v2378
        %3318 = vmatprep.subr.mxu0 %v2375
        %3319 = vmatpush1.msra.mxu0 %v2374
        %3320 = vmatprep.subr.mxu0 %v2371
        %3321 = vmatpush1.msra.mxu0 %v2370
        %3322 = vmatprep.subr.mxu0 %v2367
        %3323 = vmatpush1.msra.mxu0 %v2366
        %3324 = vmatprep.subr.mxu0 %v2363
        %3325 = vmatpush1.msra.mxu0 %v2362
        %3326 = vmatprep.subr.mxu0 %v2487
        %3327 = vmatpush2.msra.mxu0 %v2486
        %3328 = vmatprep.subr.mxu0 %v2483
        %3329 = vmatpush2.msra.mxu0 %v2482
        %3330 = vmatprep.subr.mxu0 %v2479
        %3331 = vmatpush2.msra.mxu0 %v2478
        %3332 = vmatprep.subr.mxu0 %v2475
        %3333 = vmatpush2.msra.mxu0 %v2474
        %3334 = vmatprep.subr.mxu0 %v2471
        %3335 = vmatpush2.msra.mxu0 %v2470
        %3336 = vmatprep.subr.mxu0 %v2467
        %3337 = vmatpush2.msra.mxu0 %v2466
        %3338 = vmatprep.subr.mxu0 %v2463
        %3339 = vmatpush2.msra.mxu0 %v2462
        %3340 = vmatprep.subr.mxu0 %v2459
        %3341 = vmatpush2.msra.mxu0 %v2458
        %3342 = vmatprep.subr.mxu0 %v2455
        %3343 = vmatpush2.msra.mxu0 %v2454
        %3344 = vmatprep.subr.mxu0 %v2451
        %3345 = vmatpush2.msra.mxu0 %v2450
        %3346 = vmatprep.subr.mxu0 %v2447
        %3347 = vmatpush2.msra.mxu0 %v2446
        %3348 = vmatprep.subr.mxu0 %v2443
        %3349 = vmatpush2.msra.mxu0 %v2442
        %3350 = vmatprep.subr.mxu0 %v2439
        %3351 = vmatpush2.msra.mxu0 %v2438
        %3352 = vmatprep.subr.mxu0 %v2435
        %3353 = vmatpush2.msra.mxu0 %v2434
        %3354 = vmatprep.subr.mxu0 %v2431
        %3355 = vmatpush2.msra.mxu0 %v2430
        %3356 = vmatprep.subr.mxu0 %v2427
        %3357 = vmatpush2.msra.mxu0 %v2426
        %3358 = vmatprep.mubr.f32.mxu0 %v1967
        %3359 = vmatmul.mubr.f32.gmra.mxu0 %v1966
        %v3360 = vpop.f32.mrf.mxu0
        %v3361 = vadd.f32 %v3290, %v3360
        %v3362 = vpop.f32.mrf.mxu0
        %v3363 = vadd.f32 %v3292, %v3362
        %3364 = vdwg.mxu0
        %3365 = vmatprep.subr.mxu0 %v2551
        %3366 = vmatpush1.msra.mxu0 %v2550
        %3367 = vmatprep.subr.mxu0 %v2547
        %3368 = vmatpush1.msra.mxu0 %v2546
        %3369 = vmatprep.subr.mxu0 %v2543
        %3370 = vmatpush1.msra.mxu0 %v2542
        %3371 = vmatprep.subr.mxu0 %v2539
        %3372 = vmatpush1.msra.mxu0 %v2538
        %3373 = vmatprep.subr.mxu0 %v2535
        %3374 = vmatpush1.msra.mxu0 %v2534
        %3375 = vmatprep.subr.mxu0 %v2531
        %3376 = vmatpush1.msra.mxu0 %v2530
        %3377 = vmatprep.subr.mxu0 %v2527
        %3378 = vmatpush1.msra.mxu0 %v2526
        %3379 = vmatprep.subr.mxu0 %v2523
        %3380 = vmatpush1.msra.mxu0 %v2522
        %3381 = vmatprep.subr.mxu0 %v2519
        %3382 = vmatpush1.msra.mxu0 %v2518
        %3383 = vmatprep.subr.mxu0 %v2515
        %3384 = vmatpush1.msra.mxu0 %v2514
        %3385 = vmatprep.subr.mxu0 %v2511
        %3386 = vmatpush1.msra.mxu0 %v2510
        %3387 = vmatprep.subr.mxu0 %v2507
        %3388 = vmatpush1.msra.mxu0 %v2506
        %3389 = vmatprep.subr.mxu0 %v2503
        %3390 = vmatpush1.msra.mxu0 %v2502
        %3391 = vmatprep.subr.mxu0 %v2499
        %3392 = vmatpush1.msra.mxu0 %v2498
        %3393 = vmatprep.subr.mxu0 %v2495
        %3394 = vmatpush1.msra.mxu0 %v2494
        %3395 = vmatprep.subr.mxu0 %v2491
        %3396 = vmatpush1.msra.mxu0 %v2490
        %3397 = vmatprep.subr.mxu0 %v2615
        %3398 = vmatpush2.msra.mxu0 %v2614
        %3399 = vmatprep.subr.mxu0 %v2611
        %3400 = vmatpush2.msra.mxu0 %v2610
        %3401 = vmatprep.subr.mxu0 %v2607
        %3402 = vmatpush2.msra.mxu0 %v2606
        %3403 = vmatprep.subr.mxu0 %v2603
        %3404 = vmatpush2.msra.mxu0 %v2602
        %3405 = vmatprep.subr.mxu0 %v2599
        %3406 = vmatpush2.msra.mxu0 %v2598
        %3407 = vmatprep.subr.mxu0 %v2595
        %3408 = vmatpush2.msra.mxu0 %v2594
        %3409 = vmatprep.subr.mxu0 %v2591
        %3410 = vmatpush2.msra.mxu0 %v2590
        %3411 = vmatprep.subr.mxu0 %v2587
        %3412 = vmatpush2.msra.mxu0 %v2586
        %3413 = vmatprep.subr.mxu0 %v2583
        %3414 = vmatpush2.msra.mxu0 %v2582
        %3415 = vmatprep.subr.mxu0 %v2579
        %3416 = vmatpush2.msra.mxu0 %v2578
        %3417 = vmatprep.subr.mxu0 %v2575
        %3418 = vmatpush2.msra.mxu0 %v2574
        %3419 = vmatprep.subr.mxu0 %v2571
        %3420 = vmatpush2.msra.mxu0 %v2570
        %3421 = vmatprep.subr.mxu0 %v2567
        %3422 = vmatpush2.msra.mxu0 %v2566
        %3423 = vmatprep.subr.mxu0 %v2563
        %3424 = vmatpush2.msra.mxu0 %v2562
        %3425 = vmatprep.subr.mxu0 %v2559
        %3426 = vmatpush2.msra.mxu0 %v2558
        %3427 = vmatprep.subr.mxu0 %v2555
        %3428 = vmatpush2.msra.mxu0 %v2554
        %3429 = vmatprep.mubr.f32.mxu0 %v1969
        %3430 = vmatmul.mubr.f32.gmra.mxu0 %v1968
        %v3431 = vpop.f32.mrf.mxu0
        %v3432 = vadd.f32 %v3361, %v3431
        %v3433 = vpop.f32.mrf.mxu0
        %v3434 = vadd.f32 %v3363, %v3433
        %3435 = vdwg.mxu0
        %3436 = vmatprep.subr.mxu0 %v2679
        %3437 = vmatpush1.msra.mxu0 %v2678
        %3438 = vmatprep.subr.mxu0 %v2675
        %3439 = vmatpush1.msra.mxu0 %v2674
        %3440 = vmatprep.subr.mxu0 %v2671
        %3441 = vmatpush1.msra.mxu0 %v2670
        %3442 = vmatprep.subr.mxu0 %v2667
        %3443 = vmatpush1.msra.mxu0 %v2666
        %3444 = vmatprep.subr.mxu0 %v2663
        %3445 = vmatpush1.msra.mxu0 %v2662
        %3446 = vmatprep.subr.mxu0 %v2659
        %3447 = vmatpush1.msra.mxu0 %v2658
        %3448 = vmatprep.subr.mxu0 %v2655
        %3449 = vmatpush1.msra.mxu0 %v2654
        %3450 = vmatprep.subr.mxu0 %v2651
        %3451 = vmatpush1.msra.mxu0 %v2650
        %3452 = vmatprep.subr.mxu0 %v2647
        %3453 = vmatpush1.msra.mxu0 %v2646
        %3454 = vmatprep.subr.mxu0 %v2643
        %3455 = vmatpush1.msra.mxu0 %v2642
        %3456 = vmatprep.subr.mxu0 %v2639
        %3457 = vmatpush1.msra.mxu0 %v2638
        %3458 = vmatprep.subr.mxu0 %v2635
        %3459 = vmatpush1.msra.mxu0 %v2634
        %3460 = vmatprep.subr.mxu0 %v2631
        %3461 = vmatpush1.msra.mxu0 %v2630
        %3462 = vmatprep.subr.mxu0 %v2627
        %3463 = vmatpush1.msra.mxu0 %v2626
        %3464 = vmatprep.subr.mxu0 %v2623
        %3465 = vmatpush1.msra.mxu0 %v2622
        %3466 = vmatprep.subr.mxu0 %v2619
        %3467 = vmatpush1.msra.mxu0 %v2618
        %3468 = vmatprep.subr.mxu0 %v2743
        %3469 = vmatpush2.msra.mxu0 %v2742
        %3470 = vmatprep.subr.mxu0 %v2739
        %3471 = vmatpush2.msra.mxu0 %v2738
        %3472 = vmatprep.subr.mxu0 %v2735
        %3473 = vmatpush2.msra.mxu0 %v2734
        %3474 = vmatprep.subr.mxu0 %v2731
        %3475 = vmatpush2.msra.mxu0 %v2730
        %3476 = vmatprep.subr.mxu0 %v2727
        %3477 = vmatpush2.msra.mxu0 %v2726
        %3478 = vmatprep.subr.mxu0 %v2723
        %3479 = vmatpush2.msra.mxu0 %v2722
        %3480 = vmatprep.subr.mxu0 %v2719
        %3481 = vmatpush2.msra.mxu0 %v2718
        %3482 = vmatprep.subr.mxu0 %v2715
        %3483 = vmatpush2.msra.mxu0 %v2714
        %3484 = vmatprep.subr.mxu0 %v2711
        %3485 = vmatpush2.msra.mxu0 %v2710
        %3486 = vmatprep.subr.mxu0 %v2707
        %3487 = vmatpush2.msra.mxu0 %v2706
        %3488 = vmatprep.subr.mxu0 %v2703
        %3489 = vmatpush2.msra.mxu0 %v2702
        %3490 = vmatprep.subr.mxu0 %v2699
        %3491 = vmatpush2.msra.mxu0 %v2698
        %3492 = vmatprep.subr.mxu0 %v2695
        %3493 = vmatpush2.msra.mxu0 %v2694
        %3494 = vmatprep.subr.mxu0 %v2691
        %3495 = vmatpush2.msra.mxu0 %v2690
        %3496 = vmatprep.subr.mxu0 %v2687
        %3497 = vmatpush2.msra.mxu0 %v2686
        %3498 = vmatprep.subr.mxu0 %v2683
        %3499 = vmatpush2.msra.mxu0 %v2682
        %3500 = vmatprep.mubr.f32.mxu0 %v2099
        %3501 = vmatmul.mubr.f32.gmra.mxu0 %v2098
        %v3502 = vpop.f32.mrf.mxu0
        %v3503 = vadd.f32 %v3432, %v3502
        %v3504 = vpop.f32.mrf.mxu0
        %v3505 = vadd.f32 %v3434, %v3504
        %3506 = vdwg.mxu0
        %3507 = vmatprep.subr.mxu0 %v2807
        %3508 = vmatpush1.msra.mxu0 %v2806
        %3509 = vmatprep.subr.mxu0 %v2803
        %3510 = vmatpush1.msra.mxu0 %v2802
        %3511 = vmatprep.subr.mxu0 %v2799
        %3512 = vmatpush1.msra.mxu0 %v2798
        %3513 = vmatprep.subr.mxu0 %v2795
        %3514 = vmatpush1.msra.mxu0 %v2794
        %3515 = vmatprep.subr.mxu0 %v2791
        %3516 = vmatpush1.msra.mxu0 %v2790
        %3517 = vmatprep.subr.mxu0 %v2787
        %3518 = vmatpush1.msra.mxu0 %v2786
        %3519 = vmatprep.subr.mxu0 %v2783
        %3520 = vmatpush1.msra.mxu0 %v2782
        %3521 = vmatprep.subr.mxu0 %v2779
        %3522 = vmatpush1.msra.mxu0 %v2778
        %3523 = vmatprep.subr.mxu0 %v2775
        %3524 = vmatpush1.msra.mxu0 %v2774
        %3525 = vmatprep.subr.mxu0 %v2771
        %3526 = vmatpush1.msra.mxu0 %v2770
        %3527 = vmatprep.subr.mxu0 %v2767
        %3528 = vmatpush1.msra.mxu0 %v2766
        %3529 = vmatprep.subr.mxu0 %v2763
        %3530 = vmatpush1.msra.mxu0 %v2762
        %3531 = vmatprep.subr.mxu0 %v2759
        %3532 = vmatpush1.msra.mxu0 %v2758
        %3533 = vmatprep.subr.mxu0 %v2755
        %3534 = vmatpush1.msra.mxu0 %v2754
        %3535 = vmatprep.subr.mxu0 %v2751
        %3536 = vmatpush1.msra.mxu0 %v2750
        %3537 = vmatprep.subr.mxu0 %v2747
        %3538 = vmatpush1.msra.mxu0 %v2746
        %3539 = vmatprep.subr.mxu0 %v2871
        %3540 = vmatpush2.msra.mxu0 %v2870
        %3541 = vmatprep.subr.mxu0 %v2867
        %3542 = vmatpush2.msra.mxu0 %v2866
        %3543 = vmatprep.subr.mxu0 %v2863
        %3544 = vmatpush2.msra.mxu0 %v2862
        %3545 = vmatprep.subr.mxu0 %v2859
        %3546 = vmatpush2.msra.mxu0 %v2858
        %3547 = vmatprep.subr.mxu0 %v2855
        %3548 = vmatpush2.msra.mxu0 %v2854
        %3549 = vmatprep.subr.mxu0 %v2851
        %3550 = vmatpush2.msra.mxu0 %v2850
        %3551 = vmatprep.subr.mxu0 %v2847
        %3552 = vmatpush2.msra.mxu0 %v2846
        %3553 = vmatprep.subr.mxu0 %v2843
        %3554 = vmatpush2.msra.mxu0 %v2842
        %3555 = vmatprep.subr.mxu0 %v2839
        %3556 = vmatpush2.msra.mxu0 %v2838
        %3557 = vmatprep.subr.mxu0 %v2835
        %3558 = vmatpush2.msra.mxu0 %v2834
        %3559 = vmatprep.subr.mxu0 %v2831
        %3560 = vmatpush2.msra.mxu0 %v2830
        %3561 = vmatprep.subr.mxu0 %v2827
        %3562 = vmatpush2.msra.mxu0 %v2826
        %3563 = vmatprep.subr.mxu0 %v2823
        %3564 = vmatpush2.msra.mxu0 %v2822
        %3565 = vmatprep.subr.mxu0 %v2819
        %3566 = vmatpush2.msra.mxu0 %v2818
        %3567 = vmatprep.subr.mxu0 %v2815
        %3568 = vmatpush2.msra.mxu0 %v2814
        %3569 = vmatprep.subr.mxu0 %v2811
        %3570 = vmatpush2.msra.mxu0 %v2810
        %3571 = vmatprep.mubr.f32.mxu0 %v2101
        %3572 = vmatmul.mubr.f32.gmra.mxu0 %v2100
        %v3573 = vpop.f32.mrf.mxu0
        %v3574 = vadd.f32 %v3503, %v3573
        %v3575 = vpop.f32.mrf.mxu0
        %v3576 = vadd.f32 %v3505, %v3575
        %3577 = vdwg.mxu0
        %3578 = vmatprep.subr.mxu0 %v2935
        %3579 = vmatpush1.msra.mxu0 %v2934
        %3580 = vmatprep.subr.mxu0 %v2931
        %3581 = vmatpush1.msra.mxu0 %v2930
        %3582 = vmatprep.subr.mxu0 %v2927
        %3583 = vmatpush1.msra.mxu0 %v2926
        %3584 = vmatprep.subr.mxu0 %v2923
        %3585 = vmatpush1.msra.mxu0 %v2922
        %3586 = vmatprep.subr.mxu0 %v2919
        %3587 = vmatpush1.msra.mxu0 %v2918
        %3588 = vmatprep.subr.mxu0 %v2915
        %3589 = vmatpush1.msra.mxu0 %v2914
        %3590 = vmatprep.subr.mxu0 %v2911
        %3591 = vmatpush1.msra.mxu0 %v2910
        %3592 = vmatprep.subr.mxu0 %v2907
        %3593 = vmatpush1.msra.mxu0 %v2906
        %3594 = vmatprep.subr.mxu0 %v2903
        %3595 = vmatpush1.msra.mxu0 %v2902
        %3596 = vmatprep.subr.mxu0 %v2899
        %3597 = vmatpush1.msra.mxu0 %v2898
        %3598 = vmatprep.subr.mxu0 %v2895
        %3599 = vmatpush1.msra.mxu0 %v2894
        %3600 = vmatprep.subr.mxu0 %v2891
        %3601 = vmatpush1.msra.mxu0 %v2890
        %3602 = vmatprep.subr.mxu0 %v2887
        %3603 = vmatpush1.msra.mxu0 %v2886
        %3604 = vmatprep.subr.mxu0 %v2883
        %3605 = vmatpush1.msra.mxu0 %v2882
        %3606 = vmatprep.subr.mxu0 %v2879
        %3607 = vmatpush1.msra.mxu0 %v2878
        %3608 = vmatprep.subr.mxu0 %v2875
        %3609 = vmatpush1.msra.mxu0 %v2874
        %3610 = vmatprep.subr.mxu0 %v2999
        %3611 = vmatpush2.msra.mxu0 %v2998
        %3612 = vmatprep.subr.mxu0 %v2995
        %3613 = vmatpush2.msra.mxu0 %v2994
        %3614 = vmatprep.subr.mxu0 %v2991
        %3615 = vmatpush2.msra.mxu0 %v2990
        %3616 = vmatprep.subr.mxu0 %v2987
        %3617 = vmatpush2.msra.mxu0 %v2986
        %3618 = vmatprep.subr.mxu0 %v2983
        %3619 = vmatpush2.msra.mxu0 %v2982
        %3620 = vmatprep.subr.mxu0 %v2979
        %3621 = vmatpush2.msra.mxu0 %v2978
        %3622 = vmatprep.subr.mxu0 %v2975
        %3623 = vmatpush2.msra.mxu0 %v2974
        %3624 = vmatprep.subr.mxu0 %v2971
        %3625 = vmatpush2.msra.mxu0 %v2970
        %3626 = vmatprep.subr.mxu0 %v2967
        %3627 = vmatpush2.msra.mxu0 %v2966
        %3628 = vmatprep.subr.mxu0 %v2963
        %3629 = vmatpush2.msra.mxu0 %v2962
        %3630 = vmatprep.subr.mxu0 %v2959
        %3631 = vmatpush2.msra.mxu0 %v2958
        %3632 = vmatprep.subr.mxu0 %v2955
        %3633 = vmatpush2.msra.mxu0 %v2954
        %3634 = vmatprep.subr.mxu0 %v2951
        %3635 = vmatpush2.msra.mxu0 %v2950
        %3636 = vmatprep.subr.mxu0 %v2947
        %3637 = vmatpush2.msra.mxu0 %v2946
        %3638 = vmatprep.subr.mxu0 %v2943
        %3639 = vmatpush2.msra.mxu0 %v2942
        %3640 = vmatprep.subr.mxu0 %v2939
        %3641 = vmatpush2.msra.mxu0 %v2938
        %3642 = vmatprep.mubr.f32.mxu0 %v2103
        %3643 = vmatmul.mubr.f32.gmra.mxu0 %v2102
        %v3644 = vpop.f32.mrf.mxu0
        %v3645 = vadd.f32 %v3574, %v3644
        %v3646 = vpop.f32.mrf.mxu0
        %v3647 = vadd.f32 %v3576, %v3646
        %3648 = vdwg.mxu0
        %3649 = vmatprep.subr.mxu0 %v3063
        %3650 = vmatpush1.msra.mxu0 %v3062
        %3651 = vmatprep.subr.mxu0 %v3059
        %3652 = vmatpush1.msra.mxu0 %v3058
        %3653 = vmatprep.subr.mxu0 %v3055
        %3654 = vmatpush1.msra.mxu0 %v3054
        %3655 = vmatprep.subr.mxu0 %v3051
        %3656 = vmatpush1.msra.mxu0 %v3050
        %3657 = vmatprep.subr.mxu0 %v3047
        %3658 = vmatpush1.msra.mxu0 %v3046
        %3659 = vmatprep.subr.mxu0 %v3043
        %3660 = vmatpush1.msra.mxu0 %v3042
        %3661 = vmatprep.subr.mxu0 %v3039
        %3662 = vmatpush1.msra.mxu0 %v3038
        %3663 = vmatprep.subr.mxu0 %v3035
        %3664 = vmatpush1.msra.mxu0 %v3034
        %3665 = vmatprep.subr.mxu0 %v3031
        %3666 = vmatpush1.msra.mxu0 %v3030
        %3667 = vmatprep.subr.mxu0 %v3027
        %3668 = vmatpush1.msra.mxu0 %v3026
        %3669 = vmatprep.subr.mxu0 %v3023
        %3670 = vmatpush1.msra.mxu0 %v3022
        %3671 = vmatprep.subr.mxu0 %v3019
        %3672 = vmatpush1.msra.mxu0 %v3018
        %3673 = vmatprep.subr.mxu0 %v3015
        %3674 = vmatpush1.msra.mxu0 %v3014
        %3675 = vmatprep.subr.mxu0 %v3011
        %3676 = vmatpush1.msra.mxu0 %v3010
        %3677 = vmatprep.subr.mxu0 %v3007
        %3678 = vmatpush1.msra.mxu0 %v3006
        %3679 = vmatprep.subr.mxu0 %v3003
        %3680 = vmatpush1.msra.mxu0 %v3002
        %3681 = vmatprep.subr.mxu0 %v3127
        %3682 = vmatpush2.msra.mxu0 %v3126
        %3683 = vmatprep.subr.mxu0 %v3123
        %3684 = vmatpush2.msra.mxu0 %v3122
        %3685 = vmatprep.subr.mxu0 %v3119
        %3686 = vmatpush2.msra.mxu0 %v3118
        %3687 = vmatprep.subr.mxu0 %v3115
        %3688 = vmatpush2.msra.mxu0 %v3114
        %3689 = vmatprep.subr.mxu0 %v3111
        %3690 = vmatpush2.msra.mxu0 %v3110
        %3691 = vmatprep.subr.mxu0 %v3107
        %3692 = vmatpush2.msra.mxu0 %v3106
        %3693 = vmatprep.subr.mxu0 %v3103
        %3694 = vmatpush2.msra.mxu0 %v3102
        %3695 = vmatprep.subr.mxu0 %v3099
        %3696 = vmatpush2.msra.mxu0 %v3098
        %3697 = vmatprep.subr.mxu0 %v3095
        %3698 = vmatpush2.msra.mxu0 %v3094
        %3699 = vmatprep.subr.mxu0 %v3091
        %3700 = vmatpush2.msra.mxu0 %v3090
        %3701 = vmatprep.subr.mxu0 %v3087
        %3702 = vmatpush2.msra.mxu0 %v3086
        %3703 = vmatprep.subr.mxu0 %v3083
        %3704 = vmatpush2.msra.mxu0 %v3082
        %3705 = vmatprep.subr.mxu0 %v3079
        %3706 = vmatpush2.msra.mxu0 %v3078
        %3707 = vmatprep.subr.mxu0 %v3075
        %3708 = vmatpush2.msra.mxu0 %v3074
        %3709 = vmatprep.subr.mxu0 %v3071
        %3710 = vmatpush2.msra.mxu0 %v3070
        %3711 = vmatprep.subr.mxu0 %v3067
        %3712 = vmatpush2.msra.mxu0 %v3066
        %3713 = vmatprep.mubr.f32.mxu0 %v2105
        %3714 = vmatmul.mubr.f32.gmra.mxu0 %v2104
        %v3715 = vpop.f32.mrf.mxu0
        %v3716 = vadd.f32 %v3645, %v3715
        %v3717 = vpop.f32.mrf.mxu0
        %v3718 = vadd.f32 %v3647, %v3717
        %3719 = vdwg.mxu0
        %3720 = vmatprep.subr.mxu0 %v2169
        %3721 = vmatpush1.msra.mxu0 %v2168
        %3722 = vmatprep.subr.mxu0 %v2165
        %3723 = vmatpush1.msra.mxu0 %v2164
        %3724 = vmatprep.subr.mxu0 %v2161
        %3725 = vmatpush1.msra.mxu0 %v2160
        %3726 = vmatprep.subr.mxu0 %v2157
        %3727 = vmatpush1.msra.mxu0 %v2156
        %3728 = vmatprep.subr.mxu0 %v2153
        %3729 = vmatpush1.msra.mxu0 %v2152
        %3730 = vmatprep.subr.mxu0 %v2149
        %3731 = vmatpush1.msra.mxu0 %v2148
        %3732 = vmatprep.subr.mxu0 %v2145
        %3733 = vmatpush1.msra.mxu0 %v2144
        %3734 = vmatprep.subr.mxu0 %v2141
        %3735 = vmatpush1.msra.mxu0 %v2140
        %3736 = vmatprep.subr.mxu0 %v2137
        %3737 = vmatpush1.msra.mxu0 %v2136
        %3738 = vmatprep.subr.mxu0 %v2133
        %3739 = vmatpush1.msra.mxu0 %v2132
        %3740 = vmatprep.subr.mxu0 %v2129
        %3741 = vmatpush1.msra.mxu0 %v2128
        %3742 = vmatprep.subr.mxu0 %v2125
        %3743 = vmatpush1.msra.mxu0 %v2124
        %3744 = vmatprep.subr.mxu0 %v2121
        %3745 = vmatpush1.msra.mxu0 %v2120
        %3746 = vmatprep.subr.mxu0 %v2117
        %3747 = vmatpush1.msra.mxu0 %v2116
        %3748 = vmatprep.subr.mxu0 %v2113
        %3749 = vmatpush1.msra.mxu0 %v2112
        %3750 = vmatprep.subr.mxu0 %v2109
        %3751 = vmatpush1.msra.mxu0 %v2108
        %3752 = vmatprep.subr.mxu0 %v2233
        %3753 = vmatpush2.msra.mxu0 %v2232
        %3754 = vmatprep.subr.mxu0 %v2229
        %3755 = vmatpush2.msra.mxu0 %v2228
        %3756 = vmatprep.subr.mxu0 %v2225
        %3757 = vmatpush2.msra.mxu0 %v2224
        %3758 = vmatprep.subr.mxu0 %v2221
        %3759 = vmatpush2.msra.mxu0 %v2220
        %3760 = vmatprep.subr.mxu0 %v2217
        %3761 = vmatpush2.msra.mxu0 %v2216
        %3762 = vmatprep.subr.mxu0 %v2213
        %3763 = vmatpush2.msra.mxu0 %v2212
        %3764 = vmatprep.subr.mxu0 %v2209
        %3765 = vmatpush2.msra.mxu0 %v2208
        %3766 = vmatprep.subr.mxu0 %v2205
        %3767 = vmatpush2.msra.mxu0 %v2204
        %3768 = vmatprep.subr.mxu0 %v2201
        %3769 = vmatpush2.msra.mxu0 %v2200
        %3770 = vmatprep.subr.mxu0 %v2197
        %3771 = vmatpush2.msra.mxu0 %v2196
        %3772 = vmatprep.subr.mxu0 %v2193
        %3773 = vmatpush2.msra.mxu0 %v2192
        %3774 = vmatprep.subr.mxu0 %v2189
        %3775 = vmatpush2.msra.mxu0 %v2188
        %3776 = vmatprep.subr.mxu0 %v2185
        %3777 = vmatpush2.msra.mxu0 %v2184
        %3778 = vmatprep.subr.mxu0 %v2181
        %3779 = vmatpush2.msra.mxu0 %v2180
        %3780 = vmatprep.subr.mxu0 %v2177
        %3781 = vmatpush2.msra.mxu0 %v2176
        %3782 = vmatprep.subr.mxu0 %v2173
        %3783 = vmatpush2.msra.mxu0 %v2172
        %3784 = vmatprep.mubr.f32.mxu0 %v1963
        %3785 = vmatmul.mubr.f32.gmra.mxu0 %v1962
        %v3786 = vpop.f32.mrf.mxu0
        %v3787 = vadd.f32 %v3143, %v3786
        %v3788 = vpop.f32.mrf.mxu0
        %v3789 = vadd.f32 %v3147, %v3788
        %3790 = vdwg.mxu0
        %3791 = vmatprep.subr.mxu0 %v2297
        %3792 = vmatpush1.msra.mxu0 %v2296
        %3793 = vmatprep.subr.mxu0 %v2293
        %3794 = vmatpush1.msra.mxu0 %v2292
        %3795 = vmatprep.subr.mxu0 %v2289
        %3796 = vmatpush1.msra.mxu0 %v2288
        %3797 = vmatprep.subr.mxu0 %v2285
        %3798 = vmatpush1.msra.mxu0 %v2284
        %3799 = vmatprep.subr.mxu0 %v2281
        %3800 = vmatpush1.msra.mxu0 %v2280
        %3801 = vmatprep.subr.mxu0 %v2277
        %3802 = vmatpush1.msra.mxu0 %v2276
        %3803 = vmatprep.subr.mxu0 %v2273
        %3804 = vmatpush1.msra.mxu0 %v2272
        %3805 = vmatprep.subr.mxu0 %v2269
        %3806 = vmatpush1.msra.mxu0 %v2268
        %3807 = vmatprep.subr.mxu0 %v2265
        %3808 = vmatpush1.msra.mxu0 %v2264
        %3809 = vmatprep.subr.mxu0 %v2261
        %3810 = vmatpush1.msra.mxu0 %v2260
        %3811 = vmatprep.subr.mxu0 %v2257
        %3812 = vmatpush1.msra.mxu0 %v2256
        %3813 = vmatprep.subr.mxu0 %v2253
        %3814 = vmatpush1.msra.mxu0 %v2252
        %3815 = vmatprep.subr.mxu0 %v2249
        %3816 = vmatpush1.msra.mxu0 %v2248
        %3817 = vmatprep.subr.mxu0 %v2245
        %3818 = vmatpush1.msra.mxu0 %v2244
        %3819 = vmatprep.subr.mxu0 %v2241
        %3820 = vmatpush1.msra.mxu0 %v2240
        %3821 = vmatprep.subr.mxu0 %v2237
        %3822 = vmatpush1.msra.mxu0 %v2236
        %3823 = vmatprep.subr.mxu0 %v2361
        %3824 = vmatpush2.msra.mxu0 %v2360
        %3825 = vmatprep.subr.mxu0 %v2357
        %3826 = vmatpush2.msra.mxu0 %v2356
        %3827 = vmatprep.subr.mxu0 %v2353
        %3828 = vmatpush2.msra.mxu0 %v2352
        %3829 = vmatprep.subr.mxu0 %v2349
        %3830 = vmatpush2.msra.mxu0 %v2348
        %3831 = vmatprep.subr.mxu0 %v2345
        %3832 = vmatpush2.msra.mxu0 %v2344
        %3833 = vmatprep.subr.mxu0 %v2341
        %3834 = vmatpush2.msra.mxu0 %v2340
        %3835 = vmatprep.subr.mxu0 %v2337
        %3836 = vmatpush2.msra.mxu0 %v2336
        %3837 = vmatprep.subr.mxu0 %v2333
        %3838 = vmatpush2.msra.mxu0 %v2332
        %3839 = vmatprep.subr.mxu0 %v2329
        %3840 = vmatpush2.msra.mxu0 %v2328
        %3841 = vmatprep.subr.mxu0 %v2325
        %3842 = vmatpush2.msra.mxu0 %v2324
        %3843 = vmatprep.subr.mxu0 %v2321
        %3844 = vmatpush2.msra.mxu0 %v2320
        %3845 = vmatprep.subr.mxu0 %v2317
        %3846 = vmatpush2.msra.mxu0 %v2316
        %3847 = vmatprep.subr.mxu0 %v2313
        %3848 = vmatpush2.msra.mxu0 %v2312
        %3849 = vmatprep.subr.mxu0 %v2309
        %3850 = vmatpush2.msra.mxu0 %v2308
        %3851 = vmatprep.subr.mxu0 %v2305
        %3852 = vmatpush2.msra.mxu0 %v2304
        %3853 = vmatprep.subr.mxu0 %v2301
        %3854 = vmatpush2.msra.mxu0 %v2300
        %3855 = vmatprep.mubr.f32.mxu0 %v1965
        %3856 = vmatmul.mubr.f32.gmra.mxu0 %v1964
        %v3857 = vpop.f32.mrf.mxu0
        %v3858 = vadd.f32 %v3787, %v3857
        %v3859 = vpop.f32.mrf.mxu0
        %v3860 = vadd.f32 %v3789, %v3859
        %3861 = vdwg.mxu0
        %3862 = vmatprep.subr.mxu0 %v2425
        %3863 = vmatpush1.msra.mxu0 %v2424
        %3864 = vmatprep.subr.mxu0 %v2421
        %3865 = vmatpush1.msra.mxu0 %v2420
        %3866 = vmatprep.subr.mxu0 %v2417
        %3867 = vmatpush1.msra.mxu0 %v2416
        %3868 = vmatprep.subr.mxu0 %v2413
        %3869 = vmatpush1.msra.mxu0 %v2412
        %3870 = vmatprep.subr.mxu0 %v2409
        %3871 = vmatpush1.msra.mxu0 %v2408
        %3872 = vmatprep.subr.mxu0 %v2405
        %3873 = vmatpush1.msra.mxu0 %v2404
        %3874 = vmatprep.subr.mxu0 %v2401
        %3875 = vmatpush1.msra.mxu0 %v2400
        %3876 = vmatprep.subr.mxu0 %v2397
        %3877 = vmatpush1.msra.mxu0 %v2396
        %3878 = vmatprep.subr.mxu0 %v2393
        %3879 = vmatpush1.msra.mxu0 %v2392
        %3880 = vmatprep.subr.mxu0 %v2389
        %3881 = vmatpush1.msra.mxu0 %v2388
        %3882 = vmatprep.subr.mxu0 %v2385
        %3883 = vmatpush1.msra.mxu0 %v2384
        %3884 = vmatprep.subr.mxu0 %v2381
        %3885 = vmatpush1.msra.mxu0 %v2380
        %3886 = vmatprep.subr.mxu0 %v2377
        %3887 = vmatpush1.msra.mxu0 %v2376
        %3888 = vmatprep.subr.mxu0 %v2373
        %3889 = vmatpush1.msra.mxu0 %v2372
        %3890 = vmatprep.subr.mxu0 %v2369
        %3891 = vmatpush1.msra.mxu0 %v2368
        %3892 = vmatprep.subr.mxu0 %v2365
        %3893 = vmatpush1.msra.mxu0 %v2364
        %3894 = vmatprep.subr.mxu0 %v2489
        %3895 = vmatpush2.msra.mxu0 %v2488
        %3896 = vmatprep.subr.mxu0 %v2485
        %3897 = vmatpush2.msra.mxu0 %v2484
        %3898 = vmatprep.subr.mxu0 %v2481
        %3899 = vmatpush2.msra.mxu0 %v2480
        %3900 = vmatprep.subr.mxu0 %v2477
        %3901 = vmatpush2.msra.mxu0 %v2476
        %3902 = vmatprep.subr.mxu0 %v2473
        %3903 = vmatpush2.msra.mxu0 %v2472
        %3904 = vmatprep.subr.mxu0 %v2469
        %3905 = vmatpush2.msra.mxu0 %v2468
        %3906 = vmatprep.subr.mxu0 %v2465
        %3907 = vmatpush2.msra.mxu0 %v2464
        %3908 = vmatprep.subr.mxu0 %v2461
        %3909 = vmatpush2.msra.mxu0 %v2460
        %3910 = vmatprep.subr.mxu0 %v2457
        %3911 = vmatpush2.msra.mxu0 %v2456
        %3912 = vmatprep.subr.mxu0 %v2453
        %3913 = vmatpush2.msra.mxu0 %v2452
        %3914 = vmatprep.subr.mxu0 %v2449
        %3915 = vmatpush2.msra.mxu0 %v2448
        %3916 = vmatprep.subr.mxu0 %v2445
        %3917 = vmatpush2.msra.mxu0 %v2444
        %3918 = vmatprep.subr.mxu0 %v2441
        %3919 = vmatpush2.msra.mxu0 %v2440
        %3920 = vmatprep.subr.mxu0 %v2437
        %3921 = vmatpush2.msra.mxu0 %v2436
        %3922 = vmatprep.subr.mxu0 %v2433
        %3923 = vmatpush2.msra.mxu0 %v2432
        %3924 = vmatprep.subr.mxu0 %v2429
        %3925 = vmatpush2.msra.mxu0 %v2428
        %3926 = vmatprep.mubr.f32.mxu0 %v1967
        %3927 = vmatmul.mubr.f32.gmra.mxu0 %v1966
        %v3928 = vpop.f32.mrf.mxu0
        %v3929 = vadd.f32 %v3858, %v3928
        %v3930 = vpop.f32.mrf.mxu0
        %v3931 = vadd.f32 %v3860, %v3930
        %3932 = vdwg.mxu0
        %3933 = vmatprep.subr.mxu0 %v2553
        %3934 = vmatpush1.msra.mxu0 %v2552
        %3935 = vmatprep.subr.mxu0 %v2549
        %3936 = vmatpush1.msra.mxu0 %v2548
        %3937 = vmatprep.subr.mxu0 %v2545
        %3938 = vmatpush1.msra.mxu0 %v2544
        %3939 = vmatprep.subr.mxu0 %v2541
        %3940 = vmatpush1.msra.mxu0 %v2540
        %3941 = vmatprep.subr.mxu0 %v2537
        %3942 = vmatpush1.msra.mxu0 %v2536
        %3943 = vmatprep.subr.mxu0 %v2533
        %3944 = vmatpush1.msra.mxu0 %v2532
        %3945 = vmatprep.subr.mxu0 %v2529
        %3946 = vmatpush1.msra.mxu0 %v2528
        %3947 = vmatprep.subr.mxu0 %v2525
        %3948 = vmatpush1.msra.mxu0 %v2524
        %3949 = vmatprep.subr.mxu0 %v2521
        %3950 = vmatpush1.msra.mxu0 %v2520
        %3951 = vmatprep.subr.mxu0 %v2517
        %3952 = vmatpush1.msra.mxu0 %v2516
        %3953 = vmatprep.subr.mxu0 %v2513
        %3954 = vmatpush1.msra.mxu0 %v2512
        %3955 = vmatprep.subr.mxu0 %v2509
        %3956 = vmatpush1.msra.mxu0 %v2508
        %3957 = vmatprep.subr.mxu0 %v2505
        %3958 = vmatpush1.msra.mxu0 %v2504
        %3959 = vmatprep.subr.mxu0 %v2501
        %3960 = vmatpush1.msra.mxu0 %v2500
        %3961 = vmatprep.subr.mxu0 %v2497
        %3962 = vmatpush1.msra.mxu0 %v2496
        %3963 = vmatprep.subr.mxu0 %v2493
        %3964 = vmatpush1.msra.mxu0 %v2492
        %3965 = vmatprep.subr.mxu0 %v2617
        %3966 = vmatpush2.msra.mxu0 %v2616
        %3967 = vmatprep.subr.mxu0 %v2613
        %3968 = vmatpush2.msra.mxu0 %v2612
        %3969 = vmatprep.subr.mxu0 %v2609
        %3970 = vmatpush2.msra.mxu0 %v2608
        %3971 = vmatprep.subr.mxu0 %v2605
        %3972 = vmatpush2.msra.mxu0 %v2604
        %3973 = vmatprep.subr.mxu0 %v2601
        %3974 = vmatpush2.msra.mxu0 %v2600
        %3975 = vmatprep.subr.mxu0 %v2597
        %3976 = vmatpush2.msra.mxu0 %v2596
        %3977 = vmatprep.subr.mxu0 %v2593
        %3978 = vmatpush2.msra.mxu0 %v2592
        %3979 = vmatprep.subr.mxu0 %v2589
        %3980 = vmatpush2.msra.mxu0 %v2588
        %3981 = vmatprep.subr.mxu0 %v2585
        %3982 = vmatpush2.msra.mxu0 %v2584
        %3983 = vmatprep.subr.mxu0 %v2581
        %3984 = vmatpush2.msra.mxu0 %v2580
        %3985 = vmatprep.subr.mxu0 %v2577
        %3986 = vmatpush2.msra.mxu0 %v2576
        %3987 = vmatprep.subr.mxu0 %v2573
        %3988 = vmatpush2.msra.mxu0 %v2572
        %3989 = vmatprep.subr.mxu0 %v2569
        %3990 = vmatpush2.msra.mxu0 %v2568
        %3991 = vmatprep.subr.mxu0 %v2565
        %3992 = vmatpush2.msra.mxu0 %v2564
        %3993 = vmatprep.subr.mxu0 %v2561
        %3994 = vmatpush2.msra.mxu0 %v2560
        %3995 = vmatprep.subr.mxu0 %v2557
        %3996 = vmatpush2.msra.mxu0 %v2556
        %3997 = vmatprep.mubr.f32.mxu0 %v1969
        %3998 = vmatmul.mubr.f32.gmra.mxu0 %v1968
        %v3999 = vpop.f32.mrf.mxu0
        %v4000 = vadd.f32 %v3929, %v3999
        %v4001 = vpop.f32.mrf.mxu0
        %v4002 = vadd.f32 %v3931, %v4001
        %4003 = vdwg.mxu0
        %4004 = vmatprep.subr.mxu0 %v2681
        %4005 = vmatpush1.msra.mxu0 %v2680
        %4006 = vmatprep.subr.mxu0 %v2677
        %4007 = vmatpush1.msra.mxu0 %v2676
        %4008 = vmatprep.subr.mxu0 %v2673
        %4009 = vmatpush1.msra.mxu0 %v2672
        %4010 = vmatprep.subr.mxu0 %v2669
        %4011 = vmatpush1.msra.mxu0 %v2668
        %4012 = vmatprep.subr.mxu0 %v2665
        %4013 = vmatpush1.msra.mxu0 %v2664
        %4014 = vmatprep.subr.mxu0 %v2661
        %4015 = vmatpush1.msra.mxu0 %v2660
        %4016 = vmatprep.subr.mxu0 %v2657
        %4017 = vmatpush1.msra.mxu0 %v2656
        %4018 = vmatprep.subr.mxu0 %v2653
        %4019 = vmatpush1.msra.mxu0 %v2652
        %4020 = vmatprep.subr.mxu0 %v2649
        %4021 = vmatpush1.msra.mxu0 %v2648
        %4022 = vmatprep.subr.mxu0 %v2645
        %4023 = vmatpush1.msra.mxu0 %v2644
        %4024 = vmatprep.subr.mxu0 %v2641
        %4025 = vmatpush1.msra.mxu0 %v2640
        %4026 = vmatprep.subr.mxu0 %v2637
        %4027 = vmatpush1.msra.mxu0 %v2636
        %4028 = vmatprep.subr.mxu0 %v2633
        %4029 = vmatpush1.msra.mxu0 %v2632
        %4030 = vmatprep.subr.mxu0 %v2629
        %4031 = vmatpush1.msra.mxu0 %v2628
        %4032 = vmatprep.subr.mxu0 %v2625
        %4033 = vmatpush1.msra.mxu0 %v2624
        %4034 = vmatprep.subr.mxu0 %v2621
        %4035 = vmatpush1.msra.mxu0 %v2620
        %4036 = vmatprep.subr.mxu0 %v2745
        %4037 = vmatpush2.msra.mxu0 %v2744
        %4038 = vmatprep.subr.mxu0 %v2741
        %4039 = vmatpush2.msra.mxu0 %v2740
        %4040 = vmatprep.subr.mxu0 %v2737
        %4041 = vmatpush2.msra.mxu0 %v2736
        %4042 = vmatprep.subr.mxu0 %v2733
        %4043 = vmatpush2.msra.mxu0 %v2732
        %4044 = vmatprep.subr.mxu0 %v2729
        %4045 = vmatpush2.msra.mxu0 %v2728
        %4046 = vmatprep.subr.mxu0 %v2725
        %4047 = vmatpush2.msra.mxu0 %v2724
        %4048 = vmatprep.subr.mxu0 %v2721
        %4049 = vmatpush2.msra.mxu0 %v2720
        %4050 = vmatprep.subr.mxu0 %v2717
        %4051 = vmatpush2.msra.mxu0 %v2716
        %4052 = vmatprep.subr.mxu0 %v2713
        %4053 = vmatpush2.msra.mxu0 %v2712
        %4054 = vmatprep.subr.mxu0 %v2709
        %4055 = vmatpush2.msra.mxu0 %v2708
        %4056 = vmatprep.subr.mxu0 %v2705
        %4057 = vmatpush2.msra.mxu0 %v2704
        %4058 = vmatprep.subr.mxu0 %v2701
        %4059 = vmatpush2.msra.mxu0 %v2700
        %4060 = vmatprep.subr.mxu0 %v2697
        %4061 = vmatpush2.msra.mxu0 %v2696
        %4062 = vmatprep.subr.mxu0 %v2693
        %4063 = vmatpush2.msra.mxu0 %v2692
        %4064 = vmatprep.subr.mxu0 %v2689
        %4065 = vmatpush2.msra.mxu0 %v2688
        %4066 = vmatprep.subr.mxu0 %v2685
        %4067 = vmatpush2.msra.mxu0 %v2684
        %4068 = vmatprep.mubr.f32.mxu0 %v2099
        %4069 = vmatmul.mubr.f32.gmra.mxu0 %v2098
        %v4070 = vpop.f32.mrf.mxu0
        %v4071 = vadd.f32 %v4000, %v4070
        %v4072 = vpop.f32.mrf.mxu0
        %v4073 = vadd.f32 %v4002, %v4072
        %4074 = vdwg.mxu0
        %4075 = vmatprep.subr.mxu0 %v2809
        %4076 = vmatpush1.msra.mxu0 %v2808
        %4077 = vmatprep.subr.mxu0 %v2805
        %4078 = vmatpush1.msra.mxu0 %v2804
        %4079 = vmatprep.subr.mxu0 %v2801
        %4080 = vmatpush1.msra.mxu0 %v2800
        %4081 = vmatprep.subr.mxu0 %v2797
        %4082 = vmatpush1.msra.mxu0 %v2796
        %4083 = vmatprep.subr.mxu0 %v2793
        %4084 = vmatpush1.msra.mxu0 %v2792
        %4085 = vmatprep.subr.mxu0 %v2789
        %4086 = vmatpush1.msra.mxu0 %v2788
        %4087 = vmatprep.subr.mxu0 %v2785
        %4088 = vmatpush1.msra.mxu0 %v2784
        %4089 = vmatprep.subr.mxu0 %v2781
        %4090 = vmatpush1.msra.mxu0 %v2780
        %4091 = vmatprep.subr.mxu0 %v2777
        %4092 = vmatpush1.msra.mxu0 %v2776
        %4093 = vmatprep.subr.mxu0 %v2773
        %4094 = vmatpush1.msra.mxu0 %v2772
        %4095 = vmatprep.subr.mxu0 %v2769
        %4096 = vmatpush1.msra.mxu0 %v2768
        %4097 = vmatprep.subr.mxu0 %v2765
        %4098 = vmatpush1.msra.mxu0 %v2764
        %4099 = vmatprep.subr.mxu0 %v2761
        %4100 = vmatpush1.msra.mxu0 %v2760
        %4101 = vmatprep.subr.mxu0 %v2757
        %4102 = vmatpush1.msra.mxu0 %v2756
        %4103 = vmatprep.subr.mxu0 %v2753
        %4104 = vmatpush1.msra.mxu0 %v2752
        %4105 = vmatprep.subr.mxu0 %v2749
        %4106 = vmatpush1.msra.mxu0 %v2748
        %4107 = vmatprep.subr.mxu0 %v2873
        %4108 = vmatpush2.msra.mxu0 %v2872
        %4109 = vmatprep.subr.mxu0 %v2869
        %4110 = vmatpush2.msra.mxu0 %v2868
        %4111 = vmatprep.subr.mxu0 %v2865
        %4112 = vmatpush2.msra.mxu0 %v2864
        %4113 = vmatprep.subr.mxu0 %v2861
        %4114 = vmatpush2.msra.mxu0 %v2860
        %4115 = vmatprep.subr.mxu0 %v2857
        %4116 = vmatpush2.msra.mxu0 %v2856
        %4117 = vmatprep.subr.mxu0 %v2853
        %4118 = vmatpush2.msra.mxu0 %v2852
        %4119 = vmatprep.subr.mxu0 %v2849
        %4120 = vmatpush2.msra.mxu0 %v2848
        %4121 = vmatprep.subr.mxu0 %v2845
        %4122 = vmatpush2.msra.mxu0 %v2844
        %4123 = vmatprep.subr.mxu0 %v2841
        %4124 = vmatpush2.msra.mxu0 %v2840
        %4125 = vmatprep.subr.mxu0 %v2837
        %4126 = vmatpush2.msra.mxu0 %v2836
        %4127 = vmatprep.subr.mxu0 %v2833
        %4128 = vmatpush2.msra.mxu0 %v2832
        %4129 = vmatprep.subr.mxu0 %v2829
        %4130 = vmatpush2.msra.mxu0 %v2828
        %4131 = vmatprep.subr.mxu0 %v2825
        %4132 = vmatpush2.msra.mxu0 %v2824
        %4133 = vmatprep.subr.mxu0 %v2821
        %4134 = vmatpush2.msra.mxu0 %v2820
        %4135 = vmatprep.subr.mxu0 %v2817
        %4136 = vmatpush2.msra.mxu0 %v2816
        %4137 = vmatprep.subr.mxu0 %v2813
        %4138 = vmatpush2.msra.mxu0 %v2812
        %4139 = vmatprep.mubr.f32.mxu0 %v2101
        %4140 = vmatmul.mubr.f32.gmra.mxu0 %v2100
        %v4141 = vpop.f32.mrf.mxu0
        %v4142 = vadd.f32 %v4071, %v4141
        %v4143 = vpop.f32.mrf.mxu0
        %v4144 = vadd.f32 %v4073, %v4143
        %4145 = vdwg.mxu0
        %4146 = vmatprep.subr.mxu0 %v2937
        %4147 = vmatpush1.msra.mxu0 %v2936
        %4148 = vmatprep.subr.mxu0 %v2933
        %4149 = vmatpush1.msra.mxu0 %v2932
        %4150 = vmatprep.subr.mxu0 %v2929
        %4151 = vmatpush1.msra.mxu0 %v2928
        %4152 = vmatprep.subr.mxu0 %v2925
        %4153 = vmatpush1.msra.mxu0 %v2924
        %4154 = vmatprep.subr.mxu0 %v2921
        %4155 = vmatpush1.msra.mxu0 %v2920
        %4156 = vmatprep.subr.mxu0 %v2917
        %4157 = vmatpush1.msra.mxu0 %v2916
        %4158 = vmatprep.subr.mxu0 %v2913
        %4159 = vmatpush1.msra.mxu0 %v2912
        %4160 = vmatprep.subr.mxu0 %v2909
        %4161 = vmatpush1.msra.mxu0 %v2908
        %4162 = vmatprep.subr.mxu0 %v2905
        %4163 = vmatpush1.msra.mxu0 %v2904
        %4164 = vmatprep.subr.mxu0 %v2901
        %4165 = vmatpush1.msra.mxu0 %v2900
        %4166 = vmatprep.subr.mxu0 %v2897
        %4167 = vmatpush1.msra.mxu0 %v2896
        %4168 = vmatprep.subr.mxu0 %v2893
        %4169 = vmatpush1.msra.mxu0 %v2892
        %4170 = vmatprep.subr.mxu0 %v2889
        %4171 = vmatpush1.msra.mxu0 %v2888
        %4172 = vmatprep.subr.mxu0 %v2885
        %4173 = vmatpush1.msra.mxu0 %v2884
        %4174 = vmatprep.subr.mxu0 %v2881
        %4175 = vmatpush1.msra.mxu0 %v2880
        %4176 = vmatprep.subr.mxu0 %v2877
        %4177 = vmatpush1.msra.mxu0 %v2876
        %4178 = vmatprep.subr.mxu0 %v3001
        %4179 = vmatpush2.msra.mxu0 %v3000
        %4180 = vmatprep.subr.mxu0 %v2997
        %4181 = vmatpush2.msra.mxu0 %v2996
        %4182 = vmatprep.subr.mxu0 %v2993
        %4183 = vmatpush2.msra.mxu0 %v2992
        %4184 = vmatprep.subr.mxu0 %v2989
        %4185 = vmatpush2.msra.mxu0 %v2988
        %4186 = vmatprep.subr.mxu0 %v2985
        %4187 = vmatpush2.msra.mxu0 %v2984
        %4188 = vmatprep.subr.mxu0 %v2981
        %4189 = vmatpush2.msra.mxu0 %v2980
        %4190 = vmatprep.subr.mxu0 %v2977
        %4191 = vmatpush2.msra.mxu0 %v2976
        %4192 = vmatprep.subr.mxu0 %v2973
        %4193 = vmatpush2.msra.mxu0 %v2972
        %4194 = vmatprep.subr.mxu0 %v2969
        %4195 = vmatpush2.msra.mxu0 %v2968
        %4196 = vmatprep.subr.mxu0 %v2965
        %4197 = vmatpush2.msra.mxu0 %v2964
        %4198 = vmatprep.subr.mxu0 %v2961
        %4199 = vmatpush2.msra.mxu0 %v2960
        %4200 = vmatprep.subr.mxu0 %v2957
        %4201 = vmatpush2.msra.mxu0 %v2956
        %4202 = vmatprep.subr.mxu0 %v2953
        %4203 = vmatpush2.msra.mxu0 %v2952
        %4204 = vmatprep.subr.mxu0 %v2949
        %4205 = vmatpush2.msra.mxu0 %v2948
        %4206 = vmatprep.subr.mxu0 %v2945
        %4207 = vmatpush2.msra.mxu0 %v2944
        %4208 = vmatprep.subr.mxu0 %v2941
        %4209 = vmatpush2.msra.mxu0 %v2940
        %4210 = vmatprep.mubr.f32.mxu0 %v2103
        %4211 = vmatmul.mubr.f32.gmra.mxu0 %v2102
        %v4212 = vpop.f32.mrf.mxu0
        %v4213 = vadd.f32 %v4142, %v4212
        %v4214 = vpop.f32.mrf.mxu0
        %v4215 = vadd.f32 %v4144, %v4214
        %4216 = vdwg.mxu0
        %4217 = vmatprep.subr.mxu0 %v3065
        %4218 = vmatpush1.msra.mxu0 %v3064
        %4219 = vmatprep.subr.mxu0 %v3061
        %4220 = vmatpush1.msra.mxu0 %v3060
        %4221 = vmatprep.subr.mxu0 %v3057
        %4222 = vmatpush1.msra.mxu0 %v3056
        %4223 = vmatprep.subr.mxu0 %v3053
        %4224 = vmatpush1.msra.mxu0 %v3052
        %4225 = vmatprep.subr.mxu0 %v3049
        %4226 = vmatpush1.msra.mxu0 %v3048
        %4227 = vmatprep.subr.mxu0 %v3045
        %4228 = vmatpush1.msra.mxu0 %v3044
        %4229 = vmatprep.subr.mxu0 %v3041
        %4230 = vmatpush1.msra.mxu0 %v3040
        %4231 = vmatprep.subr.mxu0 %v3037
        %4232 = vmatpush1.msra.mxu0 %v3036
        %4233 = vmatprep.subr.mxu0 %v3033
        %4234 = vmatpush1.msra.mxu0 %v3032
        %4235 = vmatprep.subr.mxu0 %v3029
        %4236 = vmatpush1.msra.mxu0 %v3028
        %4237 = vmatprep.subr.mxu0 %v3025
        %4238 = vmatpush1.msra.mxu0 %v3024
        %4239 = vmatprep.subr.mxu0 %v3021
        %4240 = vmatpush1.msra.mxu0 %v3020
        %4241 = vmatprep.subr.mxu0 %v3017
        %4242 = vmatpush1.msra.mxu0 %v3016
        %4243 = vmatprep.subr.mxu0 %v3013
        %4244 = vmatpush1.msra.mxu0 %v3012
        %4245 = vmatprep.subr.mxu0 %v3009
        %4246 = vmatpush1.msra.mxu0 %v3008
        %4247 = vmatprep.subr.mxu0 %v3005
        %4248 = vmatpush1.msra.mxu0 %v3004
        %4249 = vmatprep.subr.mxu0 %v3129
        %4250 = vmatpush2.msra.mxu0 %v3128
        %4251 = vmatprep.subr.mxu0 %v3125
        %4252 = vmatpush2.msra.mxu0 %v3124
        %4253 = vmatprep.subr.mxu0 %v3121
        %4254 = vmatpush2.msra.mxu0 %v3120
        %4255 = vmatprep.subr.mxu0 %v3117
        %4256 = vmatpush2.msra.mxu0 %v3116
        %4257 = vmatprep.subr.mxu0 %v3113
        %4258 = vmatpush2.msra.mxu0 %v3112
        %4259 = vmatprep.subr.mxu0 %v3109
        %4260 = vmatpush2.msra.mxu0 %v3108
        %4261 = vmatprep.subr.mxu0 %v3105
        %4262 = vmatpush2.msra.mxu0 %v3104
        %4263 = vmatprep.subr.mxu0 %v3101
        %4264 = vmatpush2.msra.mxu0 %v3100
        %4265 = vmatprep.subr.mxu0 %v3097
        %4266 = vmatpush2.msra.mxu0 %v3096
        %4267 = vmatprep.subr.mxu0 %v3093
        %4268 = vmatpush2.msra.mxu0 %v3092
        %4269 = vmatprep.subr.mxu0 %v3089
        %4270 = vmatpush2.msra.mxu0 %v3088
        %4271 = vmatprep.subr.mxu0 %v3085
        %4272 = vmatpush2.msra.mxu0 %v3084
        %4273 = vmatprep.subr.mxu0 %v3081
        %4274 = vmatpush2.msra.mxu0 %v3080
        %4275 = vmatprep.subr.mxu0 %v3077
        %4276 = vmatpush2.msra.mxu0 %v3076
        %4277 = vmatprep.subr.mxu0 %v3073
        %4278 = vmatpush2.msra.mxu0 %v3072
        %4279 = vmatprep.subr.mxu0 %v3069
        %4280 = vmatpush2.msra.mxu0 %v3068
        %4281 = vmatprep.mubr.f32.mxu0 %v2105
        %4282 = vmatmul.mubr.f32.gmra.mxu0 %v2104
        %v4283 = vpop.f32.mrf.mxu0
        %v4284 = vadd.f32 %v4213, %v4283
        %v4285 = vpop.f32.mrf.mxu0
        %v4286 = vadd.f32 %v4215, %v4285
        %4287 = vdwg.mxu0
        %4288 = vst [vmem:[%s247] sm:$0xff] %v3716
        %4289 = vst [vmem:[%s247 + $0x8] sm:$0xff] %v3718
        %4290 = vst [vmem:[%s247 + $0x10] sm:$0xff] %v4284
        %4291 = vst [vmem:[%s247 + $0x18] sm:$0xff] %v4286
        %s4292 = sand.u32 %s159, 1
        %s4293 = scalar_lea.sflag [#allocation3], %s4292
        %s4294 = sand.u32 %s159, 1
        %s4295 = smul.addr %s4294, 32
        %s4296 = scalar_lea.vmem [#allocation2], %s4295
        // Predicated region
        $region45: #{graph_stream_forward.1} parent=43 // pred_check
          %p4297 = pneg %p169
        $region46: #{graph_stream_forward.1} parent=43 // pred_check_branch
          %4299 = sbr.rel (%p4297) target = $region48
        $region47: #{graph_stream_forward.1} parent=43 // pred_region
          %s4301 = ssub.s32 512, 512
          %4302 = vsyncadd %s4293, %s4301
          %s4303 = smul.addr %s20, 4
          %s4304 = smul.addr %s4303, 128
          %s4305 = scalar_lea.hbm %s6, %s4304
          %s4307 = sshll.u32 %s4296, 4
          %s4308 = int_to_ptr.vmem [resolvable:$true] %s4307
          %4310 = dma.vmem_to_hbm [thread:$0]  %s4308, 512, %s4305, %s4293
        $region48: #{graph_stream_forward.1} parent=43 // pred_fallthru
          _
      $region44: #{graph_stream_forward.1} parent=5 // pred_fallthru
        _
      %p4311 = scmp.le.s32.totalorder 2, %s15
      // Predicated region
      $region49: #{graph_stream_forward.1} parent=5 // pred_check
        %p4312 = pneg %p4311
      $region50: #{graph_stream_forward.1} parent=5 // pred_check_branch
        %4314 = sbr.rel (%p4312) target = $region52
      $region51: #{graph_stream_forward.1} parent=5 // pred_region
        %s4315 = ssub.s32 %s15, 2
        // Predicated region
        $region53: #{graph_stream_forward.1} parent=51 // pred_check
          %p4316 = pneg %p175
        $region54: #{graph_stream_forward.1} parent=51 // pred_check_branch
          %4318 = sbr.rel (%p4316) target = $region56
        $region55: #{graph_stream_forward.1} parent=51 // pred_region
          %s4319 = sand.u32 %s160, 1
          %s4320 = scalar_lea.sflag [#allocation3], %s4319
          %s4321 = sand.u32 %s160, 1
          %s4322 = smul.addr %s4321, 32
          %s4323 = scalar_lea.vmem [#allocation2], %s4322
          %4324 = dma.done %s4320, 512
        $region56: #{graph_stream_forward.1} parent=51 // pred_fallthru
          _
      $region52: #{graph_stream_forward.1} parent=5 // pred_fallthru
        _
    $region6: #{graph_stream_forward.1} parent=1 // loop_footer
      %s19 = sadd.s32 1, %s15
    $region7: #{graph_stream_forward.1} parent=1 // loop_footer_branch
      %14 = sbr.rel target = $region3
    $region8: #{graph_stream_forward.1} parent=1 // loop_exit
      _
    %4325 = vsyncpa [#allocation3], 1
    %s4326 = scalar_lea.sflag [#allocation3], 1
    %4327 = vsyncpa %s4326, 1

</llo_original>
